<compile_context>
chip_gen: v7x
topology: tpu7x:2x2x1
jax: 0.10.0
libtpu: 0.0.40
codegen_flags: <defaults>
</compile_context>

<pallas_src>
import jax
import jax.numpy as jnp
from jax.experimental import pallas as pl
from jax.experimental.pallas import tpu as pltpu


def _dal_mlp_kernel(x_ref, w1_ref, b1_ref, w2_ref, b2_ref, w3_ref, b3_ref, o_ref):
    # x_ref: (TILE_B, 2n) bf16 | w1: (2n, n) bf16 | w2: (n, n) bf16
    # b1/b2: (1, n) f32 | w3: (1, n) f32 | b3: (1, 1) f32 | o_ref: (TILE_B, 1) f32
    x = x_ref[...]

    # Layer 1: Linear (MXU, f32 accumulation) + bias + ReLU (f32 VPU).
    h1 = jnp.dot(x, w1_ref[...], preferred_element_type=jnp.float32)
    h1 = jnp.maximum(h1 + b1_ref[...], 0.0)

    # Layer 2: Linear + ReLU (bf16 MXU inputs, f32 accumulation / elementwise).
    h2 = jnp.dot(h1.astype(jnp.bfloat16), w2_ref[...], preferred_element_type=jnp.float32)
    h2 = jnp.maximum(h2 + b2_ref[...], 0.0)

    # Layer 3 (n -> 1): VPU multiply + lane reduction keeps the MXU slot free.
    logit = jnp.sum(h2 * w3_ref[...], axis=-1, keepdims=True) + b3_ref[...]
    o_ref[...] = jax.nn.sigmoid(logit).astype(o_ref.dtype)


def _round_up(x, m):
    return (x + m - 1) // m * m


def _dal_discriminator_batched(x, params, *, tile_b):
    """Run the fused 3-layer MLP on x: (rows, 2n) -> (rows, 1) sigmoid scores."""
    w1, b1, w2, b2, w3, b3 = params
    rows, two_n = x.shape
    n = w2.shape[0]

    padded = _round_up(max(rows, 1), tile_b)
    xb = x.astype(jnp.bfloat16)
    if padded != rows:
        xb = jnp.pad(xb, ((0, padded - rows), (0, 0)))
    num_tiles = padded // tile_b

    flops = 2 * padded * (two_n * n + n * n + n)
    bytes_accessed = (
        xb.size * xb.dtype.itemsize
        + sum(int(p.size) * p.dtype.itemsize for p in params)
        + padded * 4
    )

    grid_spec = pltpu.PrefetchScalarGridSpec(
        num_scalar_prefetch=0,
        grid=(num_tiles,),
        in_specs=[
            pl.BlockSpec((tile_b, two_n), lambda i: (i, 0)),   # streamed activations
            pl.BlockSpec(w1.shape, lambda i: (0, 0)),          # VMEM-resident weights/biases
            pl.BlockSpec(b1.shape, lambda i: (0, 0)),
            pl.BlockSpec(w2.shape, lambda i: (0, 0)),
            pl.BlockSpec(b2.shape, lambda i: (0, 0)),
            pl.BlockSpec(w3.shape, lambda i: (0, 0)),
            pl.BlockSpec(b3.shape, lambda i: (0, 0)),
        ],
        out_specs=pl.BlockSpec((tile_b, 1), lambda i: (i, 0)),
    )

    out = pl.pallas_call(
        _dal_mlp_kernel,
        out_shape=jax.ShapeDtypeStruct((padded, 1), jnp.float32),
        grid_spec=grid_spec,
        compiler_params=pltpu.CompilerParams(dimension_semantics=("parallel",)),
        cost_estimate=pl.CostEstimate(
            flops=flops, transcendentals=padded, bytes_accessed=bytes_accessed),
    )(xb, w1, b1, w2, b2, w3, b3)
    return out[:rows]


def dal_regularizer(pzx, pzpx, params, *, tile_b=1024):
    """Matches DAL_regularizer.forward: returns (pzx_scores, pzpx_scores)."""
    b_pzx = pzx.shape[0]
    x = jnp.concatenate([pzx, pzpx], axis=0)          # fused single kernel launch
    scores = _dal_discriminator_batched(x, params, tile_b=tile_b)
    return scores[:b_pzx], scores[b_pzx:]


def init_params(key, n_in):
    """Mimics nn.Linear's uniform(-1/sqrt(fan_in), 1/sqrt(fan_in)) init.

    Weights are stored as (in, out) — transposed vs PyTorch — with the big streamed matrices
    in bf16; biases and the final (1, n) projection row stay in f32.
    """
    def linear(k, fan_in, fan_out):
        kw, kb = jax.random.split(k)
        bound = 1.0 / jnp.sqrt(jnp.float32(fan_in))
        w = jax.random.uniform(kw, (fan_in, fan_out), jnp.float32, -bound, bound)
        b = jax.random.uniform(kb, (1, fan_out), jnp.float32, -bound, bound)
        return w, b

    k1, k2, k3 = jax.random.split(key, 3)
    w1, b1 = linear(k1, 2 * n_in, n_in)
    w2, b2 = linear(k2, n_in, n_in)
    w3, b3 = linear(k3, n_in, 1)
    w1 = w1.astype(jnp.bfloat16)
    w2 = w2.astype(jnp.bfloat16)
    w3 = w3.reshape(1, n_in)          # row vector for the VPU multiply in layer 3
    b3 = b3.reshape(1, 1)
    return (w1, b1, w2, b2, w3, b3)


def _reference_mixed(x, params):
    """Pure-JAX reference with the same dtype handling as the kernel."""
    w1, b1, w2, b2, w3, b3 = params
    xb = x.astype(jnp.bfloat16)
    h1 = jnp.maximum(jnp.dot(xb, w1, preferred_element_type=jnp.float32) + b1, 0.0)
    h2 = jnp.maximum(
        jnp.dot(h1.astype(jnp.bfloat16), w2, preferred_element_type=jnp.float32) + b2, 0.0)
    logit = jnp.sum(h2 * w3, axis=-1, keepdims=True) + b3
    return jax.nn.sigmoid(logit)


def _reference_f32(x, params):
    """Full-f32 reference of the PyTorch spec (loose check vs bf16 streaming)."""
    w1, b1, w2, b2, w3, b3 = params
    w1, w2 = w1.astype(jnp.float32), w2.astype(jnp.float32)
    h1 = jnp.maximum(x @ w1 + b1, 0.0)
    h2 = jnp.maximum(h1 @ w2 + b2, 0.0)
    return jax.nn.sigmoid(jnp.sum(h2 * w3, axis=-1, keepdims=True) + b3)


if __name__ == "__main__":
    n_in = 32       # feature dim of the discriminator hidden layers
    batch = 8

    key = jax.random.PRNGKey(0)
    kp, kx, kpx, kbig = jax.random.split(key, 4)

    params = init_params(kp, n_in)
    pzx = jax.random.normal(kx, (batch, 2 * n_in), jnp.float32)
    pzpx = jax.random.normal(kpx, (batch, 2 * n_in), jnp.float32)

    pzx_scores, pzpx_scores = dal_regularizer(pzx, pzpx, params)
    jax.block_until_ready((pzx_scores, pzpx_scores))

    assert pzx_scores.shape == (batch, 1)
    assert pzpx_scores.shape == (batch, 1)
    assert jnp.allclose(pzx_scores, _reference_mixed(pzx, params), atol=1e-4)
    assert jnp.allclose(pzpx_scores, _reference_mixed(pzpx, params), atol=1e-4)
    assert jnp.allclose(pzx_scores, _reference_f32(pzx, params), atol=5e-2)
    assert jnp.allclose(pzpx_scores, _reference_f32(pzpx, params), atol=5e-2)

    # Exercise the multi-tile grid path (padding + several grid steps) with a smaller tile.
    big = 300
    kb1, kb2 = jax.random.split(kbig)
    bx = jax.random.normal(kb1, (big, 2 * n_in), jnp.float32)
    bpx = jax.random.normal(kb2, (big, 2 * n_in), jnp.float32)
    bs1, bs2 = dal_regularizer(bx, bpx, params, tile_b=256)
    jax.block_until_ready((bs1, bs2))
    assert bs1.shape == (big, 1) and bs2.shape == (big, 1)
    assert jnp.allclose(bs1, _reference_mixed(bx, params), atol=1e-4)
    assert jnp.allclose(bs2, _reference_mixed(bpx, params), atol=1e-4)

    print("KERNEL_OK")
</pallas_src>

<mosaic_0001>
module attributes {stable_mosaic.version = 11 : i64} {
  func.func @_dal_mlp_kernel(%arg0: i32, %arg1: memref<1024x64xbf16, #tpu.memory_space<vmem>>, %arg2: memref<64x32xbf16, #tpu.memory_space<vmem>>, %arg3: memref<1x32xf32, #tpu.memory_space<vmem>>, %arg4: memref<32x32xbf16, #tpu.memory_space<vmem>>, %arg5: memref<1x32xf32, #tpu.memory_space<vmem>>, %arg6: memref<1x32xf32, #tpu.memory_space<vmem>>, %arg7: memref<1x1xf32, #tpu.memory_space<vmem>>, %arg8: memref<1024x1xf32, #tpu.memory_space<vmem>>) attributes {dimension_semantics = [#tpu.dimension_semantics<parallel>], iteration_bounds = array<i64: 1>, scalar_prefetch = 0 : i64, scratch_operands = 0 : i64, tpu.core_type = #tpu.core_type<tc>, window_params = [{transform_indices = @transform_0, window_bounds = array<i64: 1024, 64>}, {pipeline_mode = #tpu.pipeline_mode<synchronous>, transform_indices = @transform_1, window_bounds = array<i64: 64, 32>}, {pipeline_mode = #tpu.pipeline_mode<synchronous>, transform_indices = @transform_2, window_bounds = array<i64: 1, 32>}, {pipeline_mode = #tpu.pipeline_mode<synchronous>, transform_indices = @transform_3, window_bounds = array<i64: 32, 32>}, {pipeline_mode = #tpu.pipeline_mode<synchronous>, transform_indices = @transform_4, window_bounds = array<i64: 1, 32>}, {pipeline_mode = #tpu.pipeline_mode<synchronous>, transform_indices = @transform_5, window_bounds = array<i64: 1, 32>}, {pipeline_mode = #tpu.pipeline_mode<synchronous>, transform_indices = @transform_6, window_bounds = array<i64: 1, 1>}, {transform_indices = @transform_7, window_bounds = array<i64: 1024, 1>}]} {
    %c0 = arith.constant 0 : index
    %c0_0 = arith.constant 0 : index
    %0 = vector.load %arg1[%c0, %c0_0] : memref<1024x64xbf16, #tpu.memory_space<vmem>>, vector<1024x64xbf16>
    %c0_1 = arith.constant 0 : index
    %c0_2 = arith.constant 0 : index
    %1 = vector.load %arg2[%c0_1, %c0_2] : memref<64x32xbf16, #tpu.memory_space<vmem>>, vector<64x32xbf16>
    %cst = arith.constant dense<0.000000e+00> : vector<1024x32xf32>
    %2 = tpu.matmul %0, %1, %cst {dimension_numbers = #tpu.dot_dimension_numbers<[1], [0], [0], [1], [0, 0, 1, 1], [], []>} : vector<1024x64xbf16>, vector<64x32xbf16>, vector<1024x32xf32> -> vector<1024x32xf32>
    %c0_3 = arith.constant 0 : index
    %c0_4 = arith.constant 0 : index
    %3 = vector.load %arg3[%c0_3, %c0_4] : memref<1x32xf32, #tpu.memory_space<vmem>>, vector<1x32xf32>
    %4 = vector.broadcast %3 : vector<1x32xf32> to vector<1024x32xf32>
    %5 = arith.addf %2, %4 : vector<1024x32xf32>
    %cst_5 = arith.constant 0.000000e+00 : f32
    %6 = vector.broadcast %cst_5 : f32 to vector<1024x32xf32>
    %7 = arith.maximumf %5, %6 : vector<1024x32xf32>
    %8 = arith.truncf %7 : vector<1024x32xf32> to vector<1024x32xbf16>
    %c0_6 = arith.constant 0 : index
    %c0_7 = arith.constant 0 : index
    %9 = vector.load %arg4[%c0_6, %c0_7] : memref<32x32xbf16, #tpu.memory_space<vmem>>, vector<32x32xbf16>
    %cst_8 = arith.constant dense<0.000000e+00> : vector<1024x32xf32>
    %10 = tpu.matmul %8, %9, %cst_8 {dimension_numbers = #tpu.dot_dimension_numbers<[1], [0], [0], [1], [0, 0, 1, 1], [], []>} : vector<1024x32xbf16>, vector<32x32xbf16>, vector<1024x32xf32> -> vector<1024x32xf32>
    %c0_9 = arith.constant 0 : index
    %c0_10 = arith.constant 0 : index
    %11 = vector.load %arg5[%c0_9, %c0_10] : memref<1x32xf32, #tpu.memory_space<vmem>>, vector<1x32xf32>
    %12 = vector.broadcast %11 : vector<1x32xf32> to vector<1024x32xf32>
    %13 = arith.addf %10, %12 : vector<1024x32xf32>
    %cst_11 = arith.constant 0.000000e+00 : f32
    %14 = vector.broadcast %cst_11 : f32 to vector<1024x32xf32>
    %15 = arith.maximumf %13, %14 : vector<1024x32xf32>
    %c0_12 = arith.constant 0 : index
    %c0_13 = arith.constant 0 : index
    %16 = vector.load %arg6[%c0_12, %c0_13] : memref<1x32xf32, #tpu.memory_space<vmem>>, vector<1x32xf32>
    %17 = vector.broadcast %16 : vector<1x32xf32> to vector<1024x32xf32>
    %18 = arith.mulf %15, %17 : vector<1024x32xf32>
    %cst_14 = arith.constant dense<0.000000e+00> : vector<1024xf32>
    %19 = vector.multi_reduction <add>, %18, %cst_14 [1] : vector<1024x32xf32> to vector<1024xf32>
    %20 = vector.shape_cast %19 : vector<1024xf32> to vector<1024x1xf32>
    %c0_15 = arith.constant 0 : index
    %c0_16 = arith.constant 0 : index
    %21 = vector.load %arg7[%c0_15, %c0_16] : memref<1x1xf32, #tpu.memory_space<vmem>>, vector<1x1xf32>
    %22 = vector.broadcast %21 : vector<1x1xf32> to vector<1024x1xf32>
    %23 = arith.addf %20, %22 : vector<1024x1xf32>
    %24 = arith.negf %23 : vector<1024x1xf32>
    %25 = math.exp %24 : vector<1024x1xf32>
    %cst_17 = arith.constant 1.000000e+00 : f32
    %26 = vector.broadcast %cst_17 : f32 to vector<1024x1xf32>
    %27 = arith.addf %26, %25 : vector<1024x1xf32>
    %28 = arith.divf %26, %27 : vector<1024x1xf32>
    %c0_18 = arith.constant 0 : index
    %c0_19 = arith.constant 0 : index
    %29 = vector.load %arg8[%c0_18, %c0_19] : memref<1024x1xf32, #tpu.memory_space<vmem>>, vector<1024x1xf32>
    tpu.vector_store %arg8[%c0_18, %c0_19], %28 {strides = array<i32>} : memref<1024x1xf32, #tpu.memory_space<vmem>>, vector<1024x1xf32>,
    return
  }
  func.func @transform_0(%arg0: i32) -> (i32, i32) {
    %c0_i32 = arith.constant 0 : i32
    %c0_i32_0 = arith.constant 0 : i32
    return %arg0, %c0_i32 : i32, i32
  }
  func.func @transform_1(%arg0: i32) -> (i32, i32) {
    %c0_i32 = arith.constant 0 : i32
    %c0_i32_0 = arith.constant 0 : i32
    %c0_i32_1 = arith.constant 0 : i32
    return %c0_i32, %c0_i32_0 : i32, i32
  }
  func.func @transform_2(%arg0: i32) -> (i32, i32) {
    %c0_i32 = arith.constant 0 : i32
    %c0_i32_0 = arith.constant 0 : i32
    %c0_i32_1 = arith.constant 0 : i32
    return %c0_i32, %c0_i32_0 : i32, i32
  }
  func.func @transform_3(%arg0: i32) -> (i32, i32) {
    %c0_i32 = arith.constant 0 : i32
    %c0_i32_0 = arith.constant 0 : i32
    %c0_i32_1 = arith.constant 0 : i32
    return %c0_i32, %c0_i32_0 : i32, i32
  }
  func.func @transform_4(%arg0: i32) -> (i32, i32) {
    %c0_i32 = arith.constant 0 : i32
    %c0_i32_0 = arith.constant 0 : i32
    %c0_i32_1 = arith.constant 0 : i32
    return %c0_i32, %c0_i32_0 : i32, i32
  }
  func.func @transform_5(%arg0: i32) -> (i32, i32) {
    %c0_i32 = arith.constant 0 : i32
    %c0_i32_0 = arith.constant 0 : i32
    %c0_i32_1 = arith.constant 0 : i32
    return %c0_i32, %c0_i32_0 : i32, i32
  }
  func.func @transform_6(%arg0: i32) -> (i32, i32) {
    %c0_i32 = arith.constant 0 : i32
    %c0_i32_0 = arith.constant 0 : i32
    %c0_i32_1 = arith.constant 0 : i32
    return %c0_i32, %c0_i32_0 : i32, i32
  }
  func.func @transform_7(%arg0: i32) -> (i32, i32) {
    %c0_i32 = arith.constant 0 : i32
    %c0_i32_0 = arith.constant 0 : i32
    return %arg0, %c0_i32 : i32, i32
  }
}

</mosaic_0001>

<llo_original>
// kernel: tpu_custom_call.1
$region0: #{tpu_custom_call.1}
  #allocation0 [shape = 'u32[]', space=smem, size = 0x4, offset = 0x4, fixed_abs, tag = 'smem constant byte address 0x4 - core index']
  #allocation1 [shape = 'u32[144,128]{1,0:T(1,128)}', space=vmem, size = 0x12000, scoped, tag = 'internal scratch']
  #allocation2 [shape = 'f32[1,1]{1,0:T(1,128)S(1)}', space=vmem, size = 0x200, scoped, tag = 'scoped memory for tpu_custom_call.1']
  %s0 = inlined_call_operand.vmem [shape: bf16[1024,64], index: 0, kind: input, shape index: {}]
  %s1 = inlined_call_operand.vmem [shape: bf16[64,32], index: 1, kind: input, shape index: {}]
  %s2 = inlined_call_operand.vmem [shape: f32[1,32], index: 2, kind: input, shape index: {}]
  %s3 = inlined_call_operand.vmem [shape: bf16[32,32], index: 3, kind: input, shape index: {}]
  %s4 = inlined_call_operand.vmem [shape: f32[1,32], index: 4, kind: input, shape index: {}]
  %s5 = inlined_call_operand.vmem [shape: f32[1,32], index: 5, kind: input, shape index: {}]
  %s6 = inlined_call_operand.<no memory space> [shape: f32[1,1], index: 6, kind: input, shape index: {}]
  %s7 = inlined_call_operand.vmem [shape: f32[1024,1], index: 7, kind: output, shape index: {}]
  %s8 = sld [smem:[#allocation0]]
  $region38: #{tpu_custom_call.1} parent=0
    _
  %s10 = ssub.s32 1, %s8
  %s11 = scalar_select 0, %s10, %s8
  %v12 = vstv %s6
  %13 = vst [vmem:[#allocation2] sm:$0x1] %v12
  // Predicated region
  $region2: #{tpu_custom_call.1} parent=0 // pred_check
    _
  $region3: #{tpu_custom_call.1} parent=0 // pred_check_branch
    %15 = sbr.rel (0) target = $region5
  $region4: #{tpu_custom_call.1} parent=0 // pred_region
    _
  $region5: #{tpu_custom_call.1} parent=0 // pred_fallthru
    _
  // Predicated region
  $region6: #{tpu_custom_call.1} parent=0 // pred_check
    _
  $region7: #{tpu_custom_call.1} parent=0 // pred_check_branch
    %17 = sbr.rel (0) target = $region9
  $region8: #{tpu_custom_call.1} parent=0 // pred_region
    _
  $region9: #{tpu_custom_call.1} parent=0 // pred_fallthru
    _
  // Predicated region
  $region10: #{tpu_custom_call.1} parent=0 // pred_check
    _
  $region11: #{tpu_custom_call.1} parent=0 // pred_check_branch
    %19 = sbr.rel (0) target = $region13
  $region12: #{tpu_custom_call.1} parent=0 // pred_region
    _
  $region13: #{tpu_custom_call.1} parent=0 // pred_fallthru
    _
  // Predicated region
  $region14: #{tpu_custom_call.1} parent=0 // pred_check
    _
  $region15: #{tpu_custom_call.1} parent=0 // pred_check_branch
    %21 = sbr.rel (0) target = $region17
  $region16: #{tpu_custom_call.1} parent=0 // pred_region
    _
  $region17: #{tpu_custom_call.1} parent=0 // pred_fallthru
    _
  // Predicated region
  $region18: #{tpu_custom_call.1} parent=0 // pred_check
    _
  $region19: #{tpu_custom_call.1} parent=0 // pred_check_branch
    %23 = sbr.rel (0) target = $region21
  $region20: #{tpu_custom_call.1} parent=0 // pred_region
    _
  $region21: #{tpu_custom_call.1} parent=0 // pred_fallthru
    _
  // Predicated region
  $region22: #{tpu_custom_call.1} parent=0 // pred_check
    _
  $region23: #{tpu_custom_call.1} parent=0 // pred_check_branch
    %25 = sbr.rel (0) target = $region25
  $region24: #{tpu_custom_call.1} parent=0 // pred_region
    _
  $region25: #{tpu_custom_call.1} parent=0 // pred_fallthru
    _
  // Predicated region
  $region26: #{tpu_custom_call.1} parent=0 // pred_check
    _
  $region27: #{tpu_custom_call.1} parent=0 // pred_check_branch
    %27 = sbr.rel (0) target = $region29
  $region28: #{tpu_custom_call.1} parent=0 // pred_region
    _
  $region29: #{tpu_custom_call.1} parent=0 // pred_fallthru
    _
  %v29 = vld [vmem:[%s0] sm:$0xf]
  %v30 = vld [vmem:[%s0 + $0x4] sm:$0xf]
  %v31 = vld [vmem:[%s0 + $0x8] sm:$0xf]
  %v32 = vld [vmem:[%s0 + $0xc] sm:$0xf]
  %v33 = vld [vmem:[%s0 + $0x10] sm:$0xf]
  %v34 = vld [vmem:[%s0 + $0x14] sm:$0xf]
  %v35 = vld [vmem:[%s0 + $0x18] sm:$0xf]
  %v36 = vld [vmem:[%s0 + $0x1c] sm:$0xf]
  %v37 = vld [vmem:[%s0 + $0x20] sm:$0xf]
  %v38 = vld [vmem:[%s0 + $0x24] sm:$0xf]
  %v39 = vld [vmem:[%s0 + $0x28] sm:$0xf]
  %v40 = vld [vmem:[%s0 + $0x2c] sm:$0xf]
  %v41 = vld [vmem:[%s0 + $0x30] sm:$0xf]
  %v42 = vld [vmem:[%s0 + $0x34] sm:$0xf]
  %v43 = vld [vmem:[%s0 + $0x38] sm:$0xf]
  %v44 = vld [vmem:[%s0 + $0x3c] sm:$0xf]
  %v45 = vld [vmem:[%s0 + $0x40] sm:$0xf]
  %v46 = vld [vmem:[%s0 + $0x44] sm:$0xf]
  %v47 = vld [vmem:[%s0 + $0x48] sm:$0xf]
  %v48 = vld [vmem:[%s0 + $0x4c] sm:$0xf]
  %v49 = vld [vmem:[%s0 + $0x50] sm:$0xf]
  %v50 = vld [vmem:[%s0 + $0x54] sm:$0xf]
  %v51 = vld [vmem:[%s0 + $0x58] sm:$0xf]
  %v52 = vld [vmem:[%s0 + $0x5c] sm:$0xf]
  %v53 = vld [vmem:[%s0 + $0x60] sm:$0xf]
  %v54 = vld [vmem:[%s0 + $0x64] sm:$0xf]
  %v55 = vld [vmem:[%s0 + $0x68] sm:$0xf]
  %v56 = vld [vmem:[%s0 + $0x6c] sm:$0xf]
  %v57 = vld [vmem:[%s0 + $0x70] sm:$0xf]
  %v58 = vld [vmem:[%s0 + $0x74] sm:$0xf]
  %v59 = vld [vmem:[%s0 + $0x78] sm:$0xf]
  %v60 = vld [vmem:[%s0 + $0x7c] sm:$0xf]
  %v61 = vld [vmem:[%s0 + $0x80] sm:$0xf]
  %v62 = vld [vmem:[%s0 + $0x84] sm:$0xf]
  %v63 = vld [vmem:[%s0 + $0x88] sm:$0xf]
  %v64 = vld [vmem:[%s0 + $0x8c] sm:$0xf]
  %v65 = vld [vmem:[%s0 + $0x90] sm:$0xf]
  %v66 = vld [vmem:[%s0 + $0x94] sm:$0xf]
  %v67 = vld [vmem:[%s0 + $0x98] sm:$0xf]
  %v68 = vld [vmem:[%s0 + $0x9c] sm:$0xf]
  %v69 = vld [vmem:[%s0 + $0xa0] sm:$0xf]
  %v70 = vld [vmem:[%s0 + $0xa4] sm:$0xf]
  %v71 = vld [vmem:[%s0 + $0xa8] sm:$0xf]
  %v72 = vld [vmem:[%s0 + $0xac] sm:$0xf]
  %v73 = vld [vmem:[%s0 + $0xb0] sm:$0xf]
  %v74 = vld [vmem:[%s0 + $0xb4] sm:$0xf]
  %v75 = vld [vmem:[%s0 + $0xb8] sm:$0xf]
  %v76 = vld [vmem:[%s0 + $0xbc] sm:$0xf]
  %v77 = vld [vmem:[%s0 + $0xc0] sm:$0xf]
  %v78 = vld [vmem:[%s0 + $0xc4] sm:$0xf]
  %v79 = vld [vmem:[%s0 + $0xc8] sm:$0xf]
  %v80 = vld [vmem:[%s0 + $0xcc] sm:$0xf]
  %v81 = vld [vmem:[%s0 + $0xd0] sm:$0xf]
  %v82 = vld [vmem:[%s0 + $0xd4] sm:$0xf]
  %v83 = vld [vmem:[%s0 + $0xd8] sm:$0xf]
  %v84 = vld [vmem:[%s0 + $0xdc] sm:$0xf]
  %v85 = vld [vmem:[%s0 + $0xe0] sm:$0xf]
  %v86 = vld [vmem:[%s0 + $0xe4] sm:$0xf]
  %v87 = vld [vmem:[%s0 + $0xe8] sm:$0xf]
  %v88 = vld [vmem:[%s0 + $0xec] sm:$0xf]
  %v89 = vld [vmem:[%s0 + $0xf0] sm:$0xf]
  %v90 = vld [vmem:[%s0 + $0xf4] sm:$0xf]
  %v91 = vld [vmem:[%s0 + $0xf8] sm:$0xf]
  %v92 = vld [vmem:[%s0 + $0xfc] sm:$0xf]
  %v93 = vld [vmem:[%s0 + $0x100] sm:$0xf]
  %v94 = vld [vmem:[%s0 + $0x104] sm:$0xf]
  %v95 = vld [vmem:[%s0 + $0x108] sm:$0xf]
  %v96 = vld [vmem:[%s0 + $0x10c] sm:$0xf]
  %v97 = vld [vmem:[%s0 + $0x110] sm:$0xf]
  %v98 = vld [vmem:[%s0 + $0x114] sm:$0xf]
  %v99 = vld [vmem:[%s0 + $0x118] sm:$0xf]
  %v100 = vld [vmem:[%s0 + $0x11c] sm:$0xf]
  %v101 = vld [vmem:[%s0 + $0x120] sm:$0xf]
  %v102 = vld [vmem:[%s0 + $0x124] sm:$0xf]
  %v103 = vld [vmem:[%s0 + $0x128] sm:$0xf]
  %v104 = vld [vmem:[%s0 + $0x12c] sm:$0xf]
  %v105 = vld [vmem:[%s0 + $0x130] sm:$0xf]
  %v106 = vld [vmem:[%s0 + $0x134] sm:$0xf]
  %v107 = vld [vmem:[%s0 + $0x138] sm:$0xf]
  %v108 = vld [vmem:[%s0 + $0x13c] sm:$0xf]
  %v109 = vld [vmem:[%s0 + $0x140] sm:$0xf]
  %v110 = vld [vmem:[%s0 + $0x144] sm:$0xf]
  %v111 = vld [vmem:[%s0 + $0x148] sm:$0xf]
  %v112 = vld [vmem:[%s0 + $0x14c] sm:$0xf]
  %v113 = vld [vmem:[%s0 + $0x150] sm:$0xf]
  %v114 = vld [vmem:[%s0 + $0x154] sm:$0xf]
  %v115 = vld [vmem:[%s0 + $0x158] sm:$0xf]
  %v116 = vld [vmem:[%s0 + $0x15c] sm:$0xf]
  %v117 = vld [vmem:[%s0 + $0x160] sm:$0xf]
  %v118 = vld [vmem:[%s0 + $0x164] sm:$0xf]
  %v119 = vld [vmem:[%s0 + $0x168] sm:$0xf]
  %v120 = vld [vmem:[%s0 + $0x16c] sm:$0xf]
  %v121 = vld [vmem:[%s0 + $0x170] sm:$0xf]
  %v122 = vld [vmem:[%s0 + $0x174] sm:$0xf]
  %v123 = vld [vmem:[%s0 + $0x178] sm:$0xf]
  %v124 = vld [vmem:[%s0 + $0x17c] sm:$0xf]
  %v125 = vld [vmem:[%s0 + $0x180] sm:$0xf]
  %v126 = vld [vmem:[%s0 + $0x184] sm:$0xf]
  %v127 = vld [vmem:[%s0 + $0x188] sm:$0xf]
  %v128 = vld [vmem:[%s0 + $0x18c] sm:$0xf]
  %v129 = vld [vmem:[%s0 + $0x190] sm:$0xf]
  %v130 = vld [vmem:[%s0 + $0x194] sm:$0xf]
  %v131 = vld [vmem:[%s0 + $0x198] sm:$0xf]
  %v132 = vld [vmem:[%s0 + $0x19c] sm:$0xf]
  %v133 = vld [vmem:[%s0 + $0x1a0] sm:$0xf]
  %v134 = vld [vmem:[%s0 + $0x1a4] sm:$0xf]
  %v135 = vld [vmem:[%s0 + $0x1a8] sm:$0xf]
  %v136 = vld [vmem:[%s0 + $0x1ac] sm:$0xf]
  %v137 = vld [vmem:[%s0 + $0x1b0] sm:$0xf]
  %v138 = vld [vmem:[%s0 + $0x1b4] sm:$0xf]
  %v139 = vld [vmem:[%s0 + $0x1b8] sm:$0xf]
  %v140 = vld [vmem:[%s0 + $0x1bc] sm:$0xf]
  %v141 = vld [vmem:[%s0 + $0x1c0] sm:$0xf]
  %v142 = vld [vmem:[%s0 + $0x1c4] sm:$0xf]
  %v143 = vld [vmem:[%s0 + $0x1c8] sm:$0xf]
  %v144 = vld [vmem:[%s0 + $0x1cc] sm:$0xf]
  %v145 = vld [vmem:[%s0 + $0x1d0] sm:$0xf]
  %v146 = vld [vmem:[%s0 + $0x1d4] sm:$0xf]
  %v147 = vld [vmem:[%s0 + $0x1d8] sm:$0xf]
  %v148 = vld [vmem:[%s0 + $0x1dc] sm:$0xf]
  %v149 = vld [vmem:[%s0 + $0x1e0] sm:$0xf]
  %v150 = vld [vmem:[%s0 + $0x1e4] sm:$0xf]
  %v151 = vld [vmem:[%s0 + $0x1e8] sm:$0xf]
  %v152 = vld [vmem:[%s0 + $0x1ec] sm:$0xf]
  %v153 = vld [vmem:[%s0 + $0x1f0] sm:$0xf]
  %v154 = vld [vmem:[%s0 + $0x1f4] sm:$0xf]
  %v155 = vld [vmem:[%s0 + $0x1f8] sm:$0xf]
  %v156 = vld [vmem:[%s0 + $0x1fc] sm:$0xf]
  %v157 = vld [vmem:[%s1] sm:$0xf]
  %v158 = vld [vmem:[%s1 + $0x4] sm:$0xf]
  %v159 = vld [vmem:[%s1 + $0x8] sm:$0xf]
  %v160 = vld [vmem:[%s1 + $0xc] sm:$0xf]
  %v161 = vld [vmem:[%s1 + $0x10] sm:$0xf]
  %v162 = vld [vmem:[%s1 + $0x14] sm:$0xf]
  %v163 = vld [vmem:[%s1 + $0x18] sm:$0xf]
  %v164 = vld [vmem:[%s1 + $0x1c] sm:$0xf]
  %v165 = vld [vmem:[%s2] sm:$0x1]
  %v167 = vlaneseq
  %v168 = vshrl.u32 %v167, 7
  %v169 = vsub.s32 0, %v168
  %v170 = vrot.slane %v165, %v169
  %v300 = vunpack.c.l.b16 %v29
  %v301 = vunpack.c.l.b16 %v30
  %v302 = vunpack.c.l.b16 %v31
  %v303 = vunpack.c.l.b16 %v32
  %v304 = vunpack.c.l.b16 %v33
  %v305 = vunpack.c.l.b16 %v34
  %v306 = vunpack.c.l.b16 %v35
  %v307 = vunpack.c.l.b16 %v36
  %v308 = vunpack.c.l.b16 %v37
  %v309 = vunpack.c.l.b16 %v38
  %v310 = vunpack.c.l.b16 %v39
  %v311 = vunpack.c.l.b16 %v40
  %v312 = vunpack.c.l.b16 %v41
  %v313 = vunpack.c.l.b16 %v42
  %v314 = vunpack.c.l.b16 %v43
  %v315 = vunpack.c.l.b16 %v44
  %v316 = vunpack.c.l.b16 %v45
  %v317 = vunpack.c.l.b16 %v46
  %v318 = vunpack.c.l.b16 %v47
  %v319 = vunpack.c.l.b16 %v48
  %v320 = vunpack.c.l.b16 %v49
  %v321 = vunpack.c.l.b16 %v50
  %v322 = vunpack.c.l.b16 %v51
  %v323 = vunpack.c.l.b16 %v52
  %v324 = vunpack.c.l.b16 %v53
  %v325 = vunpack.c.l.b16 %v54
  %v326 = vunpack.c.l.b16 %v55
  %v327 = vunpack.c.l.b16 %v56
  %v328 = vunpack.c.l.b16 %v57
  %v329 = vunpack.c.l.b16 %v58
  %v330 = vunpack.c.l.b16 %v59
  %v331 = vunpack.c.l.b16 %v60
  %v332 = vunpack.c.l.b16 %v61
  %v333 = vunpack.c.l.b16 %v62
  %v334 = vunpack.c.l.b16 %v63
  %v335 = vunpack.c.l.b16 %v64
  %v336 = vunpack.c.l.b16 %v65
  %v337 = vunpack.c.l.b16 %v66
  %v338 = vunpack.c.l.b16 %v67
  %v339 = vunpack.c.l.b16 %v68
  %v340 = vunpack.c.l.b16 %v69
  %v341 = vunpack.c.l.b16 %v70
  %v342 = vunpack.c.l.b16 %v71
  %v343 = vunpack.c.l.b16 %v72
  %v344 = vunpack.c.l.b16 %v73
  %v345 = vunpack.c.l.b16 %v74
  %v346 = vunpack.c.l.b16 %v75
  %v347 = vunpack.c.l.b16 %v76
  %v348 = vunpack.c.l.b16 %v77
  %v349 = vunpack.c.l.b16 %v78
  %v350 = vunpack.c.l.b16 %v79
  %v351 = vunpack.c.l.b16 %v80
  %v352 = vunpack.c.l.b16 %v81
  %v353 = vunpack.c.l.b16 %v82
  %v354 = vunpack.c.l.b16 %v83
  %v355 = vunpack.c.l.b16 %v84
  %v356 = vunpack.c.l.b16 %v85
  %v357 = vunpack.c.l.b16 %v86
  %v358 = vunpack.c.l.b16 %v87
  %v359 = vunpack.c.l.b16 %v88
  %v360 = vunpack.c.l.b16 %v89
  %v361 = vunpack.c.l.b16 %v90
  %v362 = vunpack.c.l.b16 %v91
  %v363 = vunpack.c.l.b16 %v92
  %v364 = vunpack.c.l.b16 %v93
  %v365 = vunpack.c.l.b16 %v94
  %v366 = vunpack.c.l.b16 %v95
  %v367 = vunpack.c.l.b16 %v96
  %v368 = vunpack.c.l.b16 %v97
  %v369 = vunpack.c.l.b16 %v98
  %v370 = vunpack.c.l.b16 %v99
  %v371 = vunpack.c.l.b16 %v100
  %v372 = vunpack.c.l.b16 %v101
  %v373 = vunpack.c.l.b16 %v102
  %v374 = vunpack.c.l.b16 %v103
  %v375 = vunpack.c.l.b16 %v104
  %v376 = vunpack.c.l.b16 %v105
  %v377 = vunpack.c.l.b16 %v106
  %v378 = vunpack.c.l.b16 %v107
  %v379 = vunpack.c.l.b16 %v108
  %v380 = vunpack.c.l.b16 %v109
  %v381 = vunpack.c.l.b16 %v110
  %v382 = vunpack.c.l.b16 %v111
  %v383 = vunpack.c.l.b16 %v112
  %v384 = vunpack.c.l.b16 %v113
  %v385 = vunpack.c.l.b16 %v114
  %v386 = vunpack.c.l.b16 %v115
  %v387 = vunpack.c.l.b16 %v116
  %v388 = vunpack.c.l.b16 %v117
  %v389 = vunpack.c.l.b16 %v118
  %v390 = vunpack.c.l.b16 %v119
  %v391 = vunpack.c.l.b16 %v120
  %v392 = vunpack.c.l.b16 %v121
  %v393 = vunpack.c.l.b16 %v122
  %v394 = vunpack.c.l.b16 %v123
  %v395 = vunpack.c.l.b16 %v124
  %v396 = vunpack.c.l.b16 %v125
  %v397 = vunpack.c.l.b16 %v126
  %v398 = vunpack.c.l.b16 %v127
  %v399 = vunpack.c.l.b16 %v128
  %v400 = vunpack.c.l.b16 %v129
  %v401 = vunpack.c.l.b16 %v130
  %v402 = vunpack.c.l.b16 %v131
  %v403 = vunpack.c.l.b16 %v132
  %v404 = vunpack.c.l.b16 %v133
  %v405 = vunpack.c.l.b16 %v134
  %v406 = vunpack.c.l.b16 %v135
  %v407 = vunpack.c.l.b16 %v136
  %v408 = vunpack.c.l.b16 %v137
  %v409 = vunpack.c.l.b16 %v138
  %v410 = vunpack.c.l.b16 %v139
  %v411 = vunpack.c.l.b16 %v140
  %v412 = vunpack.c.l.b16 %v141
  %v413 = vunpack.c.l.b16 %v142
  %v414 = vunpack.c.l.b16 %v143
  %v415 = vunpack.c.l.b16 %v144
  %v416 = vunpack.c.l.b16 %v145
  %v417 = vunpack.c.l.b16 %v146
  %v418 = vunpack.c.l.b16 %v147
  %v419 = vunpack.c.l.b16 %v148
  %v420 = vunpack.c.l.b16 %v149
  %v421 = vunpack.c.l.b16 %v150
  %v422 = vunpack.c.l.b16 %v151
  %v423 = vunpack.c.l.b16 %v152
  %v424 = vunpack.c.l.b16 %v153
  %v425 = vunpack.c.l.b16 %v154
  %v426 = vunpack.c.l.b16 %v155
  %v427 = vunpack.c.l.b16 %v156
  %v428 = vpack.c.b16 %v301, %v300
  %v429 = vpack.c.b16 %v303, %v302
  %v430 = vpack.c.b16 %v305, %v304
  %v431 = vpack.c.b16 %v307, %v306
  %v432 = vpack.c.b16 %v309, %v308
  %v433 = vpack.c.b16 %v311, %v310
  %v434 = vpack.c.b16 %v313, %v312
  %v435 = vpack.c.b16 %v315, %v314
  %v436 = vpack.c.b16 %v317, %v316
  %v437 = vpack.c.b16 %v319, %v318
  %v438 = vpack.c.b16 %v321, %v320
  %v439 = vpack.c.b16 %v323, %v322
  %v440 = vpack.c.b16 %v325, %v324
  %v441 = vpack.c.b16 %v327, %v326
  %v442 = vpack.c.b16 %v329, %v328
  %v443 = vpack.c.b16 %v331, %v330
  %v444 = vpack.c.b16 %v333, %v332
  %v445 = vpack.c.b16 %v335, %v334
  %v446 = vpack.c.b16 %v337, %v336
  %v447 = vpack.c.b16 %v339, %v338
  %v448 = vpack.c.b16 %v341, %v340
  %v449 = vpack.c.b16 %v343, %v342
  %v450 = vpack.c.b16 %v345, %v344
  %v451 = vpack.c.b16 %v347, %v346
  %v452 = vpack.c.b16 %v349, %v348
  %v453 = vpack.c.b16 %v351, %v350
  %v454 = vpack.c.b16 %v353, %v352
  %v455 = vpack.c.b16 %v355, %v354
  %v456 = vpack.c.b16 %v357, %v356
  %v457 = vpack.c.b16 %v359, %v358
  %v458 = vpack.c.b16 %v361, %v360
  %v459 = vpack.c.b16 %v363, %v362
  %v460 = vpack.c.b16 %v365, %v364
  %v461 = vpack.c.b16 %v367, %v366
  %v462 = vpack.c.b16 %v369, %v368
  %v463 = vpack.c.b16 %v371, %v370
  %v464 = vpack.c.b16 %v373, %v372
  %v465 = vpack.c.b16 %v375, %v374
  %v466 = vpack.c.b16 %v377, %v376
  %v467 = vpack.c.b16 %v379, %v378
  %v468 = vpack.c.b16 %v381, %v380
  %v469 = vpack.c.b16 %v383, %v382
  %v470 = vpack.c.b16 %v385, %v384
  %v471 = vpack.c.b16 %v387, %v386
  %v472 = vpack.c.b16 %v389, %v388
  %v473 = vpack.c.b16 %v391, %v390
  %v474 = vpack.c.b16 %v393, %v392
  %v475 = vpack.c.b16 %v395, %v394
  %v476 = vpack.c.b16 %v397, %v396
  %v477 = vpack.c.b16 %v399, %v398
  %v478 = vpack.c.b16 %v401, %v400
  %v479 = vpack.c.b16 %v403, %v402
  %v480 = vpack.c.b16 %v405, %v404
  %v481 = vpack.c.b16 %v407, %v406
  %v482 = vpack.c.b16 %v409, %v408
  %v483 = vpack.c.b16 %v411, %v410
  %v484 = vpack.c.b16 %v413, %v412
  %v485 = vpack.c.b16 %v415, %v414
  %v486 = vpack.c.b16 %v417, %v416
  %v487 = vpack.c.b16 %v419, %v418
  %v488 = vpack.c.b16 %v421, %v420
  %v489 = vpack.c.b16 %v423, %v422
  %v490 = vpack.c.b16 %v425, %v424
  %v491 = vpack.c.b16 %v427, %v426
  %v500 = vunpack.c.l.b16 %v157
  %v501 = vunpack.c.l.b16 %v158
  %v502 = vunpack.c.l.b16 %v159
  %v503 = vunpack.c.l.b16 %v160
  %v504 = vunpack.c.l.b16 %v161
  %v505 = vunpack.c.l.b16 %v162
  %v506 = vunpack.c.l.b16 %v163
  %v507 = vunpack.c.l.b16 %v164
  %v508 = vpack.c.b16 %v501, %v500
  %v509 = vpack.c.b16 %v503, %v502
  %v510 = vpack.c.b16 %v505, %v504
  %v511 = vpack.c.b16 %v507, %v506
  %vm516 = vcmask 523264
  %v518 = vsel %vm516, %v428, 0
  %v521 = vsel %vm516, %v429, 0
  %v524 = vsel %vm516, %v430, 0
  %v527 = vsel %vm516, %v431, 0
  %v530 = vsel %vm516, %v432, 0
  %v533 = vsel %vm516, %v433, 0
  %v536 = vsel %vm516, %v434, 0
  %v539 = vsel %vm516, %v435, 0
  %v542 = vsel %vm516, %v436, 0
  %v545 = vsel %vm516, %v437, 0
  %v548 = vsel %vm516, %v438, 0
  %v551 = vsel %vm516, %v439, 0
  %v554 = vsel %vm516, %v440, 0
  %v557 = vsel %vm516, %v441, 0
  %v560 = vsel %vm516, %v442, 0
  %v563 = vsel %vm516, %v443, 0
  %v566 = vsel %vm516, %v444, 0
  %v569 = vsel %vm516, %v445, 0
  %v572 = vsel %vm516, %v446, 0
  %v575 = vsel %vm516, %v447, 0
  %v578 = vsel %vm516, %v448, 0
  %v581 = vsel %vm516, %v449, 0
  %v584 = vsel %vm516, %v450, 0
  %v587 = vsel %vm516, %v451, 0
  %v590 = vsel %vm516, %v452, 0
  %v593 = vsel %vm516, %v453, 0
  %v596 = vsel %vm516, %v454, 0
  %v599 = vsel %vm516, %v455, 0
  %v602 = vsel %vm516, %v456, 0
  %v605 = vsel %vm516, %v457, 0
  %v608 = vsel %vm516, %v458, 0
  %v611 = vsel %vm516, %v459, 0
  %v614 = vsel %vm516, %v460, 0
  %v617 = vsel %vm516, %v461, 0
  %v620 = vsel %vm516, %v462, 0
  %v623 = vsel %vm516, %v463, 0
  %v626 = vsel %vm516, %v464, 0
  %v629 = vsel %vm516, %v465, 0
  %v632 = vsel %vm516, %v466, 0
  %v635 = vsel %vm516, %v467, 0
  %v638 = vsel %vm516, %v468, 0
  %v641 = vsel %vm516, %v469, 0
  %v644 = vsel %vm516, %v470, 0
  %v647 = vsel %vm516, %v471, 0
  %v650 = vsel %vm516, %v472, 0
  %v653 = vsel %vm516, %v473, 0
  %v656 = vsel %vm516, %v474, 0
  %v659 = vsel %vm516, %v475, 0
  %v662 = vsel %vm516, %v476, 0
  %v665 = vsel %vm516, %v477, 0
  %v668 = vsel %vm516, %v478, 0
  %v671 = vsel %vm516, %v479, 0
  %v674 = vsel %vm516, %v480, 0
  %v677 = vsel %vm516, %v481, 0
  %v680 = vsel %vm516, %v482, 0
  %v683 = vsel %vm516, %v483, 0
  %v686 = vsel %vm516, %v484, 0
  %v689 = vsel %vm516, %v485, 0
  %v692 = vsel %vm516, %v486, 0
  %v695 = vsel %vm516, %v487, 0
  %v698 = vsel %vm516, %v488, 0
  %v701 = vsel %vm516, %v489, 0
  %v704 = vsel %vm516, %v490, 0
  %v707 = vsel %vm516, %v491, 0
  %709 = vmatprep.subr.bf16.mxu0 0
  %710 = vmatpush1.bf16.msra.mxu0 %v508
  %711 = vmatprep.subr.bf16.mxu0 0
  %712 = vmatpush1.bf16.msra.mxu0 %v509
  %713 = vmatprep.subr.bf16.mxu0 0
  %714 = vmatpush1.bf16.msra.mxu0 %v510
  %715 = vmatprep.subr.bf16.mxu0 0
  %716 = vmatpush1.bf16.msra.mxu0 %v511
  %717 = vmatprep.subr.bf16.mxu0 0
  %718 = vmatpush1.bf16.msra.mxu0 0
  %719 = vmatprep.subr.bf16.mxu0 0
  %720 = vmatpush1.bf16.msra.mxu0 0
  %721 = vmatprep.subr.bf16.mxu0 0
  %722 = vmatpush1.bf16.msra.mxu0 0
  %723 = vmatprep.subr.bf16.mxu0 0
  %724 = vmatpush1.bf16.msra.mxu0 0
  %725 = vmatprep.subr.bf16.mxu0 0
  %726 = vmatpush1.bf16.msra.mxu0 0
  %727 = vmatprep.subr.bf16.mxu0 0
  %728 = vmatpush1.bf16.msra.mxu0 0
  %729 = vmatprep.subr.bf16.mxu0 0
  %730 = vmatpush1.bf16.msra.mxu0 0
  %731 = vmatprep.subr.bf16.mxu0 0
  %732 = vmatpush1.bf16.msra.mxu0 0
  %733 = vmatprep.subr.bf16.mxu0 0
  %734 = vmatpush1.bf16.msra.mxu0 0
  %735 = vmatprep.subr.bf16.mxu0 0
  %736 = vmatpush1.bf16.msra.mxu0 0
  %737 = vmatprep.subr.bf16.mxu0 0
  %738 = vmatpush1.bf16.msra.mxu0 0
  %739 = vmatprep.subr.bf16.mxu0 0
  %740 = vmatpush1.bf16.msra.mxu0 0
  %741 = vmatprep.mubr.bf16.mxu0 0
  %742 = vmatmul.mubr.bf16.gmra.mrb[0].mxu0 %v518
  %v743 = vpop.f32.mrb[0].mxu0
  %v744 = vadd.f32 %v170, %v743
  %v745 = vpop.f32.mrb[0].mxu0
  %v746 = vpop.f32.mrb[0].mxu0
  %v747 = vadd.f32 %v170, %v746
  %v748 = vpop.f32.mrb[0].mxu0
  %749 = vmatprep.mubr.bf16.mxu0 0
  %750 = vmatmul.mubr.bf16.gmra.mrb[0].mxu0 %v521
  %v751 = vpop.f32.mrb[0].mxu0
  %v752 = vadd.f32 %v170, %v751
  %v753 = vpop.f32.mrb[0].mxu0
  %v754 = vpop.f32.mrb[0].mxu0
  %v755 = vadd.f32 %v170, %v754
  %v756 = vpop.f32.mrb[0].mxu0
  %757 = vmatprep.mubr.bf16.mxu0 0
  %758 = vmatmul.mubr.bf16.gmra.mrb[0].mxu0 %v524
  %v759 = vpop.f32.mrb[0].mxu0
  %v760 = vadd.f32 %v170, %v759
  %v761 = vpop.f32.mrb[0].mxu0
  %v762 = vpop.f32.mrb[0].mxu0
  %v763 = vadd.f32 %v170, %v762
  %v764 = vpop.f32.mrb[0].mxu0
  %765 = vmatprep.mubr.bf16.mxu0 0
  %766 = vmatmul.mubr.bf16.gmra.mrb[0].mxu0 %v527
  %v767 = vpop.f32.mrb[0].mxu0
  %v768 = vadd.f32 %v170, %v767
  %v769 = vpop.f32.mrb[0].mxu0
  %v770 = vpop.f32.mrb[0].mxu0
  %v771 = vadd.f32 %v170, %v770
  %v772 = vpop.f32.mrb[0].mxu0
  %773 = vmatprep.mubr.bf16.mxu0 0
  %774 = vmatmul.mubr.bf16.gmra.mrb[0].mxu0 %v530
  %v775 = vpop.f32.mrb[0].mxu0
  %v776 = vadd.f32 %v170, %v775
  %v777 = vpop.f32.mrb[0].mxu0
  %v778 = vpop.f32.mrb[0].mxu0
  %v779 = vadd.f32 %v170, %v778
  %v780 = vpop.f32.mrb[0].mxu0
  %781 = vmatprep.mubr.bf16.mxu0 0
  %782 = vmatmul.mubr.bf16.gmra.mrb[0].mxu0 %v533
  %v783 = vpop.f32.mrb[0].mxu0
  %v784 = vadd.f32 %v170, %v783
  %v785 = vpop.f32.mrb[0].mxu0
  %v786 = vpop.f32.mrb[0].mxu0
  %v787 = vadd.f32 %v170, %v786
  %v788 = vpop.f32.mrb[0].mxu0
  %789 = vmatprep.mubr.bf16.mxu0 0
  %790 = vmatmul.mubr.bf16.gmra.mrb[0].mxu0 %v536
  %v791 = vpop.f32.mrb[0].mxu0
  %v792 = vadd.f32 %v170, %v791
  %v793 = vpop.f32.mrb[0].mxu0
  %v794 = vpop.f32.mrb[0].mxu0
  %v795 = vadd.f32 %v170, %v794
  %v796 = vpop.f32.mrb[0].mxu0
  %797 = vmatprep.mubr.bf16.mxu0 0
  %798 = vmatmul.mubr.bf16.gmra.mrb[0].mxu0 %v539
  %v799 = vpop.f32.mrb[0].mxu0
  %v800 = vadd.f32 %v170, %v799
  %v801 = vpop.f32.mrb[0].mxu0
  %v802 = vpop.f32.mrb[0].mxu0
  %v803 = vadd.f32 %v170, %v802
  %v804 = vpop.f32.mrb[0].mxu0
  %805 = vmatprep.mubr.bf16.mxu0 0
  %806 = vmatmul.mubr.bf16.gmra.mrb[0].mxu0 %v542
  %v807 = vpop.f32.mrb[0].mxu0
  %v808 = vadd.f32 %v170, %v807
  %v809 = vpop.f32.mrb[0].mxu0
  %v810 = vpop.f32.mrb[0].mxu0
  %v811 = vadd.f32 %v170, %v810
  %v812 = vpop.f32.mrb[0].mxu0
  %813 = vmatprep.mubr.bf16.mxu0 0
  %814 = vmatmul.mubr.bf16.gmra.mrb[0].mxu0 %v545
  %v815 = vpop.f32.mrb[0].mxu0
  %v816 = vadd.f32 %v170, %v815
  %v817 = vpop.f32.mrb[0].mxu0
  %v818 = vpop.f32.mrb[0].mxu0
  %v819 = vadd.f32 %v170, %v818
  %v820 = vpop.f32.mrb[0].mxu0
  %821 = vmatprep.mubr.bf16.mxu0 0
  %822 = vmatmul.mubr.bf16.gmra.mrb[0].mxu0 %v548
  %v823 = vpop.f32.mrb[0].mxu0
  %v824 = vadd.f32 %v170, %v823
  %v825 = vpop.f32.mrb[0].mxu0
  %v826 = vpop.f32.mrb[0].mxu0
  %v827 = vadd.f32 %v170, %v826
  %v828 = vpop.f32.mrb[0].mxu0
  %829 = vmatprep.mubr.bf16.mxu0 0
  %830 = vmatmul.mubr.bf16.gmra.mrb[0].mxu0 %v551
  %v831 = vpop.f32.mrb[0].mxu0
  %v832 = vadd.f32 %v170, %v831
  %v833 = vpop.f32.mrb[0].mxu0
  %v834 = vpop.f32.mrb[0].mxu0
  %v835 = vadd.f32 %v170, %v834
  %v836 = vpop.f32.mrb[0].mxu0
  %837 = vmatprep.mubr.bf16.mxu0 0
  %838 = vmatmul.mubr.bf16.gmra.mrb[0].mxu0 %v554
  %v839 = vpop.f32.mrb[0].mxu0
  %v840 = vadd.f32 %v170, %v839
  %v841 = vpop.f32.mrb[0].mxu0
  %v842 = vpop.f32.mrb[0].mxu0
  %v843 = vadd.f32 %v170, %v842
  %v844 = vpop.f32.mrb[0].mxu0
  %845 = vmatprep.mubr.bf16.mxu0 0
  %846 = vmatmul.mubr.bf16.gmra.mrb[0].mxu0 %v557
  %v847 = vpop.f32.mrb[0].mxu0
  %v848 = vadd.f32 %v170, %v847
  %v849 = vpop.f32.mrb[0].mxu0
  %v850 = vpop.f32.mrb[0].mxu0
  %v851 = vadd.f32 %v170, %v850
  %v852 = vpop.f32.mrb[0].mxu0
  %853 = vmatprep.mubr.bf16.mxu0 0
  %854 = vmatmul.mubr.bf16.gmra.mrb[0].mxu0 %v560
  %v855 = vpop.f32.mrb[0].mxu0
  %v856 = vadd.f32 %v170, %v855
  %v857 = vpop.f32.mrb[0].mxu0
  %v858 = vpop.f32.mrb[0].mxu0
  %v859 = vadd.f32 %v170, %v858
  %v860 = vpop.f32.mrb[0].mxu0
  %861 = vmatprep.mubr.bf16.mxu0 0
  %862 = vmatmul.mubr.bf16.gmra.mrb[0].mxu0 %v563
  %v863 = vpop.f32.mrb[0].mxu0
  %v864 = vadd.f32 %v170, %v863
  %v865 = vpop.f32.mrb[0].mxu0
  %v866 = vpop.f32.mrb[0].mxu0
  %v867 = vadd.f32 %v170, %v866
  %v868 = vpop.f32.mrb[0].mxu0
  %869 = vmatprep.mubr.bf16.mxu0 0
  %870 = vmatmul.mubr.bf16.gmra.mrb[0].mxu0 %v566
  %v871 = vpop.f32.mrb[0].mxu0
  %v872 = vadd.f32 %v170, %v871
  %v873 = vpop.f32.mrb[0].mxu0
  %v874 = vpop.f32.mrb[0].mxu0
  %v875 = vadd.f32 %v170, %v874
  %v876 = vpop.f32.mrb[0].mxu0
  %877 = vmatprep.mubr.bf16.mxu0 0
  %878 = vmatmul.mubr.bf16.gmra.mrb[0].mxu0 %v569
  %v879 = vpop.f32.mrb[0].mxu0
  %v880 = vadd.f32 %v170, %v879
  %v881 = vpop.f32.mrb[0].mxu0
  %v882 = vpop.f32.mrb[0].mxu0
  %v883 = vadd.f32 %v170, %v882
  %v884 = vpop.f32.mrb[0].mxu0
  %885 = vmatprep.mubr.bf16.mxu0 0
  %886 = vmatmul.mubr.bf16.gmra.mrb[0].mxu0 %v572
  %v887 = vpop.f32.mrb[0].mxu0
  %v888 = vadd.f32 %v170, %v887
  %v889 = vpop.f32.mrb[0].mxu0
  %v890 = vpop.f32.mrb[0].mxu0
  %v891 = vadd.f32 %v170, %v890
  %v892 = vpop.f32.mrb[0].mxu0
  %893 = vmatprep.mubr.bf16.mxu0 0
  %894 = vmatmul.mubr.bf16.gmra.mrb[0].mxu0 %v575
  %v895 = vpop.f32.mrb[0].mxu0
  %v896 = vadd.f32 %v170, %v895
  %v897 = vpop.f32.mrb[0].mxu0
  %v898 = vpop.f32.mrb[0].mxu0
  %v899 = vadd.f32 %v170, %v898
  %v900 = vpop.f32.mrb[0].mxu0
  %901 = vmatprep.mubr.bf16.mxu0 0
  %902 = vmatmul.mubr.bf16.gmra.mrb[0].mxu0 %v578
  %v903 = vpop.f32.mrb[0].mxu0
  %v904 = vadd.f32 %v170, %v903
  %v905 = vpop.f32.mrb[0].mxu0
  %v906 = vpop.f32.mrb[0].mxu0
  %v907 = vadd.f32 %v170, %v906
  %v908 = vpop.f32.mrb[0].mxu0
  %909 = vmatprep.mubr.bf16.mxu0 0
  %910 = vmatmul.mubr.bf16.gmra.mrb[0].mxu0 %v581
  %v911 = vpop.f32.mrb[0].mxu0
  %v912 = vadd.f32 %v170, %v911
  %v913 = vpop.f32.mrb[0].mxu0
  %v914 = vpop.f32.mrb[0].mxu0
  %v915 = vadd.f32 %v170, %v914
  %v916 = vpop.f32.mrb[0].mxu0
  %917 = vmatprep.mubr.bf16.mxu0 0
  %918 = vmatmul.mubr.bf16.gmra.mrb[0].mxu0 %v584
  %v919 = vpop.f32.mrb[0].mxu0
  %v920 = vadd.f32 %v170, %v919
  %v921 = vpop.f32.mrb[0].mxu0
  %v922 = vpop.f32.mrb[0].mxu0
  %v923 = vadd.f32 %v170, %v922
  %v924 = vpop.f32.mrb[0].mxu0
  %925 = vmatprep.mubr.bf16.mxu0 0
  %926 = vmatmul.mubr.bf16.gmra.mrb[0].mxu0 %v587
  %v927 = vpop.f32.mrb[0].mxu0
  %v928 = vadd.f32 %v170, %v927
  %v929 = vpop.f32.mrb[0].mxu0
  %v930 = vpop.f32.mrb[0].mxu0
  %v931 = vadd.f32 %v170, %v930
  %v932 = vpop.f32.mrb[0].mxu0
  %933 = vmatprep.mubr.bf16.mxu0 0
  %934 = vmatmul.mubr.bf16.gmra.mrb[0].mxu0 %v590
  %v935 = vpop.f32.mrb[0].mxu0
  %v936 = vadd.f32 %v170, %v935
  %v937 = vpop.f32.mrb[0].mxu0
  %v938 = vpop.f32.mrb[0].mxu0
  %v939 = vadd.f32 %v170, %v938
  %v940 = vpop.f32.mrb[0].mxu0
  %941 = vmatprep.mubr.bf16.mxu0 0
  %942 = vmatmul.mubr.bf16.gmra.mrb[0].mxu0 %v593
  %v943 = vpop.f32.mrb[0].mxu0
  %v944 = vadd.f32 %v170, %v943
  %v945 = vpop.f32.mrb[0].mxu0
  %v946 = vpop.f32.mrb[0].mxu0
  %v947 = vadd.f32 %v170, %v946
  %v948 = vpop.f32.mrb[0].mxu0
  %949 = vmatprep.mubr.bf16.mxu0 0
  %950 = vmatmul.mubr.bf16.gmra.mrb[0].mxu0 %v596
  %v951 = vpop.f32.mrb[0].mxu0
  %v952 = vadd.f32 %v170, %v951
  %v953 = vpop.f32.mrb[0].mxu0
  %v954 = vpop.f32.mrb[0].mxu0
  %v955 = vadd.f32 %v170, %v954
  %v956 = vpop.f32.mrb[0].mxu0
  %957 = vmatprep.mubr.bf16.mxu0 0
  %958 = vmatmul.mubr.bf16.gmra.mrb[0].mxu0 %v599
  %v959 = vpop.f32.mrb[0].mxu0
  %v960 = vadd.f32 %v170, %v959
  %v961 = vpop.f32.mrb[0].mxu0
  %v962 = vpop.f32.mrb[0].mxu0
  %v963 = vadd.f32 %v170, %v962
  %v964 = vpop.f32.mrb[0].mxu0
  %965 = vmatprep.mubr.bf16.mxu0 0
  %966 = vmatmul.mubr.bf16.gmra.mrb[0].mxu0 %v602
  %v967 = vpop.f32.mrb[0].mxu0
  %v968 = vadd.f32 %v170, %v967
  %v969 = vpop.f32.mrb[0].mxu0
  %v970 = vpop.f32.mrb[0].mxu0
  %v971 = vadd.f32 %v170, %v970
  %v972 = vpop.f32.mrb[0].mxu0
  %973 = vmatprep.mubr.bf16.mxu0 0
  %974 = vmatmul.mubr.bf16.gmra.mrb[0].mxu0 %v605
  %v975 = vpop.f32.mrb[0].mxu0
  %v976 = vadd.f32 %v170, %v975
  %v977 = vpop.f32.mrb[0].mxu0
  %v978 = vpop.f32.mrb[0].mxu0
  %v979 = vadd.f32 %v170, %v978
  %v980 = vpop.f32.mrb[0].mxu0
  %981 = vmatprep.mubr.bf16.mxu0 0
  %982 = vmatmul.mubr.bf16.gmra.mrb[0].mxu0 %v608
  %v983 = vpop.f32.mrb[0].mxu0
  %v984 = vadd.f32 %v170, %v983
  %v985 = vpop.f32.mrb[0].mxu0
  %v986 = vpop.f32.mrb[0].mxu0
  %v987 = vadd.f32 %v170, %v986
  %v988 = vpop.f32.mrb[0].mxu0
  %989 = vmatprep.mubr.bf16.mxu0 0
  %990 = vmatmul.mubr.bf16.gmra.mrb[0].mxu0 %v611
  %v991 = vpop.f32.mrb[0].mxu0
  %v992 = vadd.f32 %v170, %v991
  %v993 = vpop.f32.mrb[0].mxu0
  %v994 = vpop.f32.mrb[0].mxu0
  %v995 = vadd.f32 %v170, %v994
  %v996 = vpop.f32.mrb[0].mxu0
  %997 = vmatprep.mubr.bf16.mxu0 0
  %998 = vmatmul.mubr.bf16.gmra.mrb[0].mxu0 %v614
  %v999 = vpop.f32.mrb[0].mxu0
  %v1000 = vadd.f32 %v170, %v999
  %v1001 = vpop.f32.mrb[0].mxu0
  %v1002 = vpop.f32.mrb[0].mxu0
  %v1003 = vadd.f32 %v170, %v1002
  %v1004 = vpop.f32.mrb[0].mxu0
  %1005 = vmatprep.mubr.bf16.mxu0 0
  %1006 = vmatmul.mubr.bf16.gmra.mrb[0].mxu0 %v617
  %v1007 = vpop.f32.mrb[0].mxu0
  %v1008 = vadd.f32 %v170, %v1007
  %v1009 = vpop.f32.mrb[0].mxu0
  %v1010 = vpop.f32.mrb[0].mxu0
  %v1011 = vadd.f32 %v170, %v1010
  %v1012 = vpop.f32.mrb[0].mxu0
  %1013 = vmatprep.mubr.bf16.mxu0 0
  %1014 = vmatmul.mubr.bf16.gmra.mrb[0].mxu0 %v620
  %v1015 = vpop.f32.mrb[0].mxu0
  %v1016 = vadd.f32 %v170, %v1015
  %v1017 = vpop.f32.mrb[0].mxu0
  %v1018 = vpop.f32.mrb[0].mxu0
  %v1019 = vadd.f32 %v170, %v1018
  %v1020 = vpop.f32.mrb[0].mxu0
  %1021 = vmatprep.mubr.bf16.mxu0 0
  %1022 = vmatmul.mubr.bf16.gmra.mrb[0].mxu0 %v623
  %v1023 = vpop.f32.mrb[0].mxu0
  %v1024 = vadd.f32 %v170, %v1023
  %v1025 = vpop.f32.mrb[0].mxu0
  %v1026 = vpop.f32.mrb[0].mxu0
  %v1027 = vadd.f32 %v170, %v1026
  %v1028 = vpop.f32.mrb[0].mxu0
  %1029 = vmatprep.mubr.bf16.mxu0 0
  %1030 = vmatmul.mubr.bf16.gmra.mrb[0].mxu0 %v626
  %v1031 = vpop.f32.mrb[0].mxu0
  %v1032 = vadd.f32 %v170, %v1031
  %v1033 = vpop.f32.mrb[0].mxu0
  %v1034 = vpop.f32.mrb[0].mxu0
  %v1035 = vadd.f32 %v170, %v1034
  %v1036 = vpop.f32.mrb[0].mxu0
  %1037 = vmatprep.mubr.bf16.mxu0 0
  %1038 = vmatmul.mubr.bf16.gmra.mrb[0].mxu0 %v629
  %v1039 = vpop.f32.mrb[0].mxu0
  %v1040 = vadd.f32 %v170, %v1039
  %v1041 = vpop.f32.mrb[0].mxu0
  %v1042 = vpop.f32.mrb[0].mxu0
  %v1043 = vadd.f32 %v170, %v1042
  %v1044 = vpop.f32.mrb[0].mxu0
  %1045 = vmatprep.mubr.bf16.mxu0 0
  %1046 = vmatmul.mubr.bf16.gmra.mrb[0].mxu0 %v632
  %v1047 = vpop.f32.mrb[0].mxu0
  %v1048 = vadd.f32 %v170, %v1047
  %v1049 = vpop.f32.mrb[0].mxu0
  %v1050 = vpop.f32.mrb[0].mxu0
  %v1051 = vadd.f32 %v170, %v1050
  %v1052 = vpop.f32.mrb[0].mxu0
  %1053 = vmatprep.mubr.bf16.mxu0 0
  %1054 = vmatmul.mubr.bf16.gmra.mrb[0].mxu0 %v635
  %v1055 = vpop.f32.mrb[0].mxu0
  %v1056 = vadd.f32 %v170, %v1055
  %v1057 = vpop.f32.mrb[0].mxu0
  %v1058 = vpop.f32.mrb[0].mxu0
  %v1059 = vadd.f32 %v170, %v1058
  %v1060 = vpop.f32.mrb[0].mxu0
  %1061 = vmatprep.mubr.bf16.mxu0 0
  %1062 = vmatmul.mubr.bf16.gmra.mrb[0].mxu0 %v638
  %v1063 = vpop.f32.mrb[0].mxu0
  %v1064 = vadd.f32 %v170, %v1063
  %v1065 = vpop.f32.mrb[0].mxu0
  %v1066 = vpop.f32.mrb[0].mxu0
  %v1067 = vadd.f32 %v170, %v1066
  %v1068 = vpop.f32.mrb[0].mxu0
  %1069 = vmatprep.mubr.bf16.mxu0 0
  %1070 = vmatmul.mubr.bf16.gmra.mrb[0].mxu0 %v641
  %v1071 = vpop.f32.mrb[0].mxu0
  %v1072 = vadd.f32 %v170, %v1071
  %v1073 = vpop.f32.mrb[0].mxu0
  %v1074 = vpop.f32.mrb[0].mxu0
  %v1075 = vadd.f32 %v170, %v1074
  %v1076 = vpop.f32.mrb[0].mxu0
  %1077 = vmatprep.mubr.bf16.mxu0 0
  %1078 = vmatmul.mubr.bf16.gmra.mrb[0].mxu0 %v644
  %v1079 = vpop.f32.mrb[0].mxu0
  %v1080 = vadd.f32 %v170, %v1079
  %v1081 = vpop.f32.mrb[0].mxu0
  %v1082 = vpop.f32.mrb[0].mxu0
  %v1083 = vadd.f32 %v170, %v1082
  %v1084 = vpop.f32.mrb[0].mxu0
  %1085 = vmatprep.mubr.bf16.mxu0 0
  %1086 = vmatmul.mubr.bf16.gmra.mrb[0].mxu0 %v647
  %v1087 = vpop.f32.mrb[0].mxu0
  %v1088 = vadd.f32 %v170, %v1087
  %v1089 = vpop.f32.mrb[0].mxu0
  %v1090 = vpop.f32.mrb[0].mxu0
  %v1091 = vadd.f32 %v170, %v1090
  %v1092 = vpop.f32.mrb[0].mxu0
  %1093 = vmatprep.mubr.bf16.mxu0 0
  %1094 = vmatmul.mubr.bf16.gmra.mrb[0].mxu0 %v650
  %v1095 = vpop.f32.mrb[0].mxu0
  %v1096 = vadd.f32 %v170, %v1095
  %v1097 = vpop.f32.mrb[0].mxu0
  %v1098 = vpop.f32.mrb[0].mxu0
  %v1099 = vadd.f32 %v170, %v1098
  %v1100 = vpop.f32.mrb[0].mxu0
  %1101 = vmatprep.mubr.bf16.mxu0 0
  %1102 = vmatmul.mubr.bf16.gmra.mrb[0].mxu0 %v653
  %v1103 = vpop.f32.mrb[0].mxu0
  %v1104 = vadd.f32 %v170, %v1103
  %v1105 = vpop.f32.mrb[0].mxu0
  %v1106 = vpop.f32.mrb[0].mxu0
  %v1107 = vadd.f32 %v170, %v1106
  %v1108 = vpop.f32.mrb[0].mxu0
  %1109 = vmatprep.mubr.bf16.mxu0 0
  %1110 = vmatmul.mubr.bf16.gmra.mrb[0].mxu0 %v656
  %v1111 = vpop.f32.mrb[0].mxu0
  %v1112 = vadd.f32 %v170, %v1111
  %v1113 = vpop.f32.mrb[0].mxu0
  %v1114 = vpop.f32.mrb[0].mxu0
  %v1115 = vadd.f32 %v170, %v1114
  %v1116 = vpop.f32.mrb[0].mxu0
  %1117 = vmatprep.mubr.bf16.mxu0 0
  %1118 = vmatmul.mubr.bf16.gmra.mrb[0].mxu0 %v659
  %v1119 = vpop.f32.mrb[0].mxu0
  %v1120 = vadd.f32 %v170, %v1119
  %v1121 = vpop.f32.mrb[0].mxu0
  %v1122 = vpop.f32.mrb[0].mxu0
  %v1123 = vadd.f32 %v170, %v1122
  %v1124 = vpop.f32.mrb[0].mxu0
  %1125 = vmatprep.mubr.bf16.mxu0 0
  %1126 = vmatmul.mubr.bf16.gmra.mrb[0].mxu0 %v662
  %v1127 = vpop.f32.mrb[0].mxu0
  %v1128 = vadd.f32 %v170, %v1127
  %v1129 = vpop.f32.mrb[0].mxu0
  %v1130 = vpop.f32.mrb[0].mxu0
  %v1131 = vadd.f32 %v170, %v1130
  %v1132 = vpop.f32.mrb[0].mxu0
  %1133 = vmatprep.mubr.bf16.mxu0 0
  %1134 = vmatmul.mubr.bf16.gmra.mrb[0].mxu0 %v665
  %v1135 = vpop.f32.mrb[0].mxu0
  %v1136 = vadd.f32 %v170, %v1135
  %v1137 = vpop.f32.mrb[0].mxu0
  %v1138 = vpop.f32.mrb[0].mxu0
  %v1139 = vadd.f32 %v170, %v1138
  %v1140 = vpop.f32.mrb[0].mxu0
  %1141 = vmatprep.mubr.bf16.mxu0 0
  %1142 = vmatmul.mubr.bf16.gmra.mrb[0].mxu0 %v668
  %v1143 = vpop.f32.mrb[0].mxu0
  %v1144 = vadd.f32 %v170, %v1143
  %v1145 = vpop.f32.mrb[0].mxu0
  %v1146 = vpop.f32.mrb[0].mxu0
  %v1147 = vadd.f32 %v170, %v1146
  %v1148 = vpop.f32.mrb[0].mxu0
  %1149 = vmatprep.mubr.bf16.mxu0 0
  %1150 = vmatmul.mubr.bf16.gmra.mrb[0].mxu0 %v671
  %v1151 = vpop.f32.mrb[0].mxu0
  %v1152 = vadd.f32 %v170, %v1151
  %v1153 = vpop.f32.mrb[0].mxu0
  %v1154 = vpop.f32.mrb[0].mxu0
  %v1155 = vadd.f32 %v170, %v1154
  %v1156 = vpop.f32.mrb[0].mxu0
  %1157 = vmatprep.mubr.bf16.mxu0 0
  %1158 = vmatmul.mubr.bf16.gmra.mrb[0].mxu0 %v674
  %v1159 = vpop.f32.mrb[0].mxu0
  %v1160 = vadd.f32 %v170, %v1159
  %v1161 = vpop.f32.mrb[0].mxu0
  %v1162 = vpop.f32.mrb[0].mxu0
  %v1163 = vadd.f32 %v170, %v1162
  %v1164 = vpop.f32.mrb[0].mxu0
  %1165 = vmatprep.mubr.bf16.mxu0 0
  %1166 = vmatmul.mubr.bf16.gmra.mrb[0].mxu0 %v677
  %v1167 = vpop.f32.mrb[0].mxu0
  %v1168 = vadd.f32 %v170, %v1167
  %v1169 = vpop.f32.mrb[0].mxu0
  %v1170 = vpop.f32.mrb[0].mxu0
  %v1171 = vadd.f32 %v170, %v1170
  %v1172 = vpop.f32.mrb[0].mxu0
  %1173 = vmatprep.mubr.bf16.mxu0 0
  %1174 = vmatmul.mubr.bf16.gmra.mrb[0].mxu0 %v680
  %v1175 = vpop.f32.mrb[0].mxu0
  %v1176 = vadd.f32 %v170, %v1175
  %v1177 = vpop.f32.mrb[0].mxu0
  %v1178 = vpop.f32.mrb[0].mxu0
  %v1179 = vadd.f32 %v170, %v1178
  %v1180 = vpop.f32.mrb[0].mxu0
  %1181 = vmatprep.mubr.bf16.mxu0 0
  %1182 = vmatmul.mubr.bf16.gmra.mrb[0].mxu0 %v683
  %v1183 = vpop.f32.mrb[0].mxu0
  %v1184 = vadd.f32 %v170, %v1183
  %v1185 = vpop.f32.mrb[0].mxu0
  %v1186 = vpop.f32.mrb[0].mxu0
  %v1187 = vadd.f32 %v170, %v1186
  %v1188 = vpop.f32.mrb[0].mxu0
  %1189 = vmatprep.mubr.bf16.mxu0 0
  %1190 = vmatmul.mubr.bf16.gmra.mrb[0].mxu0 %v686
  %v1191 = vpop.f32.mrb[0].mxu0
  %v1192 = vadd.f32 %v170, %v1191
  %v1193 = vpop.f32.mrb[0].mxu0
  %v1194 = vpop.f32.mrb[0].mxu0
  %v1195 = vadd.f32 %v170, %v1194
  %v1196 = vpop.f32.mrb[0].mxu0
  %1197 = vmatprep.mubr.bf16.mxu0 0
  %1198 = vmatmul.mubr.bf16.gmra.mrb[0].mxu0 %v689
  %v1199 = vpop.f32.mrb[0].mxu0
  %v1200 = vadd.f32 %v170, %v1199
  %v1201 = vpop.f32.mrb[0].mxu0
  %v1202 = vpop.f32.mrb[0].mxu0
  %v1203 = vadd.f32 %v170, %v1202
  %v1204 = vpop.f32.mrb[0].mxu0
  %1205 = vmatprep.mubr.bf16.mxu0 0
  %1206 = vmatmul.mubr.bf16.gmra.mrb[0].mxu0 %v692
  %v1207 = vpop.f32.mrb[0].mxu0
  %v1208 = vadd.f32 %v170, %v1207
  %v1209 = vpop.f32.mrb[0].mxu0
  %v1210 = vpop.f32.mrb[0].mxu0
  %v1211 = vadd.f32 %v170, %v1210
  %v1212 = vpop.f32.mrb[0].mxu0
  %1213 = vmatprep.mubr.bf16.mxu0 0
  %1214 = vmatmul.mubr.bf16.gmra.mrb[0].mxu0 %v695
  %v1215 = vpop.f32.mrb[0].mxu0
  %v1216 = vadd.f32 %v170, %v1215
  %v1217 = vpop.f32.mrb[0].mxu0
  %v1218 = vpop.f32.mrb[0].mxu0
  %v1219 = vadd.f32 %v170, %v1218
  %v1220 = vpop.f32.mrb[0].mxu0
  %1221 = vmatprep.mubr.bf16.mxu0 0
  %1222 = vmatmul.mubr.bf16.gmra.mrb[0].mxu0 %v698
  %v1223 = vpop.f32.mrb[0].mxu0
  %v1224 = vadd.f32 %v170, %v1223
  %v1225 = vpop.f32.mrb[0].mxu0
  %v1226 = vpop.f32.mrb[0].mxu0
  %v1227 = vadd.f32 %v170, %v1226
  %v1228 = vpop.f32.mrb[0].mxu0
  %1229 = vmatprep.mubr.bf16.mxu0 0
  %1230 = vmatmul.mubr.bf16.gmra.mrb[0].mxu0 %v701
  %v1231 = vpop.f32.mrb[0].mxu0
  %v1232 = vadd.f32 %v170, %v1231
  %v1233 = vpop.f32.mrb[0].mxu0
  %v1234 = vpop.f32.mrb[0].mxu0
  %v1235 = vadd.f32 %v170, %v1234
  %v1236 = vpop.f32.mrb[0].mxu0
  %1237 = vmatprep.mubr.bf16.mxu0 0
  %1238 = vmatmul.mubr.bf16.gmra.mrb[0].mxu0 %v704
  %v1239 = vpop.f32.mrb[0].mxu0
  %v1240 = vadd.f32 %v170, %v1239
  %v1241 = vpop.f32.mrb[0].mxu0
  %v1242 = vpop.f32.mrb[0].mxu0
  %v1243 = vadd.f32 %v170, %v1242
  %v1244 = vpop.f32.mrb[0].mxu0
  %1245 = vmatprep.mubr.bf16.mxu0 0
  %1246 = vmatmul.mubr.bf16.gmra.mrb[0].mxu0 %v707
  %v1247 = vpop.f32.mrb[0].mxu0
  %v1248 = vadd.f32 %v170, %v1247
  %v1249 = vpop.f32.mrb[0].mxu0
  %v1250 = vpop.f32.mrb[0].mxu0
  %v1251 = vadd.f32 %v170, %v1250
  %v1252 = vpop.f32.mrb[0].mxu0
  %1253 = vdwg.mxu0
  %v1254 = vmax.f32 %v744, 0.0
  %v1255 = vmax.f32 %v747, 0.0
  %v1256 = vmax.f32 %v752, 0.0
  %v1257 = vmax.f32 %v755, 0.0
  %v1258 = vmax.f32 %v760, 0.0
  %v1259 = vmax.f32 %v763, 0.0
  %v1260 = vmax.f32 %v768, 0.0
  %v1261 = vmax.f32 %v771, 0.0
  %v1262 = vmax.f32 %v776, 0.0
  %v1263 = vmax.f32 %v779, 0.0
  %v1264 = vmax.f32 %v784, 0.0
  %v1265 = vmax.f32 %v787, 0.0
  %v1266 = vmax.f32 %v792, 0.0
  %v1267 = vmax.f32 %v795, 0.0
  %v1268 = vmax.f32 %v800, 0.0
  %v1269 = vmax.f32 %v803, 0.0
  %v1270 = vmax.f32 %v808, 0.0
  %v1271 = vmax.f32 %v811, 0.0
  %v1272 = vmax.f32 %v816, 0.0
  %v1273 = vmax.f32 %v819, 0.0
  %v1274 = vmax.f32 %v824, 0.0
  %v1275 = vmax.f32 %v827, 0.0
  %v1276 = vmax.f32 %v832, 0.0
  %v1277 = vmax.f32 %v835, 0.0
  %v1278 = vmax.f32 %v840, 0.0
  %v1279 = vmax.f32 %v843, 0.0
  %v1280 = vmax.f32 %v848, 0.0
  %v1281 = vmax.f32 %v851, 0.0
  %v1282 = vmax.f32 %v856, 0.0
  %v1283 = vmax.f32 %v859, 0.0
  %v1284 = vmax.f32 %v864, 0.0
  %v1285 = vmax.f32 %v867, 0.0
  %v1286 = vmax.f32 %v872, 0.0
  %v1287 = vmax.f32 %v875, 0.0
  %v1288 = vmax.f32 %v880, 0.0
  %v1289 = vmax.f32 %v883, 0.0
  %v1290 = vmax.f32 %v888, 0.0
  %v1291 = vmax.f32 %v891, 0.0
  %v1292 = vmax.f32 %v896, 0.0
  %v1293 = vmax.f32 %v899, 0.0
  %v1294 = vmax.f32 %v904, 0.0
  %v1295 = vmax.f32 %v907, 0.0
  %v1296 = vmax.f32 %v912, 0.0
  %v1297 = vmax.f32 %v915, 0.0
  %v1298 = vmax.f32 %v920, 0.0
  %v1299 = vmax.f32 %v923, 0.0
  %v1300 = vmax.f32 %v928, 0.0
  %v1301 = vmax.f32 %v931, 0.0
  %v1302 = vmax.f32 %v936, 0.0
  %v1303 = vmax.f32 %v939, 0.0
  %v1304 = vmax.f32 %v944, 0.0
  %v1305 = vmax.f32 %v947, 0.0
  %v1306 = vmax.f32 %v952, 0.0
  %v1307 = vmax.f32 %v955, 0.0
  %v1308 = vmax.f32 %v960, 0.0
  %v1309 = vmax.f32 %v963, 0.0
  %v1310 = vmax.f32 %v968, 0.0
  %v1311 = vmax.f32 %v971, 0.0
  %v1312 = vmax.f32 %v976, 0.0
  %v1313 = vmax.f32 %v979, 0.0
  %v1314 = vmax.f32 %v984, 0.0
  %v1315 = vmax.f32 %v987, 0.0
  %v1316 = vmax.f32 %v992, 0.0
  %v1317 = vmax.f32 %v995, 0.0
  %v1318 = vmax.f32 %v1000, 0.0
  %v1319 = vmax.f32 %v1003, 0.0
  %v1320 = vmax.f32 %v1008, 0.0
  %v1321 = vmax.f32 %v1011, 0.0
  %v1322 = vmax.f32 %v1016, 0.0
  %v1323 = vmax.f32 %v1019, 0.0
  %v1324 = vmax.f32 %v1024, 0.0
  %v1325 = vmax.f32 %v1027, 0.0
  %v1326 = vmax.f32 %v1032, 0.0
  %v1327 = vmax.f32 %v1035, 0.0
  %v1328 = vmax.f32 %v1040, 0.0
  %v1329 = vmax.f32 %v1043, 0.0
  %v1330 = vmax.f32 %v1048, 0.0
  %v1331 = vmax.f32 %v1051, 0.0
  %v1332 = vmax.f32 %v1056, 0.0
  %v1333 = vmax.f32 %v1059, 0.0
  %v1334 = vmax.f32 %v1064, 0.0
  %v1335 = vmax.f32 %v1067, 0.0
  %v1336 = vmax.f32 %v1072, 0.0
  %v1337 = vmax.f32 %v1075, 0.0
  %v1338 = vmax.f32 %v1080, 0.0
  %v1339 = vmax.f32 %v1083, 0.0
  %v1340 = vmax.f32 %v1088, 0.0
  %v1341 = vmax.f32 %v1091, 0.0
  %v1342 = vmax.f32 %v1096, 0.0
  %v1343 = vmax.f32 %v1099, 0.0
  %v1344 = vmax.f32 %v1104, 0.0
  %v1345 = vmax.f32 %v1107, 0.0
  %v1346 = vmax.f32 %v1112, 0.0
  %v1347 = vmax.f32 %v1115, 0.0
  %v1348 = vmax.f32 %v1120, 0.0
  %v1349 = vmax.f32 %v1123, 0.0
  %v1350 = vmax.f32 %v1128, 0.0
  %v1351 = vmax.f32 %v1131, 0.0
  %v1352 = vmax.f32 %v1136, 0.0
  %v1353 = vmax.f32 %v1139, 0.0
  %v1354 = vmax.f32 %v1144, 0.0
  %v1355 = vmax.f32 %v1147, 0.0
  %v1356 = vmax.f32 %v1152, 0.0
  %v1357 = vmax.f32 %v1155, 0.0
  %v1358 = vmax.f32 %v1160, 0.0
  %v1359 = vmax.f32 %v1163, 0.0
  %v1360 = vmax.f32 %v1168, 0.0
  %v1361 = vmax.f32 %v1171, 0.0
  %v1362 = vmax.f32 %v1176, 0.0
  %v1363 = vmax.f32 %v1179, 0.0
  %v1364 = vmax.f32 %v1184, 0.0
  %v1365 = vmax.f32 %v1187, 0.0
  %v1366 = vmax.f32 %v1192, 0.0
  %v1367 = vmax.f32 %v1195, 0.0
  %v1368 = vmax.f32 %v1200, 0.0
  %v1369 = vmax.f32 %v1203, 0.0
  %v1370 = vmax.f32 %v1208, 0.0
  %v1371 = vmax.f32 %v1211, 0.0
  %v1372 = vmax.f32 %v1216, 0.0
  %v1373 = vmax.f32 %v1219, 0.0
  %v1374 = vmax.f32 %v1224, 0.0
  %v1375 = vmax.f32 %v1227, 0.0
  %v1376 = vmax.f32 %v1232, 0.0
  %v1377 = vmax.f32 %v1235, 0.0
  %v1378 = vmax.f32 %v1240, 0.0
  %v1379 = vmax.f32 %v1243, 0.0
  %v1380 = vmax.f32 %v1248, 0.0
  %v1381 = vmax.f32 %v1251, 0.0
  %v1382 = vpack.c.bf16 %v1255, %v1254
  %v1383 = vpack.c.bf16 %v1257, %v1256
  %v1384 = vpack.c.bf16 %v1259, %v1258
  %v1385 = vpack.c.bf16 %v1261, %v1260
  %v1386 = vpack.c.bf16 %v1263, %v1262
  %v1387 = vpack.c.bf16 %v1265, %v1264
  %v1388 = vpack.c.bf16 %v1267, %v1266
  %v1389 = vpack.c.bf16 %v1269, %v1268
  %v1390 = vpack.c.bf16 %v1271, %v1270
  %v1391 = vpack.c.bf16 %v1273, %v1272
  %v1392 = vpack.c.bf16 %v1275, %v1274
  %v1393 = vpack.c.bf16 %v1277, %v1276
  %v1394 = vpack.c.bf16 %v1279, %v1278
  %v1395 = vpack.c.bf16 %v1281, %v1280
  %v1396 = vpack.c.bf16 %v1283, %v1282
  %v1397 = vpack.c.bf16 %v1285, %v1284
  %v1398 = vpack.c.bf16 %v1287, %v1286
  %v1399 = vpack.c.bf16 %v1289, %v1288
  %v1400 = vpack.c.bf16 %v1291, %v1290
  %v1401 = vpack.c.bf16 %v1293, %v1292
  %v1402 = vpack.c.bf16 %v1295, %v1294
  %v1403 = vpack.c.bf16 %v1297, %v1296
  %v1404 = vpack.c.bf16 %v1299, %v1298
  %v1405 = vpack.c.bf16 %v1301, %v1300
  %v1406 = vpack.c.bf16 %v1303, %v1302
  %v1407 = vpack.c.bf16 %v1305, %v1304
  %v1408 = vpack.c.bf16 %v1307, %v1306
  %v1409 = vpack.c.bf16 %v1309, %v1308
  %v1410 = vpack.c.bf16 %v1311, %v1310
  %v1411 = vpack.c.bf16 %v1313, %v1312
  %v1412 = vpack.c.bf16 %v1315, %v1314
  %v1413 = vpack.c.bf16 %v1317, %v1316
  %v1414 = vpack.c.bf16 %v1319, %v1318
  %v1415 = vpack.c.bf16 %v1321, %v1320
  %v1416 = vpack.c.bf16 %v1323, %v1322
  %v1417 = vpack.c.bf16 %v1325, %v1324
  %v1418 = vpack.c.bf16 %v1327, %v1326
  %v1419 = vpack.c.bf16 %v1329, %v1328
  %v1420 = vpack.c.bf16 %v1331, %v1330
  %v1421 = vpack.c.bf16 %v1333, %v1332
  %v1422 = vpack.c.bf16 %v1335, %v1334
  %v1423 = vpack.c.bf16 %v1337, %v1336
  %v1424 = vpack.c.bf16 %v1339, %v1338
  %v1425 = vpack.c.bf16 %v1341, %v1340
  %v1426 = vpack.c.bf16 %v1343, %v1342
  %v1427 = vpack.c.bf16 %v1345, %v1344
  %v1428 = vpack.c.bf16 %v1347, %v1346
  %v1429 = vpack.c.bf16 %v1349, %v1348
  %v1430 = vpack.c.bf16 %v1351, %v1350
  %v1431 = vpack.c.bf16 %v1353, %v1352
  %v1432 = vpack.c.bf16 %v1355, %v1354
  %v1433 = vpack.c.bf16 %v1357, %v1356
  %v1434 = vpack.c.bf16 %v1359, %v1358
  %v1435 = vpack.c.bf16 %v1361, %v1360
  %v1436 = vpack.c.bf16 %v1363, %v1362
  %v1437 = vpack.c.bf16 %v1365, %v1364
  %v1438 = vpack.c.bf16 %v1367, %v1366
  %v1439 = vpack.c.bf16 %v1369, %v1368
  %v1440 = vpack.c.bf16 %v1371, %v1370
  %v1441 = vpack.c.bf16 %v1373, %v1372
  %v1442 = vpack.c.bf16 %v1375, %v1374
  %v1443 = vpack.c.bf16 %v1377, %v1376
  %v1444 = vpack.c.bf16 %v1379, %v1378
  %v1445 = vpack.c.bf16 %v1381, %v1380
  %v1446 = vld [vmem:[%s3] sm:$0xf]
  %v1447 = vld [vmem:[%s3 + $0x4] sm:$0xf]
  %v1448 = vld [vmem:[%s3 + $0x8] sm:$0xf]
  %v1449 = vld [vmem:[%s3 + $0xc] sm:$0xf]
  %v1450 = vld [vmem:[%s4] sm:$0x1]
  %v1452 = vlaneseq
  %v1453 = vshrl.u32 %v1452, 7
  %v1454 = vsub.s32 0, %v1453
  %v1455 = vrot.slane %v1450, %v1454
  %v1461 = vunpack.c.l.b16 %v1446
  %v1462 = vunpack.c.l.b16 %v1447
  %v1463 = vunpack.c.l.b16 %v1448
  %v1464 = vunpack.c.l.b16 %v1449
  %v1465 = vpack.c.b16 %v1462, %v1461
  %v1466 = vpack.c.b16 %v1464, %v1463
  %vm1469 = vcmask 261120
  %v1471 = vsel %vm1469, %v1382, 0
  %v1474 = vsel %vm1469, %v1383, 0
  %v1477 = vsel %vm1469, %v1384, 0
  %v1480 = vsel %vm1469, %v1385, 0
  %v1483 = vsel %vm1469, %v1386, 0
  %v1486 = vsel %vm1469, %v1387, 0
  %v1489 = vsel %vm1469, %v1388, 0
  %v1492 = vsel %vm1469, %v1389, 0
  %v1495 = vsel %vm1469, %v1390, 0
  %v1498 = vsel %vm1469, %v1391, 0
  %v1501 = vsel %vm1469, %v1392, 0
  %v1504 = vsel %vm1469, %v1393, 0
  %v1507 = vsel %vm1469, %v1394, 0
  %v1510 = vsel %vm1469, %v1395, 0
  %v1513 = vsel %vm1469, %v1396, 0
  %v1516 = vsel %vm1469, %v1397, 0
  %v1519 = vsel %vm1469, %v1398, 0
  %v1522 = vsel %vm1469, %v1399, 0
  %v1525 = vsel %vm1469, %v1400, 0
  %v1528 = vsel %vm1469, %v1401, 0
  %v1531 = vsel %vm1469, %v1402, 0
  %v1534 = vsel %vm1469, %v1403, 0
  %v1537 = vsel %vm1469, %v1404, 0
  %v1540 = vsel %vm1469, %v1405, 0
  %v1543 = vsel %vm1469, %v1406, 0
  %v1546 = vsel %vm1469, %v1407, 0
  %v1549 = vsel %vm1469, %v1408, 0
  %v1552 = vsel %vm1469, %v1409, 0
  %v1555 = vsel %vm1469, %v1410, 0
  %v1558 = vsel %vm1469, %v1411, 0
  %v1561 = vsel %vm1469, %v1412, 0
  %v1564 = vsel %vm1469, %v1413, 0
  %v1567 = vsel %vm1469, %v1414, 0
  %v1570 = vsel %vm1469, %v1415, 0
  %v1573 = vsel %vm1469, %v1416, 0
  %v1576 = vsel %vm1469, %v1417, 0
  %v1579 = vsel %vm1469, %v1418, 0
  %v1582 = vsel %vm1469, %v1419, 0
  %v1585 = vsel %vm1469, %v1420, 0
  %v1588 = vsel %vm1469, %v1421, 0
  %v1591 = vsel %vm1469, %v1422, 0
  %v1594 = vsel %vm1469, %v1423, 0
  %v1597 = vsel %vm1469, %v1424, 0
  %v1600 = vsel %vm1469, %v1425, 0
  %v1603 = vsel %vm1469, %v1426, 0
  %v1606 = vsel %vm1469, %v1427, 0
  %v1609 = vsel %vm1469, %v1428, 0
  %v1612 = vsel %vm1469, %v1429, 0
  %v1615 = vsel %vm1469, %v1430, 0
  %v1618 = vsel %vm1469, %v1431, 0
  %v1621 = vsel %vm1469, %v1432, 0
  %v1624 = vsel %vm1469, %v1433, 0
  %v1627 = vsel %vm1469, %v1434, 0
  %v1630 = vsel %vm1469, %v1435, 0
  %v1633 = vsel %vm1469, %v1436, 0
  %v1636 = vsel %vm1469, %v1437, 0
  %v1639 = vsel %vm1469, %v1438, 0
  %v1642 = vsel %vm1469, %v1439, 0
  %v1645 = vsel %vm1469, %v1440, 0
  %v1648 = vsel %vm1469, %v1441, 0
  %v1651 = vsel %vm1469, %v1442, 0
  %v1654 = vsel %vm1469, %v1443, 0
  %v1657 = vsel %vm1469, %v1444, 0
  %v1660 = vsel %vm1469, %v1445, 0
  %1662 = vmatprep.subr.bf16.mxu0 0
  %1663 = vmatpush1.bf16.msra.mxu0 %v1465
  %1664 = vmatprep.subr.bf16.mxu0 0
  %1665 = vmatpush1.bf16.msra.mxu0 %v1466
  %1666 = vmatprep.subr.bf16.mxu0 0
  %1667 = vmatpush1.bf16.msra.mxu0 0
  %1668 = vmatprep.subr.bf16.mxu0 0
  %1669 = vmatpush1.bf16.msra.mxu0 0
  %1670 = vmatprep.subr.bf16.mxu0 0
  %1671 = vmatpush1.bf16.msra.mxu0 0
  %1672 = vmatprep.subr.bf16.mxu0 0
  %1673 = vmatpush1.bf16.msra.mxu0 0
  %1674 = vmatprep.subr.bf16.mxu0 0
  %1675 = vmatpush1.bf16.msra.mxu0 0
  %1676 = vmatprep.subr.bf16.mxu0 0
  %1677 = vmatpush1.bf16.msra.mxu0 0
  %1678 = vmatprep.subr.bf16.mxu0 0
  %1679 = vmatpush1.bf16.msra.mxu0 0
  %1680 = vmatprep.subr.bf16.mxu0 0
  %1681 = vmatpush1.bf16.msra.mxu0 0
  %1682 = vmatprep.subr.bf16.mxu0 0
  %1683 = vmatpush1.bf16.msra.mxu0 0
  %1684 = vmatprep.subr.bf16.mxu0 0
  %1685 = vmatpush1.bf16.msra.mxu0 0
  %1686 = vmatprep.subr.bf16.mxu0 0
  %1687 = vmatpush1.bf16.msra.mxu0 0
  %1688 = vmatprep.subr.bf16.mxu0 0
  %1689 = vmatpush1.bf16.msra.mxu0 0
  %1690 = vmatprep.subr.bf16.mxu0 0
  %1691 = vmatpush1.bf16.msra.mxu0 0
  %1692 = vmatprep.subr.bf16.mxu0 0
  %1693 = vmatpush1.bf16.msra.mxu0 0
  %1694 = vmatprep.mubr.bf16.mxu0 0
  %1695 = vmatmul.mubr.bf16.gmra.mrb[0].mxu0 %v1471
  %v1696 = vpop.f32.mrb[0].mxu0
  %v1697 = vadd.f32 %v1455, %v1696
  %v1698 = vpop.f32.mrb[0].mxu0
  %v1699 = vpop.f32.mrb[0].mxu0
  %v1700 = vadd.f32 %v1455, %v1699
  %v1701 = vpop.f32.mrb[0].mxu0
  %1702 = vmatprep.mubr.bf16.mxu0 0
  %1703 = vmatmul.mubr.bf16.gmra.mrb[0].mxu0 %v1474
  %v1704 = vpop.f32.mrb[0].mxu0
  %v1705 = vadd.f32 %v1455, %v1704
  %v1706 = vpop.f32.mrb[0].mxu0
  %v1707 = vpop.f32.mrb[0].mxu0
  %v1708 = vadd.f32 %v1455, %v1707
  %v1709 = vpop.f32.mrb[0].mxu0
  %1710 = vmatprep.mubr.bf16.mxu0 0
  %1711 = vmatmul.mubr.bf16.gmra.mrb[0].mxu0 %v1477
  %v1712 = vpop.f32.mrb[0].mxu0
  %v1713 = vadd.f32 %v1455, %v1712
  %v1714 = vpop.f32.mrb[0].mxu0
  %v1715 = vpop.f32.mrb[0].mxu0
  %v1716 = vadd.f32 %v1455, %v1715
  %v1717 = vpop.f32.mrb[0].mxu0
  %1718 = vmatprep.mubr.bf16.mxu0 0
  %1719 = vmatmul.mubr.bf16.gmra.mrb[0].mxu0 %v1480
  %v1720 = vpop.f32.mrb[0].mxu0
  %v1721 = vadd.f32 %v1455, %v1720
  %v1722 = vpop.f32.mrb[0].mxu0
  %v1723 = vpop.f32.mrb[0].mxu0
  %v1724 = vadd.f32 %v1455, %v1723
  %v1725 = vpop.f32.mrb[0].mxu0
  %1726 = vmatprep.mubr.bf16.mxu0 0
  %1727 = vmatmul.mubr.bf16.gmra.mrb[0].mxu0 %v1483
  %v1728 = vpop.f32.mrb[0].mxu0
  %v1729 = vadd.f32 %v1455, %v1728
  %v1730 = vpop.f32.mrb[0].mxu0
  %v1731 = vpop.f32.mrb[0].mxu0
  %v1732 = vadd.f32 %v1455, %v1731
  %v1733 = vpop.f32.mrb[0].mxu0
  %1734 = vmatprep.mubr.bf16.mxu0 0
  %1735 = vmatmul.mubr.bf16.gmra.mrb[0].mxu0 %v1486
  %v1736 = vpop.f32.mrb[0].mxu0
  %v1737 = vadd.f32 %v1455, %v1736
  %v1738 = vpop.f32.mrb[0].mxu0
  %v1739 = vpop.f32.mrb[0].mxu0
  %v1740 = vadd.f32 %v1455, %v1739
  %v1741 = vpop.f32.mrb[0].mxu0
  %1742 = vmatprep.mubr.bf16.mxu0 0
  %1743 = vmatmul.mubr.bf16.gmra.mrb[0].mxu0 %v1489
  %v1744 = vpop.f32.mrb[0].mxu0
  %v1745 = vadd.f32 %v1455, %v1744
  %v1746 = vpop.f32.mrb[0].mxu0
  %v1747 = vpop.f32.mrb[0].mxu0
  %v1748 = vadd.f32 %v1455, %v1747
  %v1749 = vpop.f32.mrb[0].mxu0
  %1750 = vmatprep.mubr.bf16.mxu0 0
  %1751 = vmatmul.mubr.bf16.gmra.mrb[0].mxu0 %v1492
  %v1752 = vpop.f32.mrb[0].mxu0
  %v1753 = vadd.f32 %v1455, %v1752
  %v1754 = vpop.f32.mrb[0].mxu0
  %v1755 = vpop.f32.mrb[0].mxu0
  %v1756 = vadd.f32 %v1455, %v1755
  %v1757 = vpop.f32.mrb[0].mxu0
  %1758 = vmatprep.mubr.bf16.mxu0 0
  %1759 = vmatmul.mubr.bf16.gmra.mrb[0].mxu0 %v1495
  %v1760 = vpop.f32.mrb[0].mxu0
  %v1761 = vadd.f32 %v1455, %v1760
  %v1762 = vpop.f32.mrb[0].mxu0
  %v1763 = vpop.f32.mrb[0].mxu0
  %v1764 = vadd.f32 %v1455, %v1763
  %v1765 = vpop.f32.mrb[0].mxu0
  %1766 = vmatprep.mubr.bf16.mxu0 0
  %1767 = vmatmul.mubr.bf16.gmra.mrb[0].mxu0 %v1498
  %v1768 = vpop.f32.mrb[0].mxu0
  %v1769 = vadd.f32 %v1455, %v1768
  %v1770 = vpop.f32.mrb[0].mxu0
  %v1771 = vpop.f32.mrb[0].mxu0
  %v1772 = vadd.f32 %v1455, %v1771
  %v1773 = vpop.f32.mrb[0].mxu0
  %1774 = vmatprep.mubr.bf16.mxu0 0
  %1775 = vmatmul.mubr.bf16.gmra.mrb[0].mxu0 %v1501
  %v1776 = vpop.f32.mrb[0].mxu0
  %v1777 = vadd.f32 %v1455, %v1776
  %v1778 = vpop.f32.mrb[0].mxu0
  %v1779 = vpop.f32.mrb[0].mxu0
  %v1780 = vadd.f32 %v1455, %v1779
  %v1781 = vpop.f32.mrb[0].mxu0
  %1782 = vmatprep.mubr.bf16.mxu0 0
  %1783 = vmatmul.mubr.bf16.gmra.mrb[0].mxu0 %v1504
  %v1784 = vpop.f32.mrb[0].mxu0
  %v1785 = vadd.f32 %v1455, %v1784
  %v1786 = vpop.f32.mrb[0].mxu0
  %v1787 = vpop.f32.mrb[0].mxu0
  %v1788 = vadd.f32 %v1455, %v1787
  %v1789 = vpop.f32.mrb[0].mxu0
  %1790 = vmatprep.mubr.bf16.mxu0 0
  %1791 = vmatmul.mubr.bf16.gmra.mrb[0].mxu0 %v1507
  %v1792 = vpop.f32.mrb[0].mxu0
  %v1793 = vadd.f32 %v1455, %v1792
  %v1794 = vpop.f32.mrb[0].mxu0
  %v1795 = vpop.f32.mrb[0].mxu0
  %v1796 = vadd.f32 %v1455, %v1795
  %v1797 = vpop.f32.mrb[0].mxu0
  %1798 = vmatprep.mubr.bf16.mxu0 0
  %1799 = vmatmul.mubr.bf16.gmra.mrb[0].mxu0 %v1510
  %v1800 = vpop.f32.mrb[0].mxu0
  %v1801 = vadd.f32 %v1455, %v1800
  %v1802 = vpop.f32.mrb[0].mxu0
  %v1803 = vpop.f32.mrb[0].mxu0
  %v1804 = vadd.f32 %v1455, %v1803
  %v1805 = vpop.f32.mrb[0].mxu0
  %1806 = vmatprep.mubr.bf16.mxu0 0
  %1807 = vmatmul.mubr.bf16.gmra.mrb[0].mxu0 %v1513
  %v1808 = vpop.f32.mrb[0].mxu0
  %v1809 = vadd.f32 %v1455, %v1808
  %v1810 = vpop.f32.mrb[0].mxu0
  %v1811 = vpop.f32.mrb[0].mxu0
  %v1812 = vadd.f32 %v1455, %v1811
  %v1813 = vpop.f32.mrb[0].mxu0
  %1814 = vmatprep.mubr.bf16.mxu0 0
  %1815 = vmatmul.mubr.bf16.gmra.mrb[0].mxu0 %v1516
  %v1816 = vpop.f32.mrb[0].mxu0
  %v1817 = vadd.f32 %v1455, %v1816
  %v1818 = vpop.f32.mrb[0].mxu0
  %v1819 = vpop.f32.mrb[0].mxu0
  %v1820 = vadd.f32 %v1455, %v1819
  %v1821 = vpop.f32.mrb[0].mxu0
  %1822 = vmatprep.mubr.bf16.mxu0 0
  %1823 = vmatmul.mubr.bf16.gmra.mrb[0].mxu0 %v1519
  %v1824 = vpop.f32.mrb[0].mxu0
  %v1825 = vadd.f32 %v1455, %v1824
  %v1826 = vpop.f32.mrb[0].mxu0
  %v1827 = vpop.f32.mrb[0].mxu0
  %v1828 = vadd.f32 %v1455, %v1827
  %v1829 = vpop.f32.mrb[0].mxu0
  %1830 = vmatprep.mubr.bf16.mxu0 0
  %1831 = vmatmul.mubr.bf16.gmra.mrb[0].mxu0 %v1522
  %v1832 = vpop.f32.mrb[0].mxu0
  %v1833 = vadd.f32 %v1455, %v1832
  %v1834 = vpop.f32.mrb[0].mxu0
  %v1835 = vpop.f32.mrb[0].mxu0
  %v1836 = vadd.f32 %v1455, %v1835
  %v1837 = vpop.f32.mrb[0].mxu0
  %1838 = vmatprep.mubr.bf16.mxu0 0
  %1839 = vmatmul.mubr.bf16.gmra.mrb[0].mxu0 %v1525
  %v1840 = vpop.f32.mrb[0].mxu0
  %v1841 = vadd.f32 %v1455, %v1840
  %v1842 = vpop.f32.mrb[0].mxu0
  %v1843 = vpop.f32.mrb[0].mxu0
  %v1844 = vadd.f32 %v1455, %v1843
  %v1845 = vpop.f32.mrb[0].mxu0
  %1846 = vmatprep.mubr.bf16.mxu0 0
  %1847 = vmatmul.mubr.bf16.gmra.mrb[0].mxu0 %v1528
  %v1848 = vpop.f32.mrb[0].mxu0
  %v1849 = vadd.f32 %v1455, %v1848
  %v1850 = vpop.f32.mrb[0].mxu0
  %v1851 = vpop.f32.mrb[0].mxu0
  %v1852 = vadd.f32 %v1455, %v1851
  %v1853 = vpop.f32.mrb[0].mxu0
  %1854 = vmatprep.mubr.bf16.mxu0 0
  %1855 = vmatmul.mubr.bf16.gmra.mrb[0].mxu0 %v1531
  %v1856 = vpop.f32.mrb[0].mxu0
  %v1857 = vadd.f32 %v1455, %v1856
  %v1858 = vpop.f32.mrb[0].mxu0
  %v1859 = vpop.f32.mrb[0].mxu0
  %v1860 = vadd.f32 %v1455, %v1859
  %v1861 = vpop.f32.mrb[0].mxu0
  %1862 = vmatprep.mubr.bf16.mxu0 0
  %1863 = vmatmul.mubr.bf16.gmra.mrb[0].mxu0 %v1534
  %v1864 = vpop.f32.mrb[0].mxu0
  %v1865 = vadd.f32 %v1455, %v1864
  %v1866 = vpop.f32.mrb[0].mxu0
  %v1867 = vpop.f32.mrb[0].mxu0
  %v1868 = vadd.f32 %v1455, %v1867
  %v1869 = vpop.f32.mrb[0].mxu0
  %1870 = vmatprep.mubr.bf16.mxu0 0
  %1871 = vmatmul.mubr.bf16.gmra.mrb[0].mxu0 %v1537
  %v1872 = vpop.f32.mrb[0].mxu0
  %v1873 = vadd.f32 %v1455, %v1872
  %v1874 = vpop.f32.mrb[0].mxu0
  %v1875 = vpop.f32.mrb[0].mxu0
  %v1876 = vadd.f32 %v1455, %v1875
  %v1877 = vpop.f32.mrb[0].mxu0
  %1878 = vmatprep.mubr.bf16.mxu0 0
  %1879 = vmatmul.mubr.bf16.gmra.mrb[0].mxu0 %v1540
  %v1880 = vpop.f32.mrb[0].mxu0
  %v1881 = vadd.f32 %v1455, %v1880
  %v1882 = vpop.f32.mrb[0].mxu0
  %v1883 = vpop.f32.mrb[0].mxu0
  %v1884 = vadd.f32 %v1455, %v1883
  %v1885 = vpop.f32.mrb[0].mxu0
  %1886 = vmatprep.mubr.bf16.mxu0 0
  %1887 = vmatmul.mubr.bf16.gmra.mrb[0].mxu0 %v1543
  %v1888 = vpop.f32.mrb[0].mxu0
  %v1889 = vadd.f32 %v1455, %v1888
  %v1890 = vpop.f32.mrb[0].mxu0
  %v1891 = vpop.f32.mrb[0].mxu0
  %v1892 = vadd.f32 %v1455, %v1891
  %v1893 = vpop.f32.mrb[0].mxu0
  %1894 = vmatprep.mubr.bf16.mxu0 0
  %1895 = vmatmul.mubr.bf16.gmra.mrb[0].mxu0 %v1546
  %v1896 = vpop.f32.mrb[0].mxu0
  %v1897 = vadd.f32 %v1455, %v1896
  %v1898 = vpop.f32.mrb[0].mxu0
  %v1899 = vpop.f32.mrb[0].mxu0
  %v1900 = vadd.f32 %v1455, %v1899
  %v1901 = vpop.f32.mrb[0].mxu0
  %1902 = vmatprep.mubr.bf16.mxu0 0
  %1903 = vmatmul.mubr.bf16.gmra.mrb[0].mxu0 %v1549
  %v1904 = vpop.f32.mrb[0].mxu0
  %v1905 = vadd.f32 %v1455, %v1904
  %v1906 = vpop.f32.mrb[0].mxu0
  %v1907 = vpop.f32.mrb[0].mxu0
  %v1908 = vadd.f32 %v1455, %v1907
  %v1909 = vpop.f32.mrb[0].mxu0
  %1910 = vmatprep.mubr.bf16.mxu0 0
  %1911 = vmatmul.mubr.bf16.gmra.mrb[0].mxu0 %v1552
  %v1912 = vpop.f32.mrb[0].mxu0
  %v1913 = vadd.f32 %v1455, %v1912
  %v1914 = vpop.f32.mrb[0].mxu0
  %v1915 = vpop.f32.mrb[0].mxu0
  %v1916 = vadd.f32 %v1455, %v1915
  %v1917 = vpop.f32.mrb[0].mxu0
  %1918 = vmatprep.mubr.bf16.mxu0 0
  %1919 = vmatmul.mubr.bf16.gmra.mrb[0].mxu0 %v1555
  %v1920 = vpop.f32.mrb[0].mxu0
  %v1921 = vadd.f32 %v1455, %v1920
  %v1922 = vpop.f32.mrb[0].mxu0
  %v1923 = vpop.f32.mrb[0].mxu0
  %v1924 = vadd.f32 %v1455, %v1923
  %v1925 = vpop.f32.mrb[0].mxu0
  %1926 = vmatprep.mubr.bf16.mxu0 0
  %1927 = vmatmul.mubr.bf16.gmra.mrb[0].mxu0 %v1558
  %v1928 = vpop.f32.mrb[0].mxu0
  %v1929 = vadd.f32 %v1455, %v1928
  %v1930 = vpop.f32.mrb[0].mxu0
  %v1931 = vpop.f32.mrb[0].mxu0
  %v1932 = vadd.f32 %v1455, %v1931
  %v1933 = vpop.f32.mrb[0].mxu0
  %1934 = vmatprep.mubr.bf16.mxu0 0
  %1935 = vmatmul.mubr.bf16.gmra.mrb[0].mxu0 %v1561
  %v1936 = vpop.f32.mrb[0].mxu0
  %v1937 = vadd.f32 %v1455, %v1936
  %v1938 = vpop.f32.mrb[0].mxu0
  %v1939 = vpop.f32.mrb[0].mxu0
  %v1940 = vadd.f32 %v1455, %v1939
  %v1941 = vpop.f32.mrb[0].mxu0
  %1942 = vmatprep.mubr.bf16.mxu0 0
  %1943 = vmatmul.mubr.bf16.gmra.mrb[0].mxu0 %v1564
  %v1944 = vpop.f32.mrb[0].mxu0
  %v1945 = vadd.f32 %v1455, %v1944
  %v1946 = vpop.f32.mrb[0].mxu0
  %v1947 = vpop.f32.mrb[0].mxu0
  %v1948 = vadd.f32 %v1455, %v1947
  %v1949 = vpop.f32.mrb[0].mxu0
  %1950 = vmatprep.mubr.bf16.mxu0 0
  %1951 = vmatmul.mubr.bf16.gmra.mrb[0].mxu0 %v1567
  %v1952 = vpop.f32.mrb[0].mxu0
  %v1953 = vadd.f32 %v1455, %v1952
  %v1954 = vpop.f32.mrb[0].mxu0
  %v1955 = vpop.f32.mrb[0].mxu0
  %v1956 = vadd.f32 %v1455, %v1955
  %v1957 = vpop.f32.mrb[0].mxu0
  %1958 = vmatprep.mubr.bf16.mxu0 0
  %1959 = vmatmul.mubr.bf16.gmra.mrb[0].mxu0 %v1570
  %v1960 = vpop.f32.mrb[0].mxu0
  %v1961 = vadd.f32 %v1455, %v1960
  %v1962 = vpop.f32.mrb[0].mxu0
  %v1963 = vpop.f32.mrb[0].mxu0
  %v1964 = vadd.f32 %v1455, %v1963
  %v1965 = vpop.f32.mrb[0].mxu0
  %1966 = vmatprep.mubr.bf16.mxu0 0
  %1967 = vmatmul.mubr.bf16.gmra.mrb[0].mxu0 %v1573
  %v1968 = vpop.f32.mrb[0].mxu0
  %v1969 = vadd.f32 %v1455, %v1968
  %v1970 = vpop.f32.mrb[0].mxu0
  %v1971 = vpop.f32.mrb[0].mxu0
  %v1972 = vadd.f32 %v1455, %v1971
  %v1973 = vpop.f32.mrb[0].mxu0
  %1974 = vmatprep.mubr.bf16.mxu0 0
  %1975 = vmatmul.mubr.bf16.gmra.mrb[0].mxu0 %v1576
  %v1976 = vpop.f32.mrb[0].mxu0
  %v1977 = vadd.f32 %v1455, %v1976
  %v1978 = vpop.f32.mrb[0].mxu0
  %v1979 = vpop.f32.mrb[0].mxu0
  %v1980 = vadd.f32 %v1455, %v1979
  %v1981 = vpop.f32.mrb[0].mxu0
  %1982 = vmatprep.mubr.bf16.mxu0 0
  %1983 = vmatmul.mubr.bf16.gmra.mrb[0].mxu0 %v1579
  %v1984 = vpop.f32.mrb[0].mxu0
  %v1985 = vadd.f32 %v1455, %v1984
  %v1986 = vpop.f32.mrb[0].mxu0
  %v1987 = vpop.f32.mrb[0].mxu0
  %v1988 = vadd.f32 %v1455, %v1987
  %v1989 = vpop.f32.mrb[0].mxu0
  %1990 = vmatprep.mubr.bf16.mxu0 0
  %1991 = vmatmul.mubr.bf16.gmra.mrb[0].mxu0 %v1582
  %v1992 = vpop.f32.mrb[0].mxu0
  %v1993 = vadd.f32 %v1455, %v1992
  %v1994 = vpop.f32.mrb[0].mxu0
  %v1995 = vpop.f32.mrb[0].mxu0
  %v1996 = vadd.f32 %v1455, %v1995
  %v1997 = vpop.f32.mrb[0].mxu0
  %1998 = vmatprep.mubr.bf16.mxu0 0
  %1999 = vmatmul.mubr.bf16.gmra.mrb[0].mxu0 %v1585
  %v2000 = vpop.f32.mrb[0].mxu0
  %v2001 = vadd.f32 %v1455, %v2000
  %v2002 = vpop.f32.mrb[0].mxu0
  %v2003 = vpop.f32.mrb[0].mxu0
  %v2004 = vadd.f32 %v1455, %v2003
  %v2005 = vpop.f32.mrb[0].mxu0
  %2006 = vmatprep.mubr.bf16.mxu0 0
  %2007 = vmatmul.mubr.bf16.gmra.mrb[0].mxu0 %v1588
  %v2008 = vpop.f32.mrb[0].mxu0
  %v2009 = vadd.f32 %v1455, %v2008
  %v2010 = vpop.f32.mrb[0].mxu0
  %v2011 = vpop.f32.mrb[0].mxu0
  %v2012 = vadd.f32 %v1455, %v2011
  %v2013 = vpop.f32.mrb[0].mxu0
  %2014 = vmatprep.mubr.bf16.mxu0 0
  %2015 = vmatmul.mubr.bf16.gmra.mrb[0].mxu0 %v1591
  %v2016 = vpop.f32.mrb[0].mxu0
  %v2017 = vadd.f32 %v1455, %v2016
  %v2018 = vpop.f32.mrb[0].mxu0
  %v2019 = vpop.f32.mrb[0].mxu0
  %v2020 = vadd.f32 %v1455, %v2019
  %v2021 = vpop.f32.mrb[0].mxu0
  %2022 = vmatprep.mubr.bf16.mxu0 0
  %2023 = vmatmul.mubr.bf16.gmra.mrb[0].mxu0 %v1594
  %v2024 = vpop.f32.mrb[0].mxu0
  %v2025 = vadd.f32 %v1455, %v2024
  %v2026 = vpop.f32.mrb[0].mxu0
  %v2027 = vpop.f32.mrb[0].mxu0
  %v2028 = vadd.f32 %v1455, %v2027
  %v2029 = vpop.f32.mrb[0].mxu0
  %2030 = vmatprep.mubr.bf16.mxu0 0
  %2031 = vmatmul.mubr.bf16.gmra.mrb[0].mxu0 %v1597
  %v2032 = vpop.f32.mrb[0].mxu0
  %v2033 = vadd.f32 %v1455, %v2032
  %v2034 = vpop.f32.mrb[0].mxu0
  %v2035 = vpop.f32.mrb[0].mxu0
  %v2036 = vadd.f32 %v1455, %v2035
  %v2037 = vpop.f32.mrb[0].mxu0
  %2038 = vmatprep.mubr.bf16.mxu0 0
  %2039 = vmatmul.mubr.bf16.gmra.mrb[0].mxu0 %v1600
  %v2040 = vpop.f32.mrb[0].mxu0
  %v2041 = vadd.f32 %v1455, %v2040
  %v2042 = vpop.f32.mrb[0].mxu0
  %v2043 = vpop.f32.mrb[0].mxu0
  %v2044 = vadd.f32 %v1455, %v2043
  %v2045 = vpop.f32.mrb[0].mxu0
  %2046 = vmatprep.mubr.bf16.mxu0 0
  %2047 = vmatmul.mubr.bf16.gmra.mrb[0].mxu0 %v1603
  %v2048 = vpop.f32.mrb[0].mxu0
  %v2049 = vadd.f32 %v1455, %v2048
  %v2050 = vpop.f32.mrb[0].mxu0
  %v2051 = vpop.f32.mrb[0].mxu0
  %v2052 = vadd.f32 %v1455, %v2051
  %v2053 = vpop.f32.mrb[0].mxu0
  %2054 = vmatprep.mubr.bf16.mxu0 0
  %2055 = vmatmul.mubr.bf16.gmra.mrb[0].mxu0 %v1606
  %v2056 = vpop.f32.mrb[0].mxu0
  %v2057 = vadd.f32 %v1455, %v2056
  %v2058 = vpop.f32.mrb[0].mxu0
  %v2059 = vpop.f32.mrb[0].mxu0
  %v2060 = vadd.f32 %v1455, %v2059
  %v2061 = vpop.f32.mrb[0].mxu0
  %2062 = vmatprep.mubr.bf16.mxu0 0
  %2063 = vmatmul.mubr.bf16.gmra.mrb[0].mxu0 %v1609
  %v2064 = vpop.f32.mrb[0].mxu0
  %v2065 = vadd.f32 %v1455, %v2064
  %v2066 = vpop.f32.mrb[0].mxu0
  %v2067 = vpop.f32.mrb[0].mxu0
  %v2068 = vadd.f32 %v1455, %v2067
  %v2069 = vpop.f32.mrb[0].mxu0
  %2070 = vmatprep.mubr.bf16.mxu0 0
  %2071 = vmatmul.mubr.bf16.gmra.mrb[0].mxu0 %v1612
  %v2072 = vpop.f32.mrb[0].mxu0
  %v2073 = vadd.f32 %v1455, %v2072
  %v2074 = vpop.f32.mrb[0].mxu0
  %v2075 = vpop.f32.mrb[0].mxu0
  %v2076 = vadd.f32 %v1455, %v2075
  %v2077 = vpop.f32.mrb[0].mxu0
  %2078 = vmatprep.mubr.bf16.mxu0 0
  %2079 = vmatmul.mubr.bf16.gmra.mrb[0].mxu0 %v1615
  %v2080 = vpop.f32.mrb[0].mxu0
  %v2081 = vadd.f32 %v1455, %v2080
  %v2082 = vpop.f32.mrb[0].mxu0
  %v2083 = vpop.f32.mrb[0].mxu0
  %v2084 = vadd.f32 %v1455, %v2083
  %v2085 = vpop.f32.mrb[0].mxu0
  %2086 = vmatprep.mubr.bf16.mxu0 0
  %2087 = vmatmul.mubr.bf16.gmra.mrb[0].mxu0 %v1618
  %v2088 = vpop.f32.mrb[0].mxu0
  %v2089 = vadd.f32 %v1455, %v2088
  %v2090 = vpop.f32.mrb[0].mxu0
  %v2091 = vpop.f32.mrb[0].mxu0
  %v2092 = vadd.f32 %v1455, %v2091
  %v2093 = vpop.f32.mrb[0].mxu0
  %2094 = vmatprep.mubr.bf16.mxu0 0
  %2095 = vmatmul.mubr.bf16.gmra.mrb[0].mxu0 %v1621
  %v2096 = vpop.f32.mrb[0].mxu0
  %v2097 = vadd.f32 %v1455, %v2096
  %v2098 = vpop.f32.mrb[0].mxu0
  %v2099 = vpop.f32.mrb[0].mxu0
  %v2100 = vadd.f32 %v1455, %v2099
  %v2101 = vpop.f32.mrb[0].mxu0
  %2102 = vmatprep.mubr.bf16.mxu0 0
  %2103 = vmatmul.mubr.bf16.gmra.mrb[0].mxu0 %v1624
  %v2104 = vpop.f32.mrb[0].mxu0
  %v2105 = vadd.f32 %v1455, %v2104
  %v2106 = vpop.f32.mrb[0].mxu0
  %v2107 = vpop.f32.mrb[0].mxu0
  %v2108 = vadd.f32 %v1455, %v2107
  %v2109 = vpop.f32.mrb[0].mxu0
  %2110 = vmatprep.mubr.bf16.mxu0 0
  %2111 = vmatmul.mubr.bf16.gmra.mrb[0].mxu0 %v1627
  %v2112 = vpop.f32.mrb[0].mxu0
  %v2113 = vadd.f32 %v1455, %v2112
  %v2114 = vpop.f32.mrb[0].mxu0
  %v2115 = vpop.f32.mrb[0].mxu0
  %v2116 = vadd.f32 %v1455, %v2115
  %v2117 = vpop.f32.mrb[0].mxu0
  %2118 = vmatprep.mubr.bf16.mxu0 0
  %2119 = vmatmul.mubr.bf16.gmra.mrb[0].mxu0 %v1630
  %v2120 = vpop.f32.mrb[0].mxu0
  %v2121 = vadd.f32 %v1455, %v2120
  %v2122 = vpop.f32.mrb[0].mxu0
  %v2123 = vpop.f32.mrb[0].mxu0
  %v2124 = vadd.f32 %v1455, %v2123
  %v2125 = vpop.f32.mrb[0].mxu0
  %2126 = vmatprep.mubr.bf16.mxu0 0
  %2127 = vmatmul.mubr.bf16.gmra.mrb[0].mxu0 %v1633
  %v2128 = vpop.f32.mrb[0].mxu0
  %v2129 = vadd.f32 %v1455, %v2128
  %v2130 = vpop.f32.mrb[0].mxu0
  %v2131 = vpop.f32.mrb[0].mxu0
  %v2132 = vadd.f32 %v1455, %v2131
  %v2133 = vpop.f32.mrb[0].mxu0
  %2134 = vmatprep.mubr.bf16.mxu0 0
  %2135 = vmatmul.mubr.bf16.gmra.mrb[0].mxu0 %v1636
  %v2136 = vpop.f32.mrb[0].mxu0
  %v2137 = vadd.f32 %v1455, %v2136
  %v2138 = vpop.f32.mrb[0].mxu0
  %v2139 = vpop.f32.mrb[0].mxu0
  %v2140 = vadd.f32 %v1455, %v2139
  %v2141 = vpop.f32.mrb[0].mxu0
  %2142 = vmatprep.mubr.bf16.mxu0 0
  %2143 = vmatmul.mubr.bf16.gmra.mrb[0].mxu0 %v1639
  %v2144 = vpop.f32.mrb[0].mxu0
  %v2145 = vadd.f32 %v1455, %v2144
  %v2146 = vpop.f32.mrb[0].mxu0
  %v2147 = vpop.f32.mrb[0].mxu0
  %v2148 = vadd.f32 %v1455, %v2147
  %v2149 = vpop.f32.mrb[0].mxu0
  %2150 = vmatprep.mubr.bf16.mxu0 0
  %2151 = vmatmul.mubr.bf16.gmra.mrb[0].mxu0 %v1642
  %v2152 = vpop.f32.mrb[0].mxu0
  %v2153 = vadd.f32 %v1455, %v2152
  %v2154 = vpop.f32.mrb[0].mxu0
  %v2155 = vpop.f32.mrb[0].mxu0
  %v2156 = vadd.f32 %v1455, %v2155
  %v2157 = vpop.f32.mrb[0].mxu0
  %2158 = vmatprep.mubr.bf16.mxu0 0
  %2159 = vmatmul.mubr.bf16.gmra.mrb[0].mxu0 %v1645
  %v2160 = vpop.f32.mrb[0].mxu0
  %v2161 = vadd.f32 %v1455, %v2160
  %v2162 = vpop.f32.mrb[0].mxu0
  %v2163 = vpop.f32.mrb[0].mxu0
  %v2164 = vadd.f32 %v1455, %v2163
  %v2165 = vpop.f32.mrb[0].mxu0
  %2166 = vmatprep.mubr.bf16.mxu0 0
  %2167 = vmatmul.mubr.bf16.gmra.mrb[0].mxu0 %v1648
  %v2168 = vpop.f32.mrb[0].mxu0
  %v2169 = vadd.f32 %v1455, %v2168
  %v2170 = vpop.f32.mrb[0].mxu0
  %v2171 = vpop.f32.mrb[0].mxu0
  %v2172 = vadd.f32 %v1455, %v2171
  %v2173 = vpop.f32.mrb[0].mxu0
  %2174 = vmatprep.mubr.bf16.mxu0 0
  %2175 = vmatmul.mubr.bf16.gmra.mrb[0].mxu0 %v1651
  %v2176 = vpop.f32.mrb[0].mxu0
  %v2177 = vadd.f32 %v1455, %v2176
  %v2178 = vpop.f32.mrb[0].mxu0
  %v2179 = vpop.f32.mrb[0].mxu0
  %v2180 = vadd.f32 %v1455, %v2179
  %v2181 = vpop.f32.mrb[0].mxu0
  %2182 = vmatprep.mubr.bf16.mxu0 0
  %2183 = vmatmul.mubr.bf16.gmra.mrb[0].mxu0 %v1654
  %v2184 = vpop.f32.mrb[0].mxu0
  %v2185 = vadd.f32 %v1455, %v2184
  %v2186 = vpop.f32.mrb[0].mxu0
  %v2187 = vpop.f32.mrb[0].mxu0
  %v2188 = vadd.f32 %v1455, %v2187
  %v2189 = vpop.f32.mrb[0].mxu0
  %2190 = vmatprep.mubr.bf16.mxu0 0
  %2191 = vmatmul.mubr.bf16.gmra.mrb[0].mxu0 %v1657
  %v2192 = vpop.f32.mrb[0].mxu0
  %v2193 = vadd.f32 %v1455, %v2192
  %v2194 = vpop.f32.mrb[0].mxu0
  %v2195 = vpop.f32.mrb[0].mxu0
  %v2196 = vadd.f32 %v1455, %v2195
  %v2197 = vpop.f32.mrb[0].mxu0
  %2198 = vmatprep.mubr.bf16.mxu0 0
  %2199 = vmatmul.mubr.bf16.gmra.mrb[0].mxu0 %v1660
  %v2200 = vpop.f32.mrb[0].mxu0
  %v2201 = vadd.f32 %v1455, %v2200
  %v2202 = vpop.f32.mrb[0].mxu0
  %v2203 = vpop.f32.mrb[0].mxu0
  %v2204 = vadd.f32 %v1455, %v2203
  %v2205 = vpop.f32.mrb[0].mxu0
  %2206 = vdwg.mxu0
  %v2207 = vmax.f32 %v1697, 0.0
  %v2208 = vmax.f32 %v1700, 0.0
  %v2209 = vmax.f32 %v1705, 0.0
  %v2210 = vmax.f32 %v1708, 0.0
  %v2211 = vmax.f32 %v1713, 0.0
  %v2212 = vmax.f32 %v1716, 0.0
  %v2213 = vmax.f32 %v1721, 0.0
  %v2214 = vmax.f32 %v1724, 0.0
  %v2215 = vmax.f32 %v1729, 0.0
  %v2216 = vmax.f32 %v1732, 0.0
  %v2217 = vmax.f32 %v1737, 0.0
  %v2218 = vmax.f32 %v1740, 0.0
  %v2219 = vmax.f32 %v1745, 0.0
  %v2220 = vmax.f32 %v1748, 0.0
  %v2221 = vmax.f32 %v1753, 0.0
  %v2222 = vmax.f32 %v1756, 0.0
  %v2223 = vmax.f32 %v1761, 0.0
  %v2224 = vmax.f32 %v1764, 0.0
  %v2225 = vmax.f32 %v1769, 0.0
  %v2226 = vmax.f32 %v1772, 0.0
  %v2227 = vmax.f32 %v1777, 0.0
  %v2228 = vmax.f32 %v1780, 0.0
  %v2229 = vmax.f32 %v1785, 0.0
  %v2230 = vmax.f32 %v1788, 0.0
  %v2231 = vmax.f32 %v1793, 0.0
  %v2232 = vmax.f32 %v1796, 0.0
  %v2233 = vmax.f32 %v1801, 0.0
  %v2234 = vmax.f32 %v1804, 0.0
  %v2235 = vmax.f32 %v1809, 0.0
  %v2236 = vmax.f32 %v1812, 0.0
  %v2237 = vmax.f32 %v1817, 0.0
  %v2238 = vmax.f32 %v1820, 0.0
  %v2239 = vmax.f32 %v1825, 0.0
  %v2240 = vmax.f32 %v1828, 0.0
  %v2241 = vmax.f32 %v1833, 0.0
  %v2242 = vmax.f32 %v1836, 0.0
  %v2243 = vmax.f32 %v1841, 0.0
  %v2244 = vmax.f32 %v1844, 0.0
  %v2245 = vmax.f32 %v1849, 0.0
  %v2246 = vmax.f32 %v1852, 0.0
  %v2247 = vmax.f32 %v1857, 0.0
  %v2248 = vmax.f32 %v1860, 0.0
  %v2249 = vmax.f32 %v1865, 0.0
  %v2250 = vmax.f32 %v1868, 0.0
  %v2251 = vmax.f32 %v1873, 0.0
  %v2252 = vmax.f32 %v1876, 0.0
  %v2253 = vmax.f32 %v1881, 0.0
  %v2254 = vmax.f32 %v1884, 0.0
  %v2255 = vmax.f32 %v1889, 0.0
  %v2256 = vmax.f32 %v1892, 0.0
  %v2257 = vmax.f32 %v1897, 0.0
  %v2258 = vmax.f32 %v1900, 0.0
  %v2259 = vmax.f32 %v1905, 0.0
  %v2260 = vmax.f32 %v1908, 0.0
  %v2261 = vmax.f32 %v1913, 0.0
  %v2262 = vmax.f32 %v1916, 0.0
  %v2263 = vmax.f32 %v1921, 0.0
  %v2264 = vmax.f32 %v1924, 0.0
  %v2265 = vmax.f32 %v1929, 0.0
  %v2266 = vmax.f32 %v1932, 0.0
  %v2267 = vmax.f32 %v1937, 0.0
  %v2268 = vmax.f32 %v1940, 0.0
  %v2269 = vmax.f32 %v1945, 0.0
  %v2270 = vmax.f32 %v1948, 0.0
  %v2271 = vmax.f32 %v1953, 0.0
  %v2272 = vmax.f32 %v1956, 0.0
  %v2273 = vmax.f32 %v1961, 0.0
  %v2274 = vmax.f32 %v1964, 0.0
  %v2275 = vmax.f32 %v1969, 0.0
  %v2276 = vmax.f32 %v1972, 0.0
  %v2277 = vmax.f32 %v1977, 0.0
  %v2278 = vmax.f32 %v1980, 0.0
  %v2279 = vmax.f32 %v1985, 0.0
  %v2280 = vmax.f32 %v1988, 0.0
  %v2281 = vmax.f32 %v1993, 0.0
  %v2282 = vmax.f32 %v1996, 0.0
  %v2283 = vmax.f32 %v2001, 0.0
  %v2284 = vmax.f32 %v2004, 0.0
  %v2285 = vmax.f32 %v2009, 0.0
  %v2286 = vmax.f32 %v2012, 0.0
  %v2287 = vmax.f32 %v2017, 0.0
  %v2288 = vmax.f32 %v2020, 0.0
  %v2289 = vmax.f32 %v2025, 0.0
  %v2290 = vmax.f32 %v2028, 0.0
  %v2291 = vmax.f32 %v2033, 0.0
  %v2292 = vmax.f32 %v2036, 0.0
  %v2293 = vmax.f32 %v2041, 0.0
  %v2294 = vmax.f32 %v2044, 0.0
  %v2295 = vmax.f32 %v2049, 0.0
  %v2296 = vmax.f32 %v2052, 0.0
  %v2297 = vmax.f32 %v2057, 0.0
  %v2298 = vmax.f32 %v2060, 0.0
  %v2299 = vmax.f32 %v2065, 0.0
  %v2300 = vmax.f32 %v2068, 0.0
  %v2301 = vmax.f32 %v2073, 0.0
  %v2302 = vmax.f32 %v2076, 0.0
  %v2303 = vmax.f32 %v2081, 0.0
  %v2304 = vmax.f32 %v2084, 0.0
  %v2305 = vmax.f32 %v2089, 0.0
  %v2306 = vmax.f32 %v2092, 0.0
  %v2307 = vmax.f32 %v2097, 0.0
  %v2308 = vmax.f32 %v2100, 0.0
  %v2309 = vmax.f32 %v2105, 0.0
  %v2310 = vmax.f32 %v2108, 0.0
  %v2311 = vmax.f32 %v2113, 0.0
  %v2312 = vmax.f32 %v2116, 0.0
  %v2313 = vmax.f32 %v2121, 0.0
  %v2314 = vmax.f32 %v2124, 0.0
  %v2315 = vmax.f32 %v2129, 0.0
  %v2316 = vmax.f32 %v2132, 0.0
  %v2317 = vmax.f32 %v2137, 0.0
  %v2318 = vmax.f32 %v2140, 0.0
  %v2319 = vmax.f32 %v2145, 0.0
  %v2320 = vmax.f32 %v2148, 0.0
  %v2321 = vmax.f32 %v2153, 0.0
  %v2322 = vmax.f32 %v2156, 0.0
  %v2323 = vmax.f32 %v2161, 0.0
  %v2324 = vmax.f32 %v2164, 0.0
  %v2325 = vmax.f32 %v2169, 0.0
  %v2326 = vmax.f32 %v2172, 0.0
  %v2327 = vmax.f32 %v2177, 0.0
  %v2328 = vmax.f32 %v2180, 0.0
  %v2329 = vmax.f32 %v2185, 0.0
  %v2330 = vmax.f32 %v2188, 0.0
  %v2331 = vmax.f32 %v2193, 0.0
  %v2332 = vmax.f32 %v2196, 0.0
  %v2333 = vmax.f32 %v2201, 0.0
  %v2334 = vmax.f32 %v2204, 0.0
  %v2335 = vld [vmem:[%s5] sm:$0x1]
  %v2337 = vlaneseq
  %v2338 = vshrl.u32 %v2337, 7
  %v2339 = vsub.s32 0, %v2338
  %v2340 = vrot.slane %v2335, %v2339
  %v2342 = vmul.f32 %v2207, %v2340
  %v2343 = vmul.f32 %v2208, %v2340
  %v2344 = vmul.f32 %v2209, %v2340
  %v2345 = vmul.f32 %v2210, %v2340
  %v2346 = vmul.f32 %v2211, %v2340
  %v2347 = vmul.f32 %v2212, %v2340
  %v2348 = vmul.f32 %v2213, %v2340
  %v2349 = vmul.f32 %v2214, %v2340
  %v2350 = vmul.f32 %v2215, %v2340
  %v2351 = vmul.f32 %v2216, %v2340
  %v2352 = vmul.f32 %v2217, %v2340
  %v2353 = vmul.f32 %v2218, %v2340
  %v2354 = vmul.f32 %v2219, %v2340
  %v2355 = vmul.f32 %v2220, %v2340
  %v2356 = vmul.f32 %v2221, %v2340
  %v2357 = vmul.f32 %v2222, %v2340
  %v2358 = vmul.f32 %v2223, %v2340
  %v2359 = vmul.f32 %v2224, %v2340
  %v2360 = vmul.f32 %v2225, %v2340
  %v2361 = vmul.f32 %v2226, %v2340
  %v2362 = vmul.f32 %v2227, %v2340
  %v2363 = vmul.f32 %v2228, %v2340
  %v2364 = vmul.f32 %v2229, %v2340
  %v2365 = vmul.f32 %v2230, %v2340
  %v2366 = vmul.f32 %v2231, %v2340
  %v2367 = vmul.f32 %v2232, %v2340
  %v2368 = vmul.f32 %v2233, %v2340
  %v2369 = vmul.f32 %v2234, %v2340
  %v2370 = vmul.f32 %v2235, %v2340
  %v2371 = vmul.f32 %v2236, %v2340
  %v2372 = vmul.f32 %v2237, %v2340
  %v2373 = vmul.f32 %v2238, %v2340
  %v2374 = vmul.f32 %v2239, %v2340
  %v2375 = vmul.f32 %v2240, %v2340
  %v2376 = vmul.f32 %v2241, %v2340
  %v2377 = vmul.f32 %v2242, %v2340
  %v2378 = vmul.f32 %v2243, %v2340
  %v2379 = vmul.f32 %v2244, %v2340
  %v2380 = vmul.f32 %v2245, %v2340
  %v2381 = vmul.f32 %v2246, %v2340
  %v2382 = vmul.f32 %v2247, %v2340
  %v2383 = vmul.f32 %v2248, %v2340
  %v2384 = vmul.f32 %v2249, %v2340
  %v2385 = vmul.f32 %v2250, %v2340
  %v2386 = vmul.f32 %v2251, %v2340
  %v2387 = vmul.f32 %v2252, %v2340
  %v2388 = vmul.f32 %v2253, %v2340
  %v2389 = vmul.f32 %v2254, %v2340
  %v2390 = vmul.f32 %v2255, %v2340
  %v2391 = vmul.f32 %v2256, %v2340
  %v2392 = vmul.f32 %v2257, %v2340
  %v2393 = vmul.f32 %v2258, %v2340
  %v2394 = vmul.f32 %v2259, %v2340
  %v2395 = vmul.f32 %v2260, %v2340
  %v2396 = vmul.f32 %v2261, %v2340
  %v2397 = vmul.f32 %v2262, %v2340
  %v2398 = vmul.f32 %v2263, %v2340
  %v2399 = vmul.f32 %v2264, %v2340
  %v2400 = vmul.f32 %v2265, %v2340
  %v2401 = vmul.f32 %v2266, %v2340
  %v2402 = vmul.f32 %v2267, %v2340
  %v2403 = vmul.f32 %v2268, %v2340
  %v2404 = vmul.f32 %v2269, %v2340
  %v2405 = vmul.f32 %v2270, %v2340
  %v2406 = vmul.f32 %v2271, %v2340
  %v2407 = vmul.f32 %v2272, %v2340
  %v2408 = vmul.f32 %v2273, %v2340
  %v2409 = vmul.f32 %v2274, %v2340
  %v2410 = vmul.f32 %v2275, %v2340
  %v2411 = vmul.f32 %v2276, %v2340
  %v2412 = vmul.f32 %v2277, %v2340
  %v2413 = vmul.f32 %v2278, %v2340
  %v2414 = vmul.f32 %v2279, %v2340
  %v2415 = vmul.f32 %v2280, %v2340
  %v2416 = vmul.f32 %v2281, %v2340
  %v2417 = vmul.f32 %v2282, %v2340
  %v2418 = vmul.f32 %v2283, %v2340
  %v2419 = vmul.f32 %v2284, %v2340
  %v2420 = vmul.f32 %v2285, %v2340
  %v2421 = vmul.f32 %v2286, %v2340
  %v2422 = vmul.f32 %v2287, %v2340
  %v2423 = vmul.f32 %v2288, %v2340
  %v2424 = vmul.f32 %v2289, %v2340
  %v2425 = vmul.f32 %v2290, %v2340
  %v2426 = vmul.f32 %v2291, %v2340
  %v2427 = vmul.f32 %v2292, %v2340
  %v2428 = vmul.f32 %v2293, %v2340
  %v2429 = vmul.f32 %v2294, %v2340
  %v2430 = vmul.f32 %v2295, %v2340
  %v2431 = vmul.f32 %v2296, %v2340
  %v2432 = vmul.f32 %v2297, %v2340
  %v2433 = vmul.f32 %v2298, %v2340
  %v2434 = vmul.f32 %v2299, %v2340
  %v2435 = vmul.f32 %v2300, %v2340
  %v2436 = vmul.f32 %v2301, %v2340
  %v2437 = vmul.f32 %v2302, %v2340
  %v2438 = vmul.f32 %v2303, %v2340
  %v2439 = vmul.f32 %v2304, %v2340
  %v2440 = vmul.f32 %v2305, %v2340
  %v2441 = vmul.f32 %v2306, %v2340
  %v2442 = vmul.f32 %v2307, %v2340
  %v2443 = vmul.f32 %v2308, %v2340
  %v2444 = vmul.f32 %v2309, %v2340
  %v2445 = vmul.f32 %v2310, %v2340
  %v2446 = vmul.f32 %v2311, %v2340
  %v2447 = vmul.f32 %v2312, %v2340
  %v2448 = vmul.f32 %v2313, %v2340
  %v2449 = vmul.f32 %v2314, %v2340
  %v2450 = vmul.f32 %v2315, %v2340
  %v2451 = vmul.f32 %v2316, %v2340
  %v2452 = vmul.f32 %v2317, %v2340
  %v2453 = vmul.f32 %v2318, %v2340
  %v2454 = vmul.f32 %v2319, %v2340
  %v2455 = vmul.f32 %v2320, %v2340
  %v2456 = vmul.f32 %v2321, %v2340
  %v2457 = vmul.f32 %v2322, %v2340
  %v2458 = vmul.f32 %v2323, %v2340
  %v2459 = vmul.f32 %v2324, %v2340
  %v2460 = vmul.f32 %v2325, %v2340
  %v2461 = vmul.f32 %v2326, %v2340
  %v2462 = vmul.f32 %v2327, %v2340
  %v2463 = vmul.f32 %v2328, %v2340
  %v2464 = vmul.f32 %v2329, %v2340
  %v2465 = vmul.f32 %v2330, %v2340
  %v2466 = vmul.f32 %v2331, %v2340
  %v2467 = vmul.f32 %v2332, %v2340
  %v2468 = vmul.f32 %v2333, %v2340
  %v2469 = vmul.f32 %v2334, %v2340
  %v2470 = vsel %vm1469, %v2342, 0.0
  %2471 = vadd.xlane.f32.xlu0 %v2470
  %v2472 = vpop.xlane.xlu0 %2471
  %v2473 = vsel %vm1469, %v2343, 0.0
  %2474 = vadd.xlane.f32.xlu0 %v2473
  %v2475 = vpop.xlane.xlu0 %2474
  %v2476 = vsel %vm1469, %v2344, 0.0
  %2477 = vadd.xlane.f32.xlu0 %v2476
  %v2478 = vpop.xlane.xlu0 %2477
  %v2479 = vsel %vm1469, %v2345, 0.0
  %2480 = vadd.xlane.f32.xlu0 %v2479
  %v2481 = vpop.xlane.xlu0 %2480
  %v2482 = vsel %vm1469, %v2346, 0.0
  %2483 = vadd.xlane.f32.xlu0 %v2482
  %v2484 = vpop.xlane.xlu0 %2483
  %v2485 = vsel %vm1469, %v2347, 0.0
  %2486 = vadd.xlane.f32.xlu0 %v2485
  %v2487 = vpop.xlane.xlu0 %2486
  %v2488 = vsel %vm1469, %v2348, 0.0
  %2489 = vadd.xlane.f32.xlu0 %v2488
  %v2490 = vpop.xlane.xlu0 %2489
  %v2491 = vsel %vm1469, %v2349, 0.0
  %2492 = vadd.xlane.f32.xlu0 %v2491
  %v2493 = vpop.xlane.xlu0 %2492
  %v2494 = vsel %vm1469, %v2350, 0.0
  %2495 = vadd.xlane.f32.xlu0 %v2494
  %v2496 = vpop.xlane.xlu0 %2495
  %v2497 = vsel %vm1469, %v2351, 0.0
  %2498 = vadd.xlane.f32.xlu0 %v2497
  %v2499 = vpop.xlane.xlu0 %2498
  %v2500 = vsel %vm1469, %v2352, 0.0
  %2501 = vadd.xlane.f32.xlu0 %v2500
  %v2502 = vpop.xlane.xlu0 %2501
  %v2503 = vsel %vm1469, %v2353, 0.0
  %2504 = vadd.xlane.f32.xlu0 %v2503
  %v2505 = vpop.xlane.xlu0 %2504
  %v2506 = vsel %vm1469, %v2354, 0.0
  %2507 = vadd.xlane.f32.xlu0 %v2506
  %v2508 = vpop.xlane.xlu0 %2507
  %v2509 = vsel %vm1469, %v2355, 0.0
  %2510 = vadd.xlane.f32.xlu0 %v2509
  %v2511 = vpop.xlane.xlu0 %2510
  %v2512 = vsel %vm1469, %v2356, 0.0
  %2513 = vadd.xlane.f32.xlu0 %v2512
  %v2514 = vpop.xlane.xlu0 %2513
  %v2515 = vsel %vm1469, %v2357, 0.0
  %2516 = vadd.xlane.f32.xlu0 %v2515
  %v2517 = vpop.xlane.xlu0 %2516
  %v2518 = vsel %vm1469, %v2358, 0.0
  %2519 = vadd.xlane.f32.xlu0 %v2518
  %v2520 = vpop.xlane.xlu0 %2519
  %v2521 = vsel %vm1469, %v2359, 0.0
  %2522 = vadd.xlane.f32.xlu0 %v2521
  %v2523 = vpop.xlane.xlu0 %2522
  %v2524 = vsel %vm1469, %v2360, 0.0
  %2525 = vadd.xlane.f32.xlu0 %v2524
  %v2526 = vpop.xlane.xlu0 %2525
  %v2527 = vsel %vm1469, %v2361, 0.0
  %2528 = vadd.xlane.f32.xlu0 %v2527
  %v2529 = vpop.xlane.xlu0 %2528
  %v2530 = vsel %vm1469, %v2362, 0.0
  %2531 = vadd.xlane.f32.xlu0 %v2530
  %v2532 = vpop.xlane.xlu0 %2531
  %v2533 = vsel %vm1469, %v2363, 0.0
  %2534 = vadd.xlane.f32.xlu0 %v2533
  %v2535 = vpop.xlane.xlu0 %2534
  %v2536 = vsel %vm1469, %v2364, 0.0
  %2537 = vadd.xlane.f32.xlu0 %v2536
  %v2538 = vpop.xlane.xlu0 %2537
  %v2539 = vsel %vm1469, %v2365, 0.0
  %2540 = vadd.xlane.f32.xlu0 %v2539
  %v2541 = vpop.xlane.xlu0 %2540
  %v2542 = vsel %vm1469, %v2366, 0.0
  %2543 = vadd.xlane.f32.xlu0 %v2542
  %v2544 = vpop.xlane.xlu0 %2543
  %v2545 = vsel %vm1469, %v2367, 0.0
  %2546 = vadd.xlane.f32.xlu0 %v2545
  %v2547 = vpop.xlane.xlu0 %2546
  %v2548 = vsel %vm1469, %v2368, 0.0
  %2549 = vadd.xlane.f32.xlu0 %v2548
  %v2550 = vpop.xlane.xlu0 %2549
  %v2551 = vsel %vm1469, %v2369, 0.0
  %2552 = vadd.xlane.f32.xlu0 %v2551
  %v2553 = vpop.xlane.xlu0 %2552
  %v2554 = vsel %vm1469, %v2370, 0.0
  %2555 = vadd.xlane.f32.xlu0 %v2554
  %v2556 = vpop.xlane.xlu0 %2555
  %v2557 = vsel %vm1469, %v2371, 0.0
  %2558 = vadd.xlane.f32.xlu0 %v2557
  %v2559 = vpop.xlane.xlu0 %2558
  %v2560 = vsel %vm1469, %v2372, 0.0
  %2561 = vadd.xlane.f32.xlu0 %v2560
  %v2562 = vpop.xlane.xlu0 %2561
  %v2563 = vsel %vm1469, %v2373, 0.0
  %2564 = vadd.xlane.f32.xlu0 %v2563
  %v2565 = vpop.xlane.xlu0 %2564
  %v2566 = vsel %vm1469, %v2374, 0.0
  %2567 = vadd.xlane.f32.xlu0 %v2566
  %v2568 = vpop.xlane.xlu0 %2567
  %v2569 = vsel %vm1469, %v2375, 0.0
  %2570 = vadd.xlane.f32.xlu0 %v2569
  %v2571 = vpop.xlane.xlu0 %2570
  %v2572 = vsel %vm1469, %v2376, 0.0
  %2573 = vadd.xlane.f32.xlu0 %v2572
  %v2574 = vpop.xlane.xlu0 %2573
  %v2575 = vsel %vm1469, %v2377, 0.0
  %2576 = vadd.xlane.f32.xlu0 %v2575
  %v2577 = vpop.xlane.xlu0 %2576
  %v2578 = vsel %vm1469, %v2378, 0.0
  %2579 = vadd.xlane.f32.xlu0 %v2578
  %v2580 = vpop.xlane.xlu0 %2579
  %v2581 = vsel %vm1469, %v2379, 0.0
  %2582 = vadd.xlane.f32.xlu0 %v2581
  %v2583 = vpop.xlane.xlu0 %2582
  %v2584 = vsel %vm1469, %v2380, 0.0
  %2585 = vadd.xlane.f32.xlu0 %v2584
  %v2586 = vpop.xlane.xlu0 %2585
  %v2587 = vsel %vm1469, %v2381, 0.0
  %2588 = vadd.xlane.f32.xlu0 %v2587
  %v2589 = vpop.xlane.xlu0 %2588
  %v2590 = vsel %vm1469, %v2382, 0.0
  %2591 = vadd.xlane.f32.xlu0 %v2590
  %v2592 = vpop.xlane.xlu0 %2591
  %v2593 = vsel %vm1469, %v2383, 0.0
  %2594 = vadd.xlane.f32.xlu0 %v2593
  %v2595 = vpop.xlane.xlu0 %2594
  %v2596 = vsel %vm1469, %v2384, 0.0
  %2597 = vadd.xlane.f32.xlu0 %v2596
  %v2598 = vpop.xlane.xlu0 %2597
  %v2599 = vsel %vm1469, %v2385, 0.0
  %2600 = vadd.xlane.f32.xlu0 %v2599
  %v2601 = vpop.xlane.xlu0 %2600
  %v2602 = vsel %vm1469, %v2386, 0.0
  %2603 = vadd.xlane.f32.xlu0 %v2602
  %v2604 = vpop.xlane.xlu0 %2603
  %v2605 = vsel %vm1469, %v2387, 0.0
  %2606 = vadd.xlane.f32.xlu0 %v2605
  %v2607 = vpop.xlane.xlu0 %2606
  %v2608 = vsel %vm1469, %v2388, 0.0
  %2609 = vadd.xlane.f32.xlu0 %v2608
  %v2610 = vpop.xlane.xlu0 %2609
  %v2611 = vsel %vm1469, %v2389, 0.0
  %2612 = vadd.xlane.f32.xlu0 %v2611
  %v2613 = vpop.xlane.xlu0 %2612
  %v2614 = vsel %vm1469, %v2390, 0.0
  %2615 = vadd.xlane.f32.xlu0 %v2614
  %v2616 = vpop.xlane.xlu0 %2615
  %v2617 = vsel %vm1469, %v2391, 0.0
  %2618 = vadd.xlane.f32.xlu0 %v2617
  %v2619 = vpop.xlane.xlu0 %2618
  %v2620 = vsel %vm1469, %v2392, 0.0
  %2621 = vadd.xlane.f32.xlu0 %v2620
  %v2622 = vpop.xlane.xlu0 %2621
  %v2623 = vsel %vm1469, %v2393, 0.0
  %2624 = vadd.xlane.f32.xlu0 %v2623
  %v2625 = vpop.xlane.xlu0 %2624
  %v2626 = vsel %vm1469, %v2394, 0.0
  %2627 = vadd.xlane.f32.xlu0 %v2626
  %v2628 = vpop.xlane.xlu0 %2627
  %v2629 = vsel %vm1469, %v2395, 0.0
  %2630 = vadd.xlane.f32.xlu0 %v2629
  %v2631 = vpop.xlane.xlu0 %2630
  %v2632 = vsel %vm1469, %v2396, 0.0
  %2633 = vadd.xlane.f32.xlu0 %v2632
  %v2634 = vpop.xlane.xlu0 %2633
  %v2635 = vsel %vm1469, %v2397, 0.0
  %2636 = vadd.xlane.f32.xlu0 %v2635
  %v2637 = vpop.xlane.xlu0 %2636
  %v2638 = vsel %vm1469, %v2398, 0.0
  %2639 = vadd.xlane.f32.xlu0 %v2638
  %v2640 = vpop.xlane.xlu0 %2639
  %v2641 = vsel %vm1469, %v2399, 0.0
  %2642 = vadd.xlane.f32.xlu0 %v2641
  %v2643 = vpop.xlane.xlu0 %2642
  %v2644 = vsel %vm1469, %v2400, 0.0
  %2645 = vadd.xlane.f32.xlu0 %v2644
  %v2646 = vpop.xlane.xlu0 %2645
  %v2647 = vsel %vm1469, %v2401, 0.0
  %2648 = vadd.xlane.f32.xlu0 %v2647
  %v2649 = vpop.xlane.xlu0 %2648
  %v2650 = vsel %vm1469, %v2402, 0.0
  %2651 = vadd.xlane.f32.xlu0 %v2650
  %v2652 = vpop.xlane.xlu0 %2651
  %v2653 = vsel %vm1469, %v2403, 0.0
  %2654 = vadd.xlane.f32.xlu0 %v2653
  %v2655 = vpop.xlane.xlu0 %2654
  %v2656 = vsel %vm1469, %v2404, 0.0
  %2657 = vadd.xlane.f32.xlu0 %v2656
  %v2658 = vpop.xlane.xlu0 %2657
  %v2659 = vsel %vm1469, %v2405, 0.0
  %2660 = vadd.xlane.f32.xlu0 %v2659
  %v2661 = vpop.xlane.xlu0 %2660
  %v2662 = vsel %vm1469, %v2406, 0.0
  %2663 = vadd.xlane.f32.xlu0 %v2662
  %v2664 = vpop.xlane.xlu0 %2663
  %v2665 = vsel %vm1469, %v2407, 0.0
  %2666 = vadd.xlane.f32.xlu0 %v2665
  %v2667 = vpop.xlane.xlu0 %2666
  %v2668 = vsel %vm1469, %v2408, 0.0
  %2669 = vadd.xlane.f32.xlu0 %v2668
  %v2670 = vpop.xlane.xlu0 %2669
  %v2671 = vsel %vm1469, %v2409, 0.0
  %2672 = vadd.xlane.f32.xlu0 %v2671
  %v2673 = vpop.xlane.xlu0 %2672
  %v2674 = vsel %vm1469, %v2410, 0.0
  %2675 = vadd.xlane.f32.xlu0 %v2674
  %v2676 = vpop.xlane.xlu0 %2675
  %v2677 = vsel %vm1469, %v2411, 0.0
  %2678 = vadd.xlane.f32.xlu0 %v2677
  %v2679 = vpop.xlane.xlu0 %2678
  %v2680 = vsel %vm1469, %v2412, 0.0
  %2681 = vadd.xlane.f32.xlu0 %v2680
  %v2682 = vpop.xlane.xlu0 %2681
  %v2683 = vsel %vm1469, %v2413, 0.0
  %2684 = vadd.xlane.f32.xlu0 %v2683
  %v2685 = vpop.xlane.xlu0 %2684
  %v2686 = vsel %vm1469, %v2414, 0.0
  %2687 = vadd.xlane.f32.xlu0 %v2686
  %v2688 = vpop.xlane.xlu0 %2687
  %v2689 = vsel %vm1469, %v2415, 0.0
  %2690 = vadd.xlane.f32.xlu0 %v2689
  %v2691 = vpop.xlane.xlu0 %2690
  %v2692 = vsel %vm1469, %v2416, 0.0
  %2693 = vadd.xlane.f32.xlu0 %v2692
  %v2694 = vpop.xlane.xlu0 %2693
  %v2695 = vsel %vm1469, %v2417, 0.0
  %2696 = vadd.xlane.f32.xlu0 %v2695
  %v2697 = vpop.xlane.xlu0 %2696
  %v2698 = vsel %vm1469, %v2418, 0.0
  %2699 = vadd.xlane.f32.xlu0 %v2698
  %v2700 = vpop.xlane.xlu0 %2699
  %v2701 = vsel %vm1469, %v2419, 0.0
  %2702 = vadd.xlane.f32.xlu0 %v2701
  %v2703 = vpop.xlane.xlu0 %2702
  %v2704 = vsel %vm1469, %v2420, 0.0
  %2705 = vadd.xlane.f32.xlu0 %v2704
  %v2706 = vpop.xlane.xlu0 %2705
  %v2707 = vsel %vm1469, %v2421, 0.0
  %2708 = vadd.xlane.f32.xlu0 %v2707
  %v2709 = vpop.xlane.xlu0 %2708
  %v2710 = vsel %vm1469, %v2422, 0.0
  %2711 = vadd.xlane.f32.xlu0 %v2710
  %v2712 = vpop.xlane.xlu0 %2711
  %v2713 = vsel %vm1469, %v2423, 0.0
  %2714 = vadd.xlane.f32.xlu0 %v2713
  %v2715 = vpop.xlane.xlu0 %2714
  %v2716 = vsel %vm1469, %v2424, 0.0
  %2717 = vadd.xlane.f32.xlu0 %v2716
  %v2718 = vpop.xlane.xlu0 %2717
  %v2719 = vsel %vm1469, %v2425, 0.0
  %2720 = vadd.xlane.f32.xlu0 %v2719
  %v2721 = vpop.xlane.xlu0 %2720
  %v2722 = vsel %vm1469, %v2426, 0.0
  %2723 = vadd.xlane.f32.xlu0 %v2722
  %v2724 = vpop.xlane.xlu0 %2723
  %v2725 = vsel %vm1469, %v2427, 0.0
  %2726 = vadd.xlane.f32.xlu0 %v2725
  %v2727 = vpop.xlane.xlu0 %2726
  %v2728 = vsel %vm1469, %v2428, 0.0
  %2729 = vadd.xlane.f32.xlu0 %v2728
  %v2730 = vpop.xlane.xlu0 %2729
  %v2731 = vsel %vm1469, %v2429, 0.0
  %2732 = vadd.xlane.f32.xlu0 %v2731
  %v2733 = vpop.xlane.xlu0 %2732
  %v2734 = vsel %vm1469, %v2430, 0.0
  %2735 = vadd.xlane.f32.xlu0 %v2734
  %v2736 = vpop.xlane.xlu0 %2735
  %v2737 = vsel %vm1469, %v2431, 0.0
  %2738 = vadd.xlane.f32.xlu0 %v2737
  %v2739 = vpop.xlane.xlu0 %2738
  %v2740 = vsel %vm1469, %v2432, 0.0
  %2741 = vadd.xlane.f32.xlu0 %v2740
  %v2742 = vpop.xlane.xlu0 %2741
  %v2743 = vsel %vm1469, %v2433, 0.0
  %2744 = vadd.xlane.f32.xlu0 %v2743
  %v2745 = vpop.xlane.xlu0 %2744
  %v2746 = vsel %vm1469, %v2434, 0.0
  %2747 = vadd.xlane.f32.xlu0 %v2746
  %v2748 = vpop.xlane.xlu0 %2747
  %v2749 = vsel %vm1469, %v2435, 0.0
  %2750 = vadd.xlane.f32.xlu0 %v2749
  %v2751 = vpop.xlane.xlu0 %2750
  %v2752 = vsel %vm1469, %v2436, 0.0
  %2753 = vadd.xlane.f32.xlu0 %v2752
  %v2754 = vpop.xlane.xlu0 %2753
  %v2755 = vsel %vm1469, %v2437, 0.0
  %2756 = vadd.xlane.f32.xlu0 %v2755
  %v2757 = vpop.xlane.xlu0 %2756
  %v2758 = vsel %vm1469, %v2438, 0.0
  %2759 = vadd.xlane.f32.xlu0 %v2758
  %v2760 = vpop.xlane.xlu0 %2759
  %v2761 = vsel %vm1469, %v2439, 0.0
  %2762 = vadd.xlane.f32.xlu0 %v2761
  %v2763 = vpop.xlane.xlu0 %2762
  %v2764 = vsel %vm1469, %v2440, 0.0
  %2765 = vadd.xlane.f32.xlu0 %v2764
  %v2766 = vpop.xlane.xlu0 %2765
  %v2767 = vsel %vm1469, %v2441, 0.0
  %2768 = vadd.xlane.f32.xlu0 %v2767
  %v2769 = vpop.xlane.xlu0 %2768
  %v2770 = vsel %vm1469, %v2442, 0.0
  %2771 = vadd.xlane.f32.xlu0 %v2770
  %v2772 = vpop.xlane.xlu0 %2771
  %v2773 = vsel %vm1469, %v2443, 0.0
  %2774 = vadd.xlane.f32.xlu0 %v2773
  %v2775 = vpop.xlane.xlu0 %2774
  %v2776 = vsel %vm1469, %v2444, 0.0
  %2777 = vadd.xlane.f32.xlu0 %v2776
  %v2778 = vpop.xlane.xlu0 %2777
  %v2779 = vsel %vm1469, %v2445, 0.0
  %2780 = vadd.xlane.f32.xlu0 %v2779
  %v2781 = vpop.xlane.xlu0 %2780
  %v2782 = vsel %vm1469, %v2446, 0.0
  %2783 = vadd.xlane.f32.xlu0 %v2782
  %v2784 = vpop.xlane.xlu0 %2783
  %v2785 = vsel %vm1469, %v2447, 0.0
  %2786 = vadd.xlane.f32.xlu0 %v2785
  %v2787 = vpop.xlane.xlu0 %2786
  %v2788 = vsel %vm1469, %v2448, 0.0
  %2789 = vadd.xlane.f32.xlu0 %v2788
  %v2790 = vpop.xlane.xlu0 %2789
  %v2791 = vsel %vm1469, %v2449, 0.0
  %2792 = vadd.xlane.f32.xlu0 %v2791
  %v2793 = vpop.xlane.xlu0 %2792
  %v2794 = vsel %vm1469, %v2450, 0.0
  %2795 = vadd.xlane.f32.xlu0 %v2794
  %v2796 = vpop.xlane.xlu0 %2795
  %v2797 = vsel %vm1469, %v2451, 0.0
  %2798 = vadd.xlane.f32.xlu0 %v2797
  %v2799 = vpop.xlane.xlu0 %2798
  %v2800 = vsel %vm1469, %v2452, 0.0
  %2801 = vadd.xlane.f32.xlu0 %v2800
  %v2802 = vpop.xlane.xlu0 %2801
  %v2803 = vsel %vm1469, %v2453, 0.0
  %2804 = vadd.xlane.f32.xlu0 %v2803
  %v2805 = vpop.xlane.xlu0 %2804
  %v2806 = vsel %vm1469, %v2454, 0.0
  %2807 = vadd.xlane.f32.xlu0 %v2806
  %v2808 = vpop.xlane.xlu0 %2807
  %v2809 = vsel %vm1469, %v2455, 0.0
  %2810 = vadd.xlane.f32.xlu0 %v2809
  %v2811 = vpop.xlane.xlu0 %2810
  %v2812 = vsel %vm1469, %v2456, 0.0
  %2813 = vadd.xlane.f32.xlu0 %v2812
  %v2814 = vpop.xlane.xlu0 %2813
  %v2815 = vsel %vm1469, %v2457, 0.0
  %2816 = vadd.xlane.f32.xlu0 %v2815
  %v2817 = vpop.xlane.xlu0 %2816
  %v2818 = vsel %vm1469, %v2458, 0.0
  %2819 = vadd.xlane.f32.xlu0 %v2818
  %v2820 = vpop.xlane.xlu0 %2819
  %v2821 = vsel %vm1469, %v2459, 0.0
  %2822 = vadd.xlane.f32.xlu0 %v2821
  %v2823 = vpop.xlane.xlu0 %2822
  %v2824 = vsel %vm1469, %v2460, 0.0
  %2825 = vadd.xlane.f32.xlu0 %v2824
  %v2826 = vpop.xlane.xlu0 %2825
  %v2827 = vsel %vm1469, %v2461, 0.0
  %2828 = vadd.xlane.f32.xlu0 %v2827
  %v2829 = vpop.xlane.xlu0 %2828
  %v2830 = vsel %vm1469, %v2462, 0.0
  %2831 = vadd.xlane.f32.xlu0 %v2830
  %v2832 = vpop.xlane.xlu0 %2831
  %v2833 = vsel %vm1469, %v2463, 0.0
  %2834 = vadd.xlane.f32.xlu0 %v2833
  %v2835 = vpop.xlane.xlu0 %2834
  %v2836 = vsel %vm1469, %v2464, 0.0
  %2837 = vadd.xlane.f32.xlu0 %v2836
  %v2838 = vpop.xlane.xlu0 %2837
  %v2839 = vsel %vm1469, %v2465, 0.0
  %2840 = vadd.xlane.f32.xlu0 %v2839
  %v2841 = vpop.xlane.xlu0 %2840
  %v2842 = vsel %vm1469, %v2466, 0.0
  %2843 = vadd.xlane.f32.xlu0 %v2842
  %v2844 = vpop.xlane.xlu0 %2843
  %v2845 = vsel %vm1469, %v2467, 0.0
  %2846 = vadd.xlane.f32.xlu0 %v2845
  %v2847 = vpop.xlane.xlu0 %2846
  %v2848 = vsel %vm1469, %v2468, 0.0
  %2849 = vadd.xlane.f32.xlu0 %v2848
  %v2850 = vpop.xlane.xlu0 %2849
  %v2851 = vsel %vm1469, %v2469, 0.0
  %2852 = vadd.xlane.f32.xlu0 %v2851
  %v2853 = vpop.xlane.xlu0 %2852
  %v2854 = vld [vmem:[#allocation2] sm:$0x1]
  %v2856 = vlaneseq
  %v2857 = vshrl.u32 %v2856, 7
  %v2858 = vsub.s32 0, %v2857
  %v2859 = vrot.slane %v2854, %v2858
  %v2861 = vadd.f32 %v2472, %v2859
  %v2862 = vadd.f32 %v2475, %v2859
  %v2863 = vadd.f32 %v2478, %v2859
  %v2864 = vadd.f32 %v2481, %v2859
  %v2865 = vadd.f32 %v2484, %v2859
  %v2866 = vadd.f32 %v2487, %v2859
  %v2867 = vadd.f32 %v2490, %v2859
  %v2868 = vadd.f32 %v2493, %v2859
  %v2869 = vadd.f32 %v2496, %v2859
  %v2870 = vadd.f32 %v2499, %v2859
  %v2871 = vadd.f32 %v2502, %v2859
  %v2872 = vadd.f32 %v2505, %v2859
  %v2873 = vadd.f32 %v2508, %v2859
  %v2874 = vadd.f32 %v2511, %v2859
  %v2875 = vadd.f32 %v2514, %v2859
  %v2876 = vadd.f32 %v2517, %v2859
  %v2877 = vadd.f32 %v2520, %v2859
  %v2878 = vadd.f32 %v2523, %v2859
  %v2879 = vadd.f32 %v2526, %v2859
  %v2880 = vadd.f32 %v2529, %v2859
  %v2881 = vadd.f32 %v2532, %v2859
  %v2882 = vadd.f32 %v2535, %v2859
  %v2883 = vadd.f32 %v2538, %v2859
  %v2884 = vadd.f32 %v2541, %v2859
  %v2885 = vadd.f32 %v2544, %v2859
  %v2886 = vadd.f32 %v2547, %v2859
  %v2887 = vadd.f32 %v2550, %v2859
  %v2888 = vadd.f32 %v2553, %v2859
  %v2889 = vadd.f32 %v2556, %v2859
  %v2890 = vadd.f32 %v2559, %v2859
  %v2891 = vadd.f32 %v2562, %v2859
  %v2892 = vadd.f32 %v2565, %v2859
  %v2893 = vadd.f32 %v2568, %v2859
  %v2894 = vadd.f32 %v2571, %v2859
  %v2895 = vadd.f32 %v2574, %v2859
  %v2896 = vadd.f32 %v2577, %v2859
  %v2897 = vadd.f32 %v2580, %v2859
  %v2898 = vadd.f32 %v2583, %v2859
  %v2899 = vadd.f32 %v2586, %v2859
  %v2900 = vadd.f32 %v2589, %v2859
  %v2901 = vadd.f32 %v2592, %v2859
  %v2902 = vadd.f32 %v2595, %v2859
  %v2903 = vadd.f32 %v2598, %v2859
  %v2904 = vadd.f32 %v2601, %v2859
  %v2905 = vadd.f32 %v2604, %v2859
  %v2906 = vadd.f32 %v2607, %v2859
  %v2907 = vadd.f32 %v2610, %v2859
  %v2908 = vadd.f32 %v2613, %v2859
  %v2909 = vadd.f32 %v2616, %v2859
  %v2910 = vadd.f32 %v2619, %v2859
  %v2911 = vadd.f32 %v2622, %v2859
  %v2912 = vadd.f32 %v2625, %v2859
  %v2913 = vadd.f32 %v2628, %v2859
  %v2914 = vadd.f32 %v2631, %v2859
  %v2915 = vadd.f32 %v2634, %v2859
  %v2916 = vadd.f32 %v2637, %v2859
  %v2917 = vadd.f32 %v2640, %v2859
  %v2918 = vadd.f32 %v2643, %v2859
  %v2919 = vadd.f32 %v2646, %v2859
  %v2920 = vadd.f32 %v2649, %v2859
  %v2921 = vadd.f32 %v2652, %v2859
  %v2922 = vadd.f32 %v2655, %v2859
  %v2923 = vadd.f32 %v2658, %v2859
  %v2924 = vadd.f32 %v2661, %v2859
  %v2925 = vadd.f32 %v2664, %v2859
  %v2926 = vadd.f32 %v2667, %v2859
  %v2927 = vadd.f32 %v2670, %v2859
  %v2928 = vadd.f32 %v2673, %v2859
  %v2929 = vadd.f32 %v2676, %v2859
  %v2930 = vadd.f32 %v2679, %v2859
  %v2931 = vadd.f32 %v2682, %v2859
  %v2932 = vadd.f32 %v2685, %v2859
  %v2933 = vadd.f32 %v2688, %v2859
  %v2934 = vadd.f32 %v2691, %v2859
  %v2935 = vadd.f32 %v2694, %v2859
  %v2936 = vadd.f32 %v2697, %v2859
  %v2937 = vadd.f32 %v2700, %v2859
  %v2938 = vadd.f32 %v2703, %v2859
  %v2939 = vadd.f32 %v2706, %v2859
  %v2940 = vadd.f32 %v2709, %v2859
  %v2941 = vadd.f32 %v2712, %v2859
  %v2942 = vadd.f32 %v2715, %v2859
  %v2943 = vadd.f32 %v2718, %v2859
  %v2944 = vadd.f32 %v2721, %v2859
  %v2945 = vadd.f32 %v2724, %v2859
  %v2946 = vadd.f32 %v2727, %v2859
  %v2947 = vadd.f32 %v2730, %v2859
  %v2948 = vadd.f32 %v2733, %v2859
  %v2949 = vadd.f32 %v2736, %v2859
  %v2950 = vadd.f32 %v2739, %v2859
  %v2951 = vadd.f32 %v2742, %v2859
  %v2952 = vadd.f32 %v2745, %v2859
  %v2953 = vadd.f32 %v2748, %v2859
  %v2954 = vadd.f32 %v2751, %v2859
  %v2955 = vadd.f32 %v2754, %v2859
  %v2956 = vadd.f32 %v2757, %v2859
  %v2957 = vadd.f32 %v2760, %v2859
  %v2958 = vadd.f32 %v2763, %v2859
  %v2959 = vadd.f32 %v2766, %v2859
  %v2960 = vadd.f32 %v2769, %v2859
  %v2961 = vadd.f32 %v2772, %v2859
  %v2962 = vadd.f32 %v2775, %v2859
  %v2963 = vadd.f32 %v2778, %v2859
  %v2964 = vadd.f32 %v2781, %v2859
  %v2965 = vadd.f32 %v2784, %v2859
  %v2966 = vadd.f32 %v2787, %v2859
  %v2967 = vadd.f32 %v2790, %v2859
  %v2968 = vadd.f32 %v2793, %v2859
  %v2969 = vadd.f32 %v2796, %v2859
  %v2970 = vadd.f32 %v2799, %v2859
  %v2971 = vadd.f32 %v2802, %v2859
  %v2972 = vadd.f32 %v2805, %v2859
  %v2973 = vadd.f32 %v2808, %v2859
  %v2974 = vadd.f32 %v2811, %v2859
  %v2975 = vadd.f32 %v2814, %v2859
  %v2976 = vadd.f32 %v2817, %v2859
  %v2977 = vadd.f32 %v2820, %v2859
  %v2978 = vadd.f32 %v2823, %v2859
  %v2979 = vadd.f32 %v2826, %v2859
  %v2980 = vadd.f32 %v2829, %v2859
  %v2981 = vadd.f32 %v2832, %v2859
  %v2982 = vadd.f32 %v2835, %v2859
  %v2983 = vadd.f32 %v2838, %v2859
  %v2984 = vadd.f32 %v2841, %v2859
  %v2985 = vadd.f32 %v2844, %v2859
  %v2986 = vadd.f32 %v2847, %v2859
  %v2987 = vadd.f32 %v2850, %v2859
  %v2988 = vadd.f32 %v2853, %v2859
  %v2989 = vxor.u32 %v2861, 2147483648
  %v2990 = vxor.u32 %v2862, 2147483648
  %v2991 = vxor.u32 %v2863, 2147483648
  %v2992 = vxor.u32 %v2864, 2147483648
  %v2993 = vxor.u32 %v2865, 2147483648
  %v2994 = vxor.u32 %v2866, 2147483648
  %v2995 = vxor.u32 %v2867, 2147483648
  %v2996 = vxor.u32 %v2868, 2147483648
  %v2997 = vxor.u32 %v2869, 2147483648
  %v2998 = vxor.u32 %v2870, 2147483648
  %v2999 = vxor.u32 %v2871, 2147483648
  %v3000 = vxor.u32 %v2872, 2147483648
  %v3001 = vxor.u32 %v2873, 2147483648
  %v3002 = vxor.u32 %v2874, 2147483648
  %v3003 = vxor.u32 %v2875, 2147483648
  %v3004 = vxor.u32 %v2876, 2147483648
  %v3005 = vxor.u32 %v2877, 2147483648
  %v3006 = vxor.u32 %v2878, 2147483648
  %v3007 = vxor.u32 %v2879, 2147483648
  %v3008 = vxor.u32 %v2880, 2147483648
  %v3009 = vxor.u32 %v2881, 2147483648
  %v3010 = vxor.u32 %v2882, 2147483648
  %v3011 = vxor.u32 %v2883, 2147483648
  %v3012 = vxor.u32 %v2884, 2147483648
  %v3013 = vxor.u32 %v2885, 2147483648
  %v3014 = vxor.u32 %v2886, 2147483648
  %v3015 = vxor.u32 %v2887, 2147483648
  %v3016 = vxor.u32 %v2888, 2147483648
  %v3017 = vxor.u32 %v2889, 2147483648
  %v3018 = vxor.u32 %v2890, 2147483648
  %v3019 = vxor.u32 %v2891, 2147483648
  %v3020 = vxor.u32 %v2892, 2147483648
  %v3021 = vxor.u32 %v2893, 2147483648
  %v3022 = vxor.u32 %v2894, 2147483648
  %v3023 = vxor.u32 %v2895, 2147483648
  %v3024 = vxor.u32 %v2896, 2147483648
  %v3025 = vxor.u32 %v2897, 2147483648
  %v3026 = vxor.u32 %v2898, 2147483648
  %v3027 = vxor.u32 %v2899, 2147483648
  %v3028 = vxor.u32 %v2900, 2147483648
  %v3029 = vxor.u32 %v2901, 2147483648
  %v3030 = vxor.u32 %v2902, 2147483648
  %v3031 = vxor.u32 %v2903, 2147483648
  %v3032 = vxor.u32 %v2904, 2147483648
  %v3033 = vxor.u32 %v2905, 2147483648
  %v3034 = vxor.u32 %v2906, 2147483648
  %v3035 = vxor.u32 %v2907, 2147483648
  %v3036 = vxor.u32 %v2908, 2147483648
  %v3037 = vxor.u32 %v2909, 2147483648
  %v3038 = vxor.u32 %v2910, 2147483648
  %v3039 = vxor.u32 %v2911, 2147483648
  %v3040 = vxor.u32 %v2912, 2147483648
  %v3041 = vxor.u32 %v2913, 2147483648
  %v3042 = vxor.u32 %v2914, 2147483648
  %v3043 = vxor.u32 %v2915, 2147483648
  %v3044 = vxor.u32 %v2916, 2147483648
  %v3045 = vxor.u32 %v2917, 2147483648
  %v3046 = vxor.u32 %v2918, 2147483648
  %v3047 = vxor.u32 %v2919, 2147483648
  %v3048 = vxor.u32 %v2920, 2147483648
  %v3049 = vxor.u32 %v2921, 2147483648
  %v3050 = vxor.u32 %v2922, 2147483648
  %v3051 = vxor.u32 %v2923, 2147483648
  %v3052 = vxor.u32 %v2924, 2147483648
  %v3053 = vxor.u32 %v2925, 2147483648
  %v3054 = vxor.u32 %v2926, 2147483648
  %v3055 = vxor.u32 %v2927, 2147483648
  %v3056 = vxor.u32 %v2928, 2147483648
  %v3057 = vxor.u32 %v2929, 2147483648
  %v3058 = vxor.u32 %v2930, 2147483648
  %v3059 = vxor.u32 %v2931, 2147483648
  %v3060 = vxor.u32 %v2932, 2147483648
  %v3061 = vxor.u32 %v2933, 2147483648
  %v3062 = vxor.u32 %v2934, 2147483648
  %v3063 = vxor.u32 %v2935, 2147483648
  %v3064 = vxor.u32 %v2936, 2147483648
  %v3065 = vxor.u32 %v2937, 2147483648
  %v3066 = vxor.u32 %v2938, 2147483648
  %v3067 = vxor.u32 %v2939, 2147483648
  %v3068 = vxor.u32 %v2940, 2147483648
  %v3069 = vxor.u32 %v2941, 2147483648
  %v3070 = vxor.u32 %v2942, 2147483648
  %v3071 = vxor.u32 %v2943, 2147483648
  %v3072 = vxor.u32 %v2944, 2147483648
  %v3073 = vxor.u32 %v2945, 2147483648
  %v3074 = vxor.u32 %v2946, 2147483648
  %v3075 = vxor.u32 %v2947, 2147483648
  %v3076 = vxor.u32 %v2948, 2147483648
  %v3077 = vxor.u32 %v2949, 2147483648
  %v3078 = vxor.u32 %v2950, 2147483648
  %v3079 = vxor.u32 %v2951, 2147483648
  %v3080 = vxor.u32 %v2952, 2147483648
  %v3081 = vxor.u32 %v2953, 2147483648
  %v3082 = vxor.u32 %v2954, 2147483648
  %v3083 = vxor.u32 %v2955, 2147483648
  %v3084 = vxor.u32 %v2956, 2147483648
  %v3085 = vxor.u32 %v2957, 2147483648
  %v3086 = vxor.u32 %v2958, 2147483648
  %v3087 = vxor.u32 %v2959, 2147483648
  %v3088 = vxor.u32 %v2960, 2147483648
  %v3089 = vxor.u32 %v2961, 2147483648
  %v3090 = vxor.u32 %v2962, 2147483648
  %v3091 = vxor.u32 %v2963, 2147483648
  %v3092 = vxor.u32 %v2964, 2147483648
  %v3093 = vxor.u32 %v2965, 2147483648
  %v3094 = vxor.u32 %v2966, 2147483648
  %v3095 = vxor.u32 %v2967, 2147483648
  %v3096 = vxor.u32 %v2968, 2147483648
  %v3097 = vxor.u32 %v2969, 2147483648
  %v3098 = vxor.u32 %v2970, 2147483648
  %v3099 = vxor.u32 %v2971, 2147483648
  %v3100 = vxor.u32 %v2972, 2147483648
  %v3101 = vxor.u32 %v2973, 2147483648
  %v3102 = vxor.u32 %v2974, 2147483648
  %v3103 = vxor.u32 %v2975, 2147483648
  %v3104 = vxor.u32 %v2976, 2147483648
  %v3105 = vxor.u32 %v2977, 2147483648
  %v3106 = vxor.u32 %v2978, 2147483648
  %v3107 = vxor.u32 %v2979, 2147483648
  %v3108 = vxor.u32 %v2980, 2147483648
  %v3109 = vxor.u32 %v2981, 2147483648
  %v3110 = vxor.u32 %v2982, 2147483648
  %v3111 = vxor.u32 %v2983, 2147483648
  %v3112 = vxor.u32 %v2984, 2147483648
  %v3113 = vxor.u32 %v2985, 2147483648
  %v3114 = vxor.u32 %v2986, 2147483648
  %v3115 = vxor.u32 %v2987, 2147483648
  %v3116 = vxor.u32 %v2988, 2147483648
  %v3117 = vmul.f32 %v2989, 1.442695
  %v3118 = vpow.pop %v3117
  %v3119 = vmul.f32 %v2990, 1.442695
  %v3120 = vpow.pop %v3119
  %v3121 = vmul.f32 %v2991, 1.442695
  %v3122 = vpow.pop %v3121
  %v3123 = vmul.f32 %v2992, 1.442695
  %v3124 = vpow.pop %v3123
  %v3125 = vmul.f32 %v2993, 1.442695
  %v3126 = vpow.pop %v3125
  %v3127 = vmul.f32 %v2994, 1.442695
  %v3128 = vpow.pop %v3127
  %v3129 = vmul.f32 %v2995, 1.442695
  %v3130 = vpow.pop %v3129
  %v3131 = vmul.f32 %v2996, 1.442695
  %v3132 = vpow.pop %v3131
  %v3133 = vmul.f32 %v2997, 1.442695
  %v3134 = vpow.pop %v3133
  %v3135 = vmul.f32 %v2998, 1.442695
  %v3136 = vpow.pop %v3135
  %v3137 = vmul.f32 %v2999, 1.442695
  %v3138 = vpow.pop %v3137
  %v3139 = vmul.f32 %v3000, 1.442695
  %v3140 = vpow.pop %v3139
  %v3141 = vmul.f32 %v3001, 1.442695
  %v3142 = vpow.pop %v3141
  %v3143 = vmul.f32 %v3002, 1.442695
  %v3144 = vpow.pop %v3143
  %v3145 = vmul.f32 %v3003, 1.442695
  %v3146 = vpow.pop %v3145
  %v3147 = vmul.f32 %v3004, 1.442695
  %v3148 = vpow.pop %v3147
  %v3149 = vmul.f32 %v3005, 1.442695
  %v3150 = vpow.pop %v3149
  %v3151 = vmul.f32 %v3006, 1.442695
  %v3152 = vpow.pop %v3151
  %v3153 = vmul.f32 %v3007, 1.442695
  %v3154 = vpow.pop %v3153
  %v3155 = vmul.f32 %v3008, 1.442695
  %v3156 = vpow.pop %v3155
  %v3157 = vmul.f32 %v3009, 1.442695
  %v3158 = vpow.pop %v3157
  %v3159 = vmul.f32 %v3010, 1.442695
  %v3160 = vpow.pop %v3159
  %v3161 = vmul.f32 %v3011, 1.442695
  %v3162 = vpow.pop %v3161
  %v3163 = vmul.f32 %v3012, 1.442695
  %v3164 = vpow.pop %v3163
  %v3165 = vmul.f32 %v3013, 1.442695
  %v3166 = vpow.pop %v3165
  %v3167 = vmul.f32 %v3014, 1.442695
  %v3168 = vpow.pop %v3167
  %v3169 = vmul.f32 %v3015, 1.442695
  %v3170 = vpow.pop %v3169
  %v3171 = vmul.f32 %v3016, 1.442695
  %v3172 = vpow.pop %v3171
  %v3173 = vmul.f32 %v3017, 1.442695
  %v3174 = vpow.pop %v3173
  %v3175 = vmul.f32 %v3018, 1.442695
  %v3176 = vpow.pop %v3175
  %v3177 = vmul.f32 %v3019, 1.442695
  %v3178 = vpow.pop %v3177
  %v3179 = vmul.f32 %v3020, 1.442695
  %v3180 = vpow.pop %v3179
  %v3181 = vmul.f32 %v3021, 1.442695
  %v3182 = vpow.pop %v3181
  %v3183 = vmul.f32 %v3022, 1.442695
  %v3184 = vpow.pop %v3183
  %v3185 = vmul.f32 %v3023, 1.442695
  %v3186 = vpow.pop %v3185
  %v3187 = vmul.f32 %v3024, 1.442695
  %v3188 = vpow.pop %v3187
  %v3189 = vmul.f32 %v3025, 1.442695
  %v3190 = vpow.pop %v3189
  %v3191 = vmul.f32 %v3026, 1.442695
  %v3192 = vpow.pop %v3191
  %v3193 = vmul.f32 %v3027, 1.442695
  %v3194 = vpow.pop %v3193
  %v3195 = vmul.f32 %v3028, 1.442695
  %v3196 = vpow.pop %v3195
  %v3197 = vmul.f32 %v3029, 1.442695
  %v3198 = vpow.pop %v3197
  %v3199 = vmul.f32 %v3030, 1.442695
  %v3200 = vpow.pop %v3199
  %v3201 = vmul.f32 %v3031, 1.442695
  %v3202 = vpow.pop %v3201
  %v3203 = vmul.f32 %v3032, 1.442695
  %v3204 = vpow.pop %v3203
  %v3205 = vmul.f32 %v3033, 1.442695
  %v3206 = vpow.pop %v3205
  %v3207 = vmul.f32 %v3034, 1.442695
  %v3208 = vpow.pop %v3207
  %v3209 = vmul.f32 %v3035, 1.442695
  %v3210 = vpow.pop %v3209
  %v3211 = vmul.f32 %v3036, 1.442695
  %v3212 = vpow.pop %v3211
  %v3213 = vmul.f32 %v3037, 1.442695
  %v3214 = vpow.pop %v3213
  %v3215 = vmul.f32 %v3038, 1.442695
  %v3216 = vpow.pop %v3215
  %v3217 = vmul.f32 %v3039, 1.442695
  %v3218 = vpow.pop %v3217
  %v3219 = vmul.f32 %v3040, 1.442695
  %v3220 = vpow.pop %v3219
  %v3221 = vmul.f32 %v3041, 1.442695
  %v3222 = vpow.pop %v3221
  %v3223 = vmul.f32 %v3042, 1.442695
  %v3224 = vpow.pop %v3223
  %v3225 = vmul.f32 %v3043, 1.442695
  %v3226 = vpow.pop %v3225
  %v3227 = vmul.f32 %v3044, 1.442695
  %v3228 = vpow.pop %v3227
  %v3229 = vmul.f32 %v3045, 1.442695
  %v3230 = vpow.pop %v3229
  %v3231 = vmul.f32 %v3046, 1.442695
  %v3232 = vpow.pop %v3231
  %v3233 = vmul.f32 %v3047, 1.442695
  %v3234 = vpow.pop %v3233
  %v3235 = vmul.f32 %v3048, 1.442695
  %v3236 = vpow.pop %v3235
  %v3237 = vmul.f32 %v3049, 1.442695
  %v3238 = vpow.pop %v3237
  %v3239 = vmul.f32 %v3050, 1.442695
  %v3240 = vpow.pop %v3239
  %v3241 = vmul.f32 %v3051, 1.442695
  %v3242 = vpow.pop %v3241
  %v3243 = vmul.f32 %v3052, 1.442695
  %v3244 = vpow.pop %v3243
  %v3245 = vmul.f32 %v3053, 1.442695
  %v3246 = vpow.pop %v3245
  %v3247 = vmul.f32 %v3054, 1.442695
  %v3248 = vpow.pop %v3247
  %v3249 = vmul.f32 %v3055, 1.442695
  %v3250 = vpow.pop %v3249
  %v3251 = vmul.f32 %v3056, 1.442695
  %v3252 = vpow.pop %v3251
  %v3253 = vmul.f32 %v3057, 1.442695
  %v3254 = vpow.pop %v3253
  %v3255 = vmul.f32 %v3058, 1.442695
  %v3256 = vpow.pop %v3255
  %v3257 = vmul.f32 %v3059, 1.442695
  %v3258 = vpow.pop %v3257
  %v3259 = vmul.f32 %v3060, 1.442695
  %v3260 = vpow.pop %v3259
  %v3261 = vmul.f32 %v3061, 1.442695
  %v3262 = vpow.pop %v3261
  %v3263 = vmul.f32 %v3062, 1.442695
  %v3264 = vpow.pop %v3263
  %v3265 = vmul.f32 %v3063, 1.442695
  %v3266 = vpow.pop %v3265
  %v3267 = vmul.f32 %v3064, 1.442695
  %v3268 = vpow.pop %v3267
  %v3269 = vmul.f32 %v3065, 1.442695
  %v3270 = vpow.pop %v3269
  %v3271 = vmul.f32 %v3066, 1.442695
  %v3272 = vpow.pop %v3271
  %v3273 = vmul.f32 %v3067, 1.442695
  %v3274 = vpow.pop %v3273
  %v3275 = vmul.f32 %v3068, 1.442695
  %v3276 = vpow.pop %v3275
  %v3277 = vmul.f32 %v3069, 1.442695
  %v3278 = vpow.pop %v3277
  %v3279 = vmul.f32 %v3070, 1.442695
  %v3280 = vpow.pop %v3279
  %v3281 = vmul.f32 %v3071, 1.442695
  %v3282 = vpow.pop %v3281
  %v3283 = vmul.f32 %v3072, 1.442695
  %v3284 = vpow.pop %v3283
  %v3285 = vmul.f32 %v3073, 1.442695
  %v3286 = vpow.pop %v3285
  %v3287 = vmul.f32 %v3074, 1.442695
  %v3288 = vpow.pop %v3287
  %v3289 = vmul.f32 %v3075, 1.442695
  %v3290 = vpow.pop %v3289
  %v3291 = vmul.f32 %v3076, 1.442695
  %v3292 = vpow.pop %v3291
  %v3293 = vmul.f32 %v3077, 1.442695
  %v3294 = vpow.pop %v3293
  %v3295 = vmul.f32 %v3078, 1.442695
  %v3296 = vpow.pop %v3295
  %v3297 = vmul.f32 %v3079, 1.442695
  %v3298 = vpow.pop %v3297
  %v3299 = vmul.f32 %v3080, 1.442695
  %v3300 = vpow.pop %v3299
  %v3301 = vmul.f32 %v3081, 1.442695
  %v3302 = vpow.pop %v3301
  %v3303 = vmul.f32 %v3082, 1.442695
  %v3304 = vpow.pop %v3303
  %v3305 = vmul.f32 %v3083, 1.442695
  %v3306 = vpow.pop %v3305
  %v3307 = vmul.f32 %v3084, 1.442695
  %v3308 = vpow.pop %v3307
  %v3309 = vmul.f32 %v3085, 1.442695
  %v3310 = vpow.pop %v3309
  %v3311 = vmul.f32 %v3086, 1.442695
  %v3312 = vpow.pop %v3311
  %v3313 = vmul.f32 %v3087, 1.442695
  %v3314 = vpow.pop %v3313
  %v3315 = vmul.f32 %v3088, 1.442695
  %v3316 = vpow.pop %v3315
  %v3317 = vmul.f32 %v3089, 1.442695
  %v3318 = vpow.pop %v3317
  %v3319 = vmul.f32 %v3090, 1.442695
  %v3320 = vpow.pop %v3319
  %v3321 = vmul.f32 %v3091, 1.442695
  %v3322 = vpow.pop %v3321
  %v3323 = vmul.f32 %v3092, 1.442695
  %v3324 = vpow.pop %v3323
  %v3325 = vmul.f32 %v3093, 1.442695
  %v3326 = vpow.pop %v3325
  %v3327 = vmul.f32 %v3094, 1.442695
  %v3328 = vpow.pop %v3327
  %v3329 = vmul.f32 %v3095, 1.442695
  %v3330 = vpow.pop %v3329
  %v3331 = vmul.f32 %v3096, 1.442695
  %v3332 = vpow.pop %v3331
  %v3333 = vmul.f32 %v3097, 1.442695
  %v3334 = vpow.pop %v3333
  %v3335 = vmul.f32 %v3098, 1.442695
  %v3336 = vpow.pop %v3335
  %v3337 = vmul.f32 %v3099, 1.442695
  %v3338 = vpow.pop %v3337
  %v3339 = vmul.f32 %v3100, 1.442695
  %v3340 = vpow.pop %v3339
  %v3341 = vmul.f32 %v3101, 1.442695
  %v3342 = vpow.pop %v3341
  %v3343 = vmul.f32 %v3102, 1.442695
  %v3344 = vpow.pop %v3343
  %v3345 = vmul.f32 %v3103, 1.442695
  %v3346 = vpow.pop %v3345
  %v3347 = vmul.f32 %v3104, 1.442695
  %v3348 = vpow.pop %v3347
  %v3349 = vmul.f32 %v3105, 1.442695
  %v3350 = vpow.pop %v3349
  %v3351 = vmul.f32 %v3106, 1.442695
  %v3352 = vpow.pop %v3351
  %v3353 = vmul.f32 %v3107, 1.442695
  %v3354 = vpow.pop %v3353
  %v3355 = vmul.f32 %v3108, 1.442695
  %v3356 = vpow.pop %v3355
  %v3357 = vmul.f32 %v3109, 1.442695
  %v3358 = vpow.pop %v3357
  %v3359 = vmul.f32 %v3110, 1.442695
  %v3360 = vpow.pop %v3359
  %v3361 = vmul.f32 %v3111, 1.442695
  %v3362 = vpow.pop %v3361
  %v3363 = vmul.f32 %v3112, 1.442695
  %v3364 = vpow.pop %v3363
  %v3365 = vmul.f32 %v3113, 1.442695
  %v3366 = vpow.pop %v3365
  %v3367 = vmul.f32 %v3114, 1.442695
  %v3368 = vpow.pop %v3367
  %v3369 = vmul.f32 %v3115, 1.442695
  %v3370 = vpow.pop %v3369
  %v3371 = vmul.f32 %v3116, 1.442695
  %v3372 = vpow.pop %v3371
  %v3373 = vadd.f32 %v3118, 1.0
  %v3374 = vadd.f32 %v3120, 1.0
  %v3375 = vadd.f32 %v3122, 1.0
  %v3376 = vadd.f32 %v3124, 1.0
  %v3377 = vadd.f32 %v3126, 1.0
  %v3378 = vadd.f32 %v3128, 1.0
  %v3379 = vadd.f32 %v3130, 1.0
  %v3380 = vadd.f32 %v3132, 1.0
  %v3381 = vadd.f32 %v3134, 1.0
  %v3382 = vadd.f32 %v3136, 1.0
  %v3383 = vadd.f32 %v3138, 1.0
  %v3384 = vadd.f32 %v3140, 1.0
  %v3385 = vadd.f32 %v3142, 1.0
  %v3386 = vadd.f32 %v3144, 1.0
  %v3387 = vadd.f32 %v3146, 1.0
  %v3388 = vadd.f32 %v3148, 1.0
  %v3389 = vadd.f32 %v3150, 1.0
  %v3390 = vadd.f32 %v3152, 1.0
  %v3391 = vadd.f32 %v3154, 1.0
  %v3392 = vadd.f32 %v3156, 1.0
  %v3393 = vadd.f32 %v3158, 1.0
  %v3394 = vadd.f32 %v3160, 1.0
  %v3395 = vadd.f32 %v3162, 1.0
  %v3396 = vadd.f32 %v3164, 1.0
  %v3397 = vadd.f32 %v3166, 1.0
  %v3398 = vadd.f32 %v3168, 1.0
  %v3399 = vadd.f32 %v3170, 1.0
  %v3400 = vadd.f32 %v3172, 1.0
  %v3401 = vadd.f32 %v3174, 1.0
  %v3402 = vadd.f32 %v3176, 1.0
  %v3403 = vadd.f32 %v3178, 1.0
  %v3404 = vadd.f32 %v3180, 1.0
  %v3405 = vadd.f32 %v3182, 1.0
  %v3406 = vadd.f32 %v3184, 1.0
  %v3407 = vadd.f32 %v3186, 1.0
  %v3408 = vadd.f32 %v3188, 1.0
  %v3409 = vadd.f32 %v3190, 1.0
  %v3410 = vadd.f32 %v3192, 1.0
  %v3411 = vadd.f32 %v3194, 1.0
  %v3412 = vadd.f32 %v3196, 1.0
  %v3413 = vadd.f32 %v3198, 1.0
  %v3414 = vadd.f32 %v3200, 1.0
  %v3415 = vadd.f32 %v3202, 1.0
  %v3416 = vadd.f32 %v3204, 1.0
  %v3417 = vadd.f32 %v3206, 1.0
  %v3418 = vadd.f32 %v3208, 1.0
  %v3419 = vadd.f32 %v3210, 1.0
  %v3420 = vadd.f32 %v3212, 1.0
  %v3421 = vadd.f32 %v3214, 1.0
  %v3422 = vadd.f32 %v3216, 1.0
  %v3423 = vadd.f32 %v3218, 1.0
  %v3424 = vadd.f32 %v3220, 1.0
  %v3425 = vadd.f32 %v3222, 1.0
  %v3426 = vadd.f32 %v3224, 1.0
  %v3427 = vadd.f32 %v3226, 1.0
  %v3428 = vadd.f32 %v3228, 1.0
  %v3429 = vadd.f32 %v3230, 1.0
  %v3430 = vadd.f32 %v3232, 1.0
  %v3431 = vadd.f32 %v3234, 1.0
  %v3432 = vadd.f32 %v3236, 1.0
  %v3433 = vadd.f32 %v3238, 1.0
  %v3434 = vadd.f32 %v3240, 1.0
  %v3435 = vadd.f32 %v3242, 1.0
  %v3436 = vadd.f32 %v3244, 1.0
  %v3437 = vadd.f32 %v3246, 1.0
  %v3438 = vadd.f32 %v3248, 1.0
  %v3439 = vadd.f32 %v3250, 1.0
  %v3440 = vadd.f32 %v3252, 1.0
  %v3441 = vadd.f32 %v3254, 1.0
  %v3442 = vadd.f32 %v3256, 1.0
  %v3443 = vadd.f32 %v3258, 1.0
  %v3444 = vadd.f32 %v3260, 1.0
  %v3445 = vadd.f32 %v3262, 1.0
  %v3446 = vadd.f32 %v3264, 1.0
  %v3447 = vadd.f32 %v3266, 1.0
  %v3448 = vadd.f32 %v3268, 1.0
  %v3449 = vadd.f32 %v3270, 1.0
  %v3450 = vadd.f32 %v3272, 1.0
  %v3451 = vadd.f32 %v3274, 1.0
  %v3452 = vadd.f32 %v3276, 1.0
  %v3453 = vadd.f32 %v3278, 1.0
  %v3454 = vadd.f32 %v3280, 1.0
  %v3455 = vadd.f32 %v3282, 1.0
  %v3456 = vadd.f32 %v3284, 1.0
  %v3457 = vadd.f32 %v3286, 1.0
  %v3458 = vadd.f32 %v3288, 1.0
  %v3459 = vadd.f32 %v3290, 1.0
  %v3460 = vadd.f32 %v3292, 1.0
  %v3461 = vadd.f32 %v3294, 1.0
  %v3462 = vadd.f32 %v3296, 1.0
  %v3463 = vadd.f32 %v3298, 1.0
  %v3464 = vadd.f32 %v3300, 1.0
  %v3465 = vadd.f32 %v3302, 1.0
  %v3466 = vadd.f32 %v3304, 1.0
  %v3467 = vadd.f32 %v3306, 1.0
  %v3468 = vadd.f32 %v3308, 1.0
  %v3469 = vadd.f32 %v3310, 1.0
  %v3470 = vadd.f32 %v3312, 1.0
  %v3471 = vadd.f32 %v3314, 1.0
  %v3472 = vadd.f32 %v3316, 1.0
  %v3473 = vadd.f32 %v3318, 1.0
  %v3474 = vadd.f32 %v3320, 1.0
  %v3475 = vadd.f32 %v3322, 1.0
  %v3476 = vadd.f32 %v3324, 1.0
  %v3477 = vadd.f32 %v3326, 1.0
  %v3478 = vadd.f32 %v3328, 1.0
  %v3479 = vadd.f32 %v3330, 1.0
  %v3480 = vadd.f32 %v3332, 1.0
  %v3481 = vadd.f32 %v3334, 1.0
  %v3482 = vadd.f32 %v3336, 1.0
  %v3483 = vadd.f32 %v3338, 1.0
  %v3484 = vadd.f32 %v3340, 1.0
  %v3485 = vadd.f32 %v3342, 1.0
  %v3486 = vadd.f32 %v3344, 1.0
  %v3487 = vadd.f32 %v3346, 1.0
  %v3488 = vadd.f32 %v3348, 1.0
  %v3489 = vadd.f32 %v3350, 1.0
  %v3490 = vadd.f32 %v3352, 1.0
  %v3491 = vadd.f32 %v3354, 1.0
  %v3492 = vadd.f32 %v3356, 1.0
  %v3493 = vadd.f32 %v3358, 1.0
  %v3494 = vadd.f32 %v3360, 1.0
  %v3495 = vadd.f32 %v3362, 1.0
  %v3496 = vadd.f32 %v3364, 1.0
  %v3497 = vadd.f32 %v3366, 1.0
  %v3498 = vadd.f32 %v3368, 1.0
  %v3499 = vadd.f32 %v3370, 1.0
  %v3500 = vadd.f32 %v3372, 1.0
  %v3501 = vrcp.pop %v3373
  %v3502 = vmul.f32 1.0, %v3501
  %v3503 = vrcp.pop %v3374
  %v3504 = vmul.f32 1.0, %v3503
  %v3505 = vrcp.pop %v3375
  %v3506 = vmul.f32 1.0, %v3505
  %v3507 = vrcp.pop %v3376
  %v3508 = vmul.f32 1.0, %v3507
  %v3509 = vrcp.pop %v3377
  %v3510 = vmul.f32 1.0, %v3509
  %v3511 = vrcp.pop %v3378
  %v3512 = vmul.f32 1.0, %v3511
  %v3513 = vrcp.pop %v3379
  %v3514 = vmul.f32 1.0, %v3513
  %v3515 = vrcp.pop %v3380
  %v3516 = vmul.f32 1.0, %v3515
  %v3517 = vrcp.pop %v3381
  %v3518 = vmul.f32 1.0, %v3517
  %v3519 = vrcp.pop %v3382
  %v3520 = vmul.f32 1.0, %v3519
  %v3521 = vrcp.pop %v3383
  %v3522 = vmul.f32 1.0, %v3521
  %v3523 = vrcp.pop %v3384
  %v3524 = vmul.f32 1.0, %v3523
  %v3525 = vrcp.pop %v3385
  %v3526 = vmul.f32 1.0, %v3525
  %v3527 = vrcp.pop %v3386
  %v3528 = vmul.f32 1.0, %v3527
  %v3529 = vrcp.pop %v3387
  %v3530 = vmul.f32 1.0, %v3529
  %v3531 = vrcp.pop %v3388
  %v3532 = vmul.f32 1.0, %v3531
  %v3533 = vrcp.pop %v3389
  %v3534 = vmul.f32 1.0, %v3533
  %v3535 = vrcp.pop %v3390
  %v3536 = vmul.f32 1.0, %v3535
  %v3537 = vrcp.pop %v3391
  %v3538 = vmul.f32 1.0, %v3537
  %v3539 = vrcp.pop %v3392
  %v3540 = vmul.f32 1.0, %v3539
  %v3541 = vrcp.pop %v3393
  %v3542 = vmul.f32 1.0, %v3541
  %v3543 = vrcp.pop %v3394
  %v3544 = vmul.f32 1.0, %v3543
  %v3545 = vrcp.pop %v3395
  %v3546 = vmul.f32 1.0, %v3545
  %v3547 = vrcp.pop %v3396
  %v3548 = vmul.f32 1.0, %v3547
  %v3549 = vrcp.pop %v3397
  %v3550 = vmul.f32 1.0, %v3549
  %v3551 = vrcp.pop %v3398
  %v3552 = vmul.f32 1.0, %v3551
  %v3553 = vrcp.pop %v3399
  %v3554 = vmul.f32 1.0, %v3553
  %v3555 = vrcp.pop %v3400
  %v3556 = vmul.f32 1.0, %v3555
  %v3557 = vrcp.pop %v3401
  %v3558 = vmul.f32 1.0, %v3557
  %v3559 = vrcp.pop %v3402
  %v3560 = vmul.f32 1.0, %v3559
  %v3561 = vrcp.pop %v3403
  %v3562 = vmul.f32 1.0, %v3561
  %v3563 = vrcp.pop %v3404
  %v3564 = vmul.f32 1.0, %v3563
  %v3565 = vrcp.pop %v3405
  %v3566 = vmul.f32 1.0, %v3565
  %v3567 = vrcp.pop %v3406
  %v3568 = vmul.f32 1.0, %v3567
  %v3569 = vrcp.pop %v3407
  %v3570 = vmul.f32 1.0, %v3569
  %v3571 = vrcp.pop %v3408
  %v3572 = vmul.f32 1.0, %v3571
  %v3573 = vrcp.pop %v3409
  %v3574 = vmul.f32 1.0, %v3573
  %v3575 = vrcp.pop %v3410
  %v3576 = vmul.f32 1.0, %v3575
  %v3577 = vrcp.pop %v3411
  %v3578 = vmul.f32 1.0, %v3577
  %v3579 = vrcp.pop %v3412
  %v3580 = vmul.f32 1.0, %v3579
  %v3581 = vrcp.pop %v3413
  %v3582 = vmul.f32 1.0, %v3581
  %v3583 = vrcp.pop %v3414
  %v3584 = vmul.f32 1.0, %v3583
  %v3585 = vrcp.pop %v3415
  %v3586 = vmul.f32 1.0, %v3585
  %v3587 = vrcp.pop %v3416
  %v3588 = vmul.f32 1.0, %v3587
  %v3589 = vrcp.pop %v3417
  %v3590 = vmul.f32 1.0, %v3589
  %v3591 = vrcp.pop %v3418
  %v3592 = vmul.f32 1.0, %v3591
  %v3593 = vrcp.pop %v3419
  %v3594 = vmul.f32 1.0, %v3593
  %v3595 = vrcp.pop %v3420
  %v3596 = vmul.f32 1.0, %v3595
  %v3597 = vrcp.pop %v3421
  %v3598 = vmul.f32 1.0, %v3597
  %v3599 = vrcp.pop %v3422
  %v3600 = vmul.f32 1.0, %v3599
  %v3601 = vrcp.pop %v3423
  %v3602 = vmul.f32 1.0, %v3601
  %v3603 = vrcp.pop %v3424
  %v3604 = vmul.f32 1.0, %v3603
  %v3605 = vrcp.pop %v3425
  %v3606 = vmul.f32 1.0, %v3605
  %v3607 = vrcp.pop %v3426
  %v3608 = vmul.f32 1.0, %v3607
  %v3609 = vrcp.pop %v3427
  %v3610 = vmul.f32 1.0, %v3609
  %v3611 = vrcp.pop %v3428
  %v3612 = vmul.f32 1.0, %v3611
  %v3613 = vrcp.pop %v3429
  %v3614 = vmul.f32 1.0, %v3613
  %v3615 = vrcp.pop %v3430
  %v3616 = vmul.f32 1.0, %v3615
  %v3617 = vrcp.pop %v3431
  %v3618 = vmul.f32 1.0, %v3617
  %v3619 = vrcp.pop %v3432
  %v3620 = vmul.f32 1.0, %v3619
  %v3621 = vrcp.pop %v3433
  %v3622 = vmul.f32 1.0, %v3621
  %v3623 = vrcp.pop %v3434
  %v3624 = vmul.f32 1.0, %v3623
  %v3625 = vrcp.pop %v3435
  %v3626 = vmul.f32 1.0, %v3625
  %v3627 = vrcp.pop %v3436
  %v3628 = vmul.f32 1.0, %v3627
  %v3629 = vrcp.pop %v3437
  %v3630 = vmul.f32 1.0, %v3629
  %v3631 = vrcp.pop %v3438
  %v3632 = vmul.f32 1.0, %v3631
  %v3633 = vrcp.pop %v3439
  %v3634 = vmul.f32 1.0, %v3633
  %v3635 = vrcp.pop %v3440
  %v3636 = vmul.f32 1.0, %v3635
  %v3637 = vrcp.pop %v3441
  %v3638 = vmul.f32 1.0, %v3637
  %v3639 = vrcp.pop %v3442
  %v3640 = vmul.f32 1.0, %v3639
  %v3641 = vrcp.pop %v3443
  %v3642 = vmul.f32 1.0, %v3641
  %v3643 = vrcp.pop %v3444
  %v3644 = vmul.f32 1.0, %v3643
  %v3645 = vrcp.pop %v3445
  %v3646 = vmul.f32 1.0, %v3645
  %v3647 = vrcp.pop %v3446
  %v3648 = vmul.f32 1.0, %v3647
  %v3649 = vrcp.pop %v3447
  %v3650 = vmul.f32 1.0, %v3649
  %v3651 = vrcp.pop %v3448
  %v3652 = vmul.f32 1.0, %v3651
  %v3653 = vrcp.pop %v3449
  %v3654 = vmul.f32 1.0, %v3653
  %v3655 = vrcp.pop %v3450
  %v3656 = vmul.f32 1.0, %v3655
  %v3657 = vrcp.pop %v3451
  %v3658 = vmul.f32 1.0, %v3657
  %v3659 = vrcp.pop %v3452
  %v3660 = vmul.f32 1.0, %v3659
  %v3661 = vrcp.pop %v3453
  %v3662 = vmul.f32 1.0, %v3661
  %v3663 = vrcp.pop %v3454
  %v3664 = vmul.f32 1.0, %v3663
  %v3665 = vrcp.pop %v3455
  %v3666 = vmul.f32 1.0, %v3665
  %v3667 = vrcp.pop %v3456
  %v3668 = vmul.f32 1.0, %v3667
  %v3669 = vrcp.pop %v3457
  %v3670 = vmul.f32 1.0, %v3669
  %v3671 = vrcp.pop %v3458
  %v3672 = vmul.f32 1.0, %v3671
  %v3673 = vrcp.pop %v3459
  %v3674 = vmul.f32 1.0, %v3673
  %v3675 = vrcp.pop %v3460
  %v3676 = vmul.f32 1.0, %v3675
  %v3677 = vrcp.pop %v3461
  %v3678 = vmul.f32 1.0, %v3677
  %v3679 = vrcp.pop %v3462
  %v3680 = vmul.f32 1.0, %v3679
  %v3681 = vrcp.pop %v3463
  %v3682 = vmul.f32 1.0, %v3681
  %v3683 = vrcp.pop %v3464
  %v3684 = vmul.f32 1.0, %v3683
  %v3685 = vrcp.pop %v3465
  %v3686 = vmul.f32 1.0, %v3685
  %v3687 = vrcp.pop %v3466
  %v3688 = vmul.f32 1.0, %v3687
  %v3689 = vrcp.pop %v3467
  %v3690 = vmul.f32 1.0, %v3689
  %v3691 = vrcp.pop %v3468
  %v3692 = vmul.f32 1.0, %v3691
  %v3693 = vrcp.pop %v3469
  %v3694 = vmul.f32 1.0, %v3693
  %v3695 = vrcp.pop %v3470
  %v3696 = vmul.f32 1.0, %v3695
  %v3697 = vrcp.pop %v3471
  %v3698 = vmul.f32 1.0, %v3697
  %v3699 = vrcp.pop %v3472
  %v3700 = vmul.f32 1.0, %v3699
  %v3701 = vrcp.pop %v3473
  %v3702 = vmul.f32 1.0, %v3701
  %v3703 = vrcp.pop %v3474
  %v3704 = vmul.f32 1.0, %v3703
  %v3705 = vrcp.pop %v3475
  %v3706 = vmul.f32 1.0, %v3705
  %v3707 = vrcp.pop %v3476
  %v3708 = vmul.f32 1.0, %v3707
  %v3709 = vrcp.pop %v3477
  %v3710 = vmul.f32 1.0, %v3709
  %v3711 = vrcp.pop %v3478
  %v3712 = vmul.f32 1.0, %v3711
  %v3713 = vrcp.pop %v3479
  %v3714 = vmul.f32 1.0, %v3713
  %v3715 = vrcp.pop %v3480
  %v3716 = vmul.f32 1.0, %v3715
  %v3717 = vrcp.pop %v3481
  %v3718 = vmul.f32 1.0, %v3717
  %v3719 = vrcp.pop %v3482
  %v3720 = vmul.f32 1.0, %v3719
  %v3721 = vrcp.pop %v3483
  %v3722 = vmul.f32 1.0, %v3721
  %v3723 = vrcp.pop %v3484
  %v3724 = vmul.f32 1.0, %v3723
  %v3725 = vrcp.pop %v3485
  %v3726 = vmul.f32 1.0, %v3725
  %v3727 = vrcp.pop %v3486
  %v3728 = vmul.f32 1.0, %v3727
  %v3729 = vrcp.pop %v3487
  %v3730 = vmul.f32 1.0, %v3729
  %v3731 = vrcp.pop %v3488
  %v3732 = vmul.f32 1.0, %v3731
  %v3733 = vrcp.pop %v3489
  %v3734 = vmul.f32 1.0, %v3733
  %v3735 = vrcp.pop %v3490
  %v3736 = vmul.f32 1.0, %v3735
  %v3737 = vrcp.pop %v3491
  %v3738 = vmul.f32 1.0, %v3737
  %v3739 = vrcp.pop %v3492
  %v3740 = vmul.f32 1.0, %v3739
  %v3741 = vrcp.pop %v3493
  %v3742 = vmul.f32 1.0, %v3741
  %v3743 = vrcp.pop %v3494
  %v3744 = vmul.f32 1.0, %v3743
  %v3745 = vrcp.pop %v3495
  %v3746 = vmul.f32 1.0, %v3745
  %v3747 = vrcp.pop %v3496
  %v3748 = vmul.f32 1.0, %v3747
  %v3749 = vrcp.pop %v3497
  %v3750 = vmul.f32 1.0, %v3749
  %v3751 = vrcp.pop %v3498
  %v3752 = vmul.f32 1.0, %v3751
  %v3753 = vrcp.pop %v3499
  %v3754 = vmul.f32 1.0, %v3753
  %v3755 = vrcp.pop %v3500
  %v3756 = vmul.f32 1.0, %v3755
  %vm3757 = vcmask 7168
  %3758 = vst.msk [vmem:[%s7] sm:$0xff] %vm3757, %v3502
  %3759 = vst.msk [vmem:[%s7 + $0x8] sm:$0xff] %vm3757, %v3504
  %3760 = vst.msk [vmem:[%s7 + $0x10] sm:$0xff] %vm3757, %v3506
  %3761 = vst.msk [vmem:[%s7 + $0x18] sm:$0xff] %vm3757, %v3508
  %3762 = vst.msk [vmem:[%s7 + $0x20] sm:$0xff] %vm3757, %v3510
  %3763 = vst.msk [vmem:[%s7 + $0x28] sm:$0xff] %vm3757, %v3512
  %3764 = vst.msk [vmem:[%s7 + $0x30] sm:$0xff] %vm3757, %v3514
  %3765 = vst.msk [vmem:[%s7 + $0x38] sm:$0xff] %vm3757, %v3516
  %3766 = vst.msk [vmem:[%s7 + $0x40] sm:$0xff] %vm3757, %v3518
  %3767 = vst.msk [vmem:[%s7 + $0x48] sm:$0xff] %vm3757, %v3520
  %3768 = vst.msk [vmem:[%s7 + $0x50] sm:$0xff] %vm3757, %v3522
  %3769 = vst.msk [vmem:[%s7 + $0x58] sm:$0xff] %vm3757, %v3524
  %3770 = vst.msk [vmem:[%s7 + $0x60] sm:$0xff] %vm3757, %v3526
  %3771 = vst.msk [vmem:[%s7 + $0x68] sm:$0xff] %vm3757, %v3528
  %3772 = vst.msk [vmem:[%s7 + $0x70] sm:$0xff] %vm3757, %v3530
  %3773 = vst.msk [vmem:[%s7 + $0x78] sm:$0xff] %vm3757, %v3532
  %3774 = vst.msk [vmem:[%s7 + $0x80] sm:$0xff] %vm3757, %v3534
  %3775 = vst.msk [vmem:[%s7 + $0x88] sm:$0xff] %vm3757, %v3536
  %3776 = vst.msk [vmem:[%s7 + $0x90] sm:$0xff] %vm3757, %v3538
  %3777 = vst.msk [vmem:[%s7 + $0x98] sm:$0xff] %vm3757, %v3540
  %3778 = vst.msk [vmem:[%s7 + $0xa0] sm:$0xff] %vm3757, %v3542
  %3779 = vst.msk [vmem:[%s7 + $0xa8] sm:$0xff] %vm3757, %v3544
  %3780 = vst.msk [vmem:[%s7 + $0xb0] sm:$0xff] %vm3757, %v3546
  %3781 = vst.msk [vmem:[%s7 + $0xb8] sm:$0xff] %vm3757, %v3548
  %3782 = vst.msk [vmem:[%s7 + $0xc0] sm:$0xff] %vm3757, %v3550
  %3783 = vst.msk [vmem:[%s7 + $0xc8] sm:$0xff] %vm3757, %v3552
  %3784 = vst.msk [vmem:[%s7 + $0xd0] sm:$0xff] %vm3757, %v3554
  %3785 = vst.msk [vmem:[%s7 + $0xd8] sm:$0xff] %vm3757, %v3556
  %3786 = vst.msk [vmem:[%s7 + $0xe0] sm:$0xff] %vm3757, %v3558
  %3787 = vst.msk [vmem:[%s7 + $0xe8] sm:$0xff] %vm3757, %v3560
  %3788 = vst.msk [vmem:[%s7 + $0xf0] sm:$0xff] %vm3757, %v3562
  %3789 = vst.msk [vmem:[%s7 + $0xf8] sm:$0xff] %vm3757, %v3564
  %3790 = vst.msk [vmem:[%s7 + $0x100] sm:$0xff] %vm3757, %v3566
  %3791 = vst.msk [vmem:[%s7 + $0x108] sm:$0xff] %vm3757, %v3568
  %3792 = vst.msk [vmem:[%s7 + $0x110] sm:$0xff] %vm3757, %v3570
  %3793 = vst.msk [vmem:[%s7 + $0x118] sm:$0xff] %vm3757, %v3572
  %3794 = vst.msk [vmem:[%s7 + $0x120] sm:$0xff] %vm3757, %v3574
  %3795 = vst.msk [vmem:[%s7 + $0x128] sm:$0xff] %vm3757, %v3576
  %3796 = vst.msk [vmem:[%s7 + $0x130] sm:$0xff] %vm3757, %v3578
  %3797 = vst.msk [vmem:[%s7 + $0x138] sm:$0xff] %vm3757, %v3580
  %3798 = vst.msk [vmem:[%s7 + $0x140] sm:$0xff] %vm3757, %v3582
  %3799 = vst.msk [vmem:[%s7 + $0x148] sm:$0xff] %vm3757, %v3584
  %3800 = vst.msk [vmem:[%s7 + $0x150] sm:$0xff] %vm3757, %v3586
  %3801 = vst.msk [vmem:[%s7 + $0x158] sm:$0xff] %vm3757, %v3588
  %3802 = vst.msk [vmem:[%s7 + $0x160] sm:$0xff] %vm3757, %v3590
  %3803 = vst.msk [vmem:[%s7 + $0x168] sm:$0xff] %vm3757, %v3592
  %3804 = vst.msk [vmem:[%s7 + $0x170] sm:$0xff] %vm3757, %v3594
  %3805 = vst.msk [vmem:[%s7 + $0x178] sm:$0xff] %vm3757, %v3596
  %3806 = vst.msk [vmem:[%s7 + $0x180] sm:$0xff] %vm3757, %v3598
  %3807 = vst.msk [vmem:[%s7 + $0x188] sm:$0xff] %vm3757, %v3600
  %3808 = vst.msk [vmem:[%s7 + $0x190] sm:$0xff] %vm3757, %v3602
  %3809 = vst.msk [vmem:[%s7 + $0x198] sm:$0xff] %vm3757, %v3604
  %3810 = vst.msk [vmem:[%s7 + $0x1a0] sm:$0xff] %vm3757, %v3606
  %3811 = vst.msk [vmem:[%s7 + $0x1a8] sm:$0xff] %vm3757, %v3608
  %3812 = vst.msk [vmem:[%s7 + $0x1b0] sm:$0xff] %vm3757, %v3610
  %3813 = vst.msk [vmem:[%s7 + $0x1b8] sm:$0xff] %vm3757, %v3612
  %3814 = vst.msk [vmem:[%s7 + $0x1c0] sm:$0xff] %vm3757, %v3614
  %3815 = vst.msk [vmem:[%s7 + $0x1c8] sm:$0xff] %vm3757, %v3616
  %3816 = vst.msk [vmem:[%s7 + $0x1d0] sm:$0xff] %vm3757, %v3618
  %3817 = vst.msk [vmem:[%s7 + $0x1d8] sm:$0xff] %vm3757, %v3620
  %3818 = vst.msk [vmem:[%s7 + $0x1e0] sm:$0xff] %vm3757, %v3622
  %3819 = vst.msk [vmem:[%s7 + $0x1e8] sm:$0xff] %vm3757, %v3624
  %3820 = vst.msk [vmem:[%s7 + $0x1f0] sm:$0xff] %vm3757, %v3626
  %3821 = vst.msk [vmem:[%s7 + $0x1f8] sm:$0xff] %vm3757, %v3628
  %3822 = vst.msk [vmem:[%s7 + $0x200] sm:$0xff] %vm3757, %v3630
  %3823 = vst.msk [vmem:[%s7 + $0x208] sm:$0xff] %vm3757, %v3632
  %3824 = vst.msk [vmem:[%s7 + $0x210] sm:$0xff] %vm3757, %v3634
  %3825 = vst.msk [vmem:[%s7 + $0x218] sm:$0xff] %vm3757, %v3636
  %3826 = vst.msk [vmem:[%s7 + $0x220] sm:$0xff] %vm3757, %v3638
  %3827 = vst.msk [vmem:[%s7 + $0x228] sm:$0xff] %vm3757, %v3640
  %3828 = vst.msk [vmem:[%s7 + $0x230] sm:$0xff] %vm3757, %v3642
  %3829 = vst.msk [vmem:[%s7 + $0x238] sm:$0xff] %vm3757, %v3644
  %3830 = vst.msk [vmem:[%s7 + $0x240] sm:$0xff] %vm3757, %v3646
  %3831 = vst.msk [vmem:[%s7 + $0x248] sm:$0xff] %vm3757, %v3648
  %3832 = vst.msk [vmem:[%s7 + $0x250] sm:$0xff] %vm3757, %v3650
  %3833 = vst.msk [vmem:[%s7 + $0x258] sm:$0xff] %vm3757, %v3652
  %3834 = vst.msk [vmem:[%s7 + $0x260] sm:$0xff] %vm3757, %v3654
  %3835 = vst.msk [vmem:[%s7 + $0x268] sm:$0xff] %vm3757, %v3656
  %3836 = vst.msk [vmem:[%s7 + $0x270] sm:$0xff] %vm3757, %v3658
  %3837 = vst.msk [vmem:[%s7 + $0x278] sm:$0xff] %vm3757, %v3660
  %3838 = vst.msk [vmem:[%s7 + $0x280] sm:$0xff] %vm3757, %v3662
  %3839 = vst.msk [vmem:[%s7 + $0x288] sm:$0xff] %vm3757, %v3664
  %3840 = vst.msk [vmem:[%s7 + $0x290] sm:$0xff] %vm3757, %v3666
  %3841 = vst.msk [vmem:[%s7 + $0x298] sm:$0xff] %vm3757, %v3668
  %3842 = vst.msk [vmem:[%s7 + $0x2a0] sm:$0xff] %vm3757, %v3670
  %3843 = vst.msk [vmem:[%s7 + $0x2a8] sm:$0xff] %vm3757, %v3672
  %3844 = vst.msk [vmem:[%s7 + $0x2b0] sm:$0xff] %vm3757, %v3674
  %3845 = vst.msk [vmem:[%s7 + $0x2b8] sm:$0xff] %vm3757, %v3676
  %3846 = vst.msk [vmem:[%s7 + $0x2c0] sm:$0xff] %vm3757, %v3678
  %3847 = vst.msk [vmem:[%s7 + $0x2c8] sm:$0xff] %vm3757, %v3680
  %3848 = vst.msk [vmem:[%s7 + $0x2d0] sm:$0xff] %vm3757, %v3682
  %3849 = vst.msk [vmem:[%s7 + $0x2d8] sm:$0xff] %vm3757, %v3684
  %3850 = vst.msk [vmem:[%s7 + $0x2e0] sm:$0xff] %vm3757, %v3686
  %3851 = vst.msk [vmem:[%s7 + $0x2e8] sm:$0xff] %vm3757, %v3688
  %3852 = vst.msk [vmem:[%s7 + $0x2f0] sm:$0xff] %vm3757, %v3690
  %3853 = vst.msk [vmem:[%s7 + $0x2f8] sm:$0xff] %vm3757, %v3692
  %3854 = vst.msk [vmem:[%s7 + $0x300] sm:$0xff] %vm3757, %v3694
  %3855 = vst.msk [vmem:[%s7 + $0x308] sm:$0xff] %vm3757, %v3696
  %3856 = vst.msk [vmem:[%s7 + $0x310] sm:$0xff] %vm3757, %v3698
  %3857 = vst.msk [vmem:[%s7 + $0x318] sm:$0xff] %vm3757, %v3700
  %3858 = vst.msk [vmem:[%s7 + $0x320] sm:$0xff] %vm3757, %v3702
  %3859 = vst.msk [vmem:[%s7 + $0x328] sm:$0xff] %vm3757, %v3704
  %3860 = vst.msk [vmem:[%s7 + $0x330] sm:$0xff] %vm3757, %v3706
  %3861 = vst.msk [vmem:[%s7 + $0x338] sm:$0xff] %vm3757, %v3708
  %3862 = vst.msk [vmem:[%s7 + $0x340] sm:$0xff] %vm3757, %v3710
  %3863 = vst.msk [vmem:[%s7 + $0x348] sm:$0xff] %vm3757, %v3712
  %3864 = vst.msk [vmem:[%s7 + $0x350] sm:$0xff] %vm3757, %v3714
  %3865 = vst.msk [vmem:[%s7 + $0x358] sm:$0xff] %vm3757, %v3716
  %3866 = vst.msk [vmem:[%s7 + $0x360] sm:$0xff] %vm3757, %v3718
  %3867 = vst.msk [vmem:[%s7 + $0x368] sm:$0xff] %vm3757, %v3720
  %3868 = vst.msk [vmem:[%s7 + $0x370] sm:$0xff] %vm3757, %v3722
  %3869 = vst.msk [vmem:[%s7 + $0x378] sm:$0xff] %vm3757, %v3724
  %3870 = vst.msk [vmem:[%s7 + $0x380] sm:$0xff] %vm3757, %v3726
  %3871 = vst.msk [vmem:[%s7 + $0x388] sm:$0xff] %vm3757, %v3728
  %3872 = vst.msk [vmem:[%s7 + $0x390] sm:$0xff] %vm3757, %v3730
  %3873 = vst.msk [vmem:[%s7 + $0x398] sm:$0xff] %vm3757, %v3732
  %3874 = vst.msk [vmem:[%s7 + $0x3a0] sm:$0xff] %vm3757, %v3734
  %3875 = vst.msk [vmem:[%s7 + $0x3a8] sm:$0xff] %vm3757, %v3736
  %3876 = vst.msk [vmem:[%s7 + $0x3b0] sm:$0xff] %vm3757, %v3738
  %3877 = vst.msk [vmem:[%s7 + $0x3b8] sm:$0xff] %vm3757, %v3740
  %3878 = vst.msk [vmem:[%s7 + $0x3c0] sm:$0xff] %vm3757, %v3742
  %3879 = vst.msk [vmem:[%s7 + $0x3c8] sm:$0xff] %vm3757, %v3744
  %3880 = vst.msk [vmem:[%s7 + $0x3d0] sm:$0xff] %vm3757, %v3746
  %3881 = vst.msk [vmem:[%s7 + $0x3d8] sm:$0xff] %vm3757, %v3748
  %3882 = vst.msk [vmem:[%s7 + $0x3e0] sm:$0xff] %vm3757, %v3750
  %3883 = vst.msk [vmem:[%s7 + $0x3e8] sm:$0xff] %vm3757, %v3752
  %3884 = vst.msk [vmem:[%s7 + $0x3f0] sm:$0xff] %vm3757, %v3754
  %3885 = vst.msk [vmem:[%s7 + $0x3f8] sm:$0xff] %vm3757, %v3756
  // Predicated region
  $region30: #{tpu_custom_call.1} parent=0 // pred_check
    _
  $region31: #{tpu_custom_call.1} parent=0 // pred_check_branch
    %3887 = sbr.rel (0) target = $region33
  $region32: #{tpu_custom_call.1} parent=0 // pred_region
    _
  $region33: #{tpu_custom_call.1} parent=0 // pred_fallthru
    _
  // Predicated region
  $region34: #{tpu_custom_call.1} parent=0 // pred_check
    _
  $region35: #{tpu_custom_call.1} parent=0 // pred_check_branch
    %3889 = sbr.rel (0) target = $region37
  $region36: #{tpu_custom_call.1} parent=0 // pred_region
    _
  $region37: #{tpu_custom_call.1} parent=0 // pred_fallthru
    _

</llo_original>
